<compile_context>
chip_gen: v7x
topology: tpu7x:2x2x1
jax: 0.10.0
libtpu: 0.0.40
codegen_flags: <defaults>
</compile_context>

<pallas_src>
import jax
import jax.numpy as jnp
from jax import lax
from jax.experimental import pallas as pl
from jax.experimental.pallas import tpu as pltpu

EPS = 1e-5  # nn.BatchNorm2d default eps


# ---------------------------------------------------------------------------
# helpers
# ---------------------------------------------------------------------------
def _pick_tile(n, cap, mult):
    """Largest divisor of n that is <= cap and a multiple of `mult`; falls back to n."""
    if n <= cap:
        return n
    for d in range(cap, 0, -1):
        if n % d == 0 and d % mult == 0:
            return d
    return n


def _compiler_params(semantics, *block_bytes):
    """dimension_semantics + a vmem limit sized from the per-step tile buffers.

    Capped at 48 MiB so the same tiles are safe on v7x (64 MiB physical per TC)."""
    est = 3 * int(sum(block_bytes)) + (8 << 20)
    return pltpu.CompilerParams(
        dimension_semantics=semantics,
        vmem_limit_bytes=int(min(max(est, 32 << 20), 48 << 20)))


# ---------------------------------------------------------------------------
# Kernel A: pairwise distances + fused top-(k+1) neighbor selection
# ---------------------------------------------------------------------------
def knn_topk_kernel(pos_ref, posq_ref, sq_ref, idx_ref):
    # pos_ref: [1, Cp, N] f32 (all points); posq_ref: [1, Cp, TQ] f32 (query tile)
    # sq_ref: [1, 1, N] f32 (precomputed ||x_j||^2); idx_ref: [1, TQ, K+1] int32
    kp1 = idx_ref.shape[2]
    n = pos_ref.shape[2]
    q2 = posq_ref[0] * 2.0                                   # scale small side once
    g = lax.dot_general(q2, pos_ref[0], (((0,), (0,)), ((), ())),
                        preferred_element_type=jnp.float32)  # [TQ, N] = 2<q, x_j>
    # torch ordering key per row: 2<x_i,x_j> - ||x_j||^2 (the -||x_i||^2 row constant
    # cannot change the per-row ordering; self still ranks first).
    d = g - sq_ref[0]                                        # [TQ, N] f32
    col = lax.broadcasted_iota(jnp.int32, d.shape, 1)
    picks = []
    for _ in range(kp1):                                     # iterative max + mask
        m = jnp.max(d, axis=1, keepdims=True)                # [TQ, 1]
        amax = jnp.min(jnp.where(d >= m, col, n), axis=1, keepdims=True)  # [TQ, 1] i32
        picks.append(amax)
        d = jnp.where(col == amax, -jnp.inf, d)
    idx_ref[0] = jnp.concatenate(picks, axis=1)              # [TQ, K+1]


# ---------------------------------------------------------------------------
# Kernel B (pass 1): conv1 (nbr/self weight split) + BN1 partial statistics
# ---------------------------------------------------------------------------
def dgcnn_stats_kernel(nbr_ref, xs_ref, w1n_ref, w1s_ref, stats_ref):
    # nbr_ref: [1, K, C, NT] bf16; xs_ref: [1, C, NT] bf16; w1n/w1s: [C, C] bf16
    # stats_ref: [1, 1, C, 2] f32  (per-tile sum / sum-of-squares of conv1 output)
    kk = nbr_ref.shape[1]
    xs = xs_ref[0]
    w1n = w1n_ref[...]
    hs = jnp.dot(w1s_ref[...], xs, preferred_element_type=jnp.float32)   # [C, NT]
    hsum = jnp.zeros_like(hs)
    hsq = jnp.zeros_like(hs)
    for j in range(kk):                                       # unrolled K loop, bounded VMEM
        hj = jnp.dot(w1n, nbr_ref[0, j], preferred_element_type=jnp.float32) + hs
        hsum = hsum + hj
        hsq = hsq + hj * hj
    stats_ref[0, 0] = jnp.concatenate(
        [jnp.sum(hsum, axis=1, keepdims=True),
         jnp.sum(hsq, axis=1, keepdims=True)], axis=1)        # [C, 2]


# ---------------------------------------------------------------------------
# Kernel C (pass 2): conv1(+folded BN1)+relu, max_k, fused conv2, BN2 partials
# ---------------------------------------------------------------------------
def dgcnn_main_kernel(nbr_ref, xs_ref, w1nb_ref, w1sb_ref, c1_ref, w2f_ref,
                      out_ref, stats_ref):
    # nbr_ref: [1, K, C, NT] bf16; xs_ref: [1, C, NT] bf16
    # w1nb/w1sb: [C, C] bf16 (BN1 scale folded in); c1_ref: [C, 1] f32 (BN1 shift)
    # w2f_ref: [C, 3C] bf16 (fused conv2 weight over [maxn; self; x1])
    # out_ref: [1, C, NT] f32 (pre-BN2, lane-dense); stats_ref: [1, 1, C, 2] f32
    kk = nbr_ref.shape[1]
    xs = xs_ref[0]
    w1nb = w1nb_ref[...]
    hs = jnp.dot(w1sb_ref[...], xs, preferred_element_type=jnp.float32) + c1_ref[...]
    x1 = None
    maxn = None
    for j in range(kk):
        nj = nbr_ref[0, j]                                    # [C, NT] bf16
        hj = jnp.maximum(
            jnp.dot(w1nb, nj, preferred_element_type=jnp.float32) + hs, 0.0)
        x1 = hj if x1 is None else jnp.maximum(x1, hj)        # max_k of relu(bn1(conv1))
        maxn = nj if maxn is None else jnp.maximum(maxn, nj)  # max_k of raw neighbors (x0)
    # conv2 as ONE MXU call: concat along sublanes -> 3C-deep contraction.
    act = jnp.concatenate([maxn, xs, x1.astype(jnp.bfloat16)], axis=0)   # [3C, NT]
    h2 = jnp.dot(w2f_ref[...], act, preferred_element_type=jnp.float32)  # [C, NT]
    out_ref[0] = h2
    stats_ref[0, 0] = jnp.concatenate(
        [jnp.sum(h2, axis=1, keepdims=True),
         jnp.sum(h2 * h2, axis=1, keepdims=True)], axis=1)    # BN2 partials, nearly free


# ---------------------------------------------------------------------------
# Wrapper: DGCNN_func.forward (t unused) and the one-step Euler integration
# ---------------------------------------------------------------------------
def dgcnn_func(x, params):
    """x: [B, C, N] f32  ->  [B, C, N] f32 (relu(bn2(conv2(...))))"""
    B, C, N = x.shape
    Cp = C // 2
    kk = min(N, 16) - 1                     # get_graph_feature_position default k=16
    kp1 = kk + 1

    w1, w2, g1, b1, g2, b2 = params         # w1: [C, 2C], w2: [C, 3C]  (torch [C_out, C_in])

    # ---- knn on position channels + fused top-(k+1) (Pallas) ----------------
    pos = x[:, Cp:, :]                                            # [B, Cp, N]
    sq = jnp.sum(pos * pos, axis=1, keepdims=True)                # [B, 1, N] precomputed once
    tq_cap = max(8, min(512, (10 << 20) // (24 * N)))
    TQ = _pick_tile(N, tq_cap, 8)
    idx_all = pl.pallas_call(
        knn_topk_kernel,
        out_shape=jax.ShapeDtypeStruct((B, N, kp1), jnp.int32),
        grid=(B, N // TQ),
        in_specs=[pl.BlockSpec((1, Cp, N), lambda b, t: (b, 0, 0)),
                  pl.BlockSpec((1, Cp, TQ), lambda b, t: (b, 0, t)),
                  pl.BlockSpec((1, 1, N), lambda b, t: (b, 0, 0))],
        out_specs=pl.BlockSpec((1, TQ, kp1), lambda b, t: (b, t, 0)),
        compiler_params=_compiler_params(
            ("parallel", "parallel"),
            4 * Cp * N, 4 * Cp * TQ, 4 * N, 4 * TQ * kp1, 24 * TQ * N),
    )(pos, pos, sq)
    idx_k = idx_all[:, :, 1:]                                     # drop self -> [B, N, k]

    # ---- gather neighbors in XLA, directly into the flipped [B, k, C, N] layout
    x_bf = x.astype(jnp.bfloat16)                                 # self rows: [B, C, N] bf16

    def _gather_one(xb, col):                                     # xb: [C, N], col: [N]
        return jnp.take(xb, col, axis=1)                          # [C, N]

    nbr = jax.vmap(jax.vmap(_gather_one, in_axes=(None, 1), out_axes=0),
                   in_axes=(0, 0), out_axes=0)(x_bf, idx_k)       # [B, k, C, N] bf16

    # ---- split/fuse the 1x1-conv weights (channel order: nbr_pt|self_pt|nbr_pos|self_pos)
    w1n = jnp.concatenate([w1[:, 0:Cp], w1[:, C:C + Cp]], axis=1)        # [C, C] neighbor
    w1s = jnp.concatenate([w1[:, Cp:C], w1[:, C + Cp:2 * C]], axis=1)    # [C, C] self
    w2f = jnp.concatenate([w2[:, 0:Cp], w2[:, C:C + Cp],                 # x0: max_k nbr [pt|pos]
                           w2[:, Cp:C], w2[:, C + Cp:2 * C],             # x0: self  [pt|pos]
                           w2[:, 2 * C:3 * C]], axis=1)                  # x1
    w1n_bf = w1n.astype(jnp.bfloat16)
    w1s_bf = w1s.astype(jnp.bfloat16)
    w2f_bf = w2f.astype(jnp.bfloat16)

    # ---- tile size: points on lanes, sized from a per-lane byte budget -------
    per_lane = 2 * kk * C + 2 * C + 4 * 8 * C       # nbr+xs (bf16) + ~8 f32 [C,.] temps
    nt_cap = max(128, min(1024, (16 << 20) // per_lane))
    nt_cap = (nt_cap // 128) * 128
    NT = _pick_tile(N, nt_cap, 128)
    ntb = N // NT

    # ---- pass 1: conv1 + BN1 partial statistics ------------------------------
    p1 = pl.pallas_call(
        dgcnn_stats_kernel,
        out_shape=jax.ShapeDtypeStruct((B, ntb, C, 2), jnp.float32),
        grid=(B, ntb),
        in_specs=[pl.BlockSpec((1, kk, C, NT), lambda b, t: (b, 0, 0, t)),
                  pl.BlockSpec((1, C, NT), lambda b, t: (b, 0, t)),
                  pl.BlockSpec((C, C), lambda b, t: (0, 0)),
                  pl.BlockSpec((C, C), lambda b, t: (0, 0))],
        out_specs=pl.BlockSpec((1, 1, C, 2), lambda b, t: (b, t, 0, 0)),
        compiler_params=_compiler_params(
            ("parallel", "parallel"),
            2 * kk * C * NT, 2 * C * NT, 4 * C * C, 16 * C * NT, 8 * C),
    )(nbr, x_bf, w1n_bf, w1s_bf)

    s1 = jnp.sum(p1, axis=(0, 1))                                 # [C, 2]
    cnt1 = float(B * N * kk)
    mean1 = s1[:, 0] / cnt1
    var1 = jnp.maximum(s1[:, 1] / cnt1 - mean1 * mean1, 0.0)      # biased (training) var
    a1 = g1.reshape(C) * lax.rsqrt(var1 + EPS)
    c1 = (b1.reshape(C) - mean1 * a1).reshape(C, 1).astype(jnp.float32)
    w1nb = (w1n * a1[:, None]).astype(jnp.bfloat16)               # fold BN1 scale into conv1
    w1sb = (w1s * a1[:, None]).astype(jnp.bfloat16)

    # ---- pass 2: conv1+BN1+relu, max_k, fused conv2, BN2 partials ------------
    out_pre, p2 = pl.pallas_call(
        dgcnn_main_kernel,
        out_shape=(jax.ShapeDtypeStruct((B, C, N), jnp.float32),
                   jax.ShapeDtypeStruct((B, ntb, C, 2), jnp.float32)),
        grid=(B, ntb),
        in_specs=[pl.BlockSpec((1, kk, C, NT), lambda b, t: (b, 0, 0, t)),
                  pl.BlockSpec((1, C, NT), lambda b, t: (b, 0, t)),
                  pl.BlockSpec((C, C), lambda b, t: (0, 0)),          # w1nb
                  pl.BlockSpec((C, C), lambda b, t: (0, 0)),          # w1sb
                  pl.BlockSpec((C, 1), lambda b, t: (0, 0)),          # c1
                  pl.BlockSpec((C, 3 * C), lambda b, t: (0, 0))],     # w2f
        out_specs=(pl.BlockSpec((1, C, NT), lambda b, t: (b, 0, t)),
                   pl.BlockSpec((1, 1, C, 2), lambda b, t: (b, t, 0, 0))),
        compiler_params=_compiler_params(
            ("parallel", "parallel"),
            2 * kk * C * NT, 2 * C * NT, 4 * C * C + 6 * C * C + 4 * C,
            4 * C * NT, 8 * C, 24 * C * NT),
    )(nbr, x_bf, w1nb, w1sb, c1, w2f_bf)

    # ---- BN2 finalize from kernel partials + relu (one fused elementwise pass)
    s2 = jnp.sum(p2, axis=(0, 1))                                 # [C, 2]
    cnt2 = float(B * N)
    mean2 = s2[:, 0] / cnt2
    var2 = jnp.maximum(s2[:, 1] / cnt2 - mean2 * mean2, 0.0)
    a2 = g2.reshape(C) * lax.rsqrt(var2 + EPS)
    c2 = b2.reshape(C) - mean2 * a2
    return jnp.maximum(out_pre * a2[None, :, None] + c2[None, :, None], 0.0)


@jax.jit
def posdiffnet_forward(x, params):
    # torchdiffeq 'euler' with t=[0, 1], step_size=1.0  ->  z = x + 1.0 * f(t=0, x)
    # (XLA fuses the BN2 affine + relu + this residual add into one elementwise pass.)
    return x + 1.0 * dgcnn_func(x, params)


if __name__ == "__main__":
    # small synthetic config: emb_dims=32, batch=2, num_points=16  ->  k = 15
    B, C, N = 2, 32, 16
    key = jax.random.PRNGKey(0)
    kx, k1, k2, k3, k4, k5, k6 = jax.random.split(key, 7)

    x = jax.random.normal(kx, (B, C, N), dtype=jnp.float32)
    # conv weights in torch layout [C_out, C_in]; BN params as [C]
    w1 = 0.1 * jax.random.normal(k1, (C, 2 * C), dtype=jnp.float32)    # conv1: 2C->C, no bias
    w2 = 0.1 * jax.random.normal(k2, (C, 3 * C), dtype=jnp.float32)    # conv2: 3C->C, no bias
    g1 = 1.0 + 0.1 * jax.random.normal(k3, (C,), dtype=jnp.float32)    # bn1 gamma
    b1 = 0.1 * jax.random.normal(k4, (C,), dtype=jnp.float32)          # bn1 beta
    g2 = 1.0 + 0.1 * jax.random.normal(k5, (C,), dtype=jnp.float32)    # bn2 gamma
    b2 = 0.1 * jax.random.normal(k6, (C,), dtype=jnp.float32)          # bn2 beta
    params = (w1, w2, g1, b1, g2, b2)

    z = posdiffnet_forward(x, params)
    jax.block_until_ready(z)
    assert z.shape == (B, C, N) and bool(jnp.all(jnp.isfinite(z)))
    print("KERNEL_OK")
</pallas_src>

<mosaic_0001>
module attributes {stable_mosaic.version = 11 : i64} {
  func.func @knn_topk_kernel(%arg0: i32, %arg1: i32, %arg2: memref<1x16x16xf32, #tpu.memory_space<vmem>>, %arg3: memref<1x16x16xf32, #tpu.memory_space<vmem>>, %arg4: memref<1x1x16xf32, #tpu.memory_space<vmem>>, %arg5: memref<1x16x16xi32, #tpu.memory_space<vmem>>) attributes {dimension_semantics = [#tpu.dimension_semantics<parallel>, #tpu.dimension_semantics<parallel>], iteration_bounds = array<i64: 2, 1>, scalar_prefetch = 0 : i64, scratch_operands = 0 : i64, tpu.core_type = #tpu.core_type<tc>, window_params = [{transform_indices = @transform_0, window_bounds = array<i64: 1, 16, 16>}, {transform_indices = @transform_1, window_bounds = array<i64: 1, 16, 16>}, {transform_indices = @transform_2, window_bounds = array<i64: 1, 1, 16>}, {transform_indices = @transform_3, window_bounds = array<i64: 1, 16, 16>}]} {
    %c0 = arith.constant 0 : index
    %c0_0 = arith.constant 0 : index
    %c0_1 = arith.constant 0 : index
    %0 = vector.load %arg3[%c0, %c0_0, %c0_1] : memref<1x16x16xf32, #tpu.memory_space<vmem>>, vector<1x16x16xf32>
    %1 = vector.shape_cast %0 : vector<1x16x16xf32> to vector<16x16xf32>
    %cst = arith.constant 2.000000e+00 : f32
    %2 = vector.broadcast %cst : f32 to vector<16x16xf32>
    %3 = arith.mulf %1, %2 : vector<16x16xf32>
    %c0_2 = arith.constant 0 : index
    %c0_3 = arith.constant 0 : index
    %c0_4 = arith.constant 0 : index
    %4 = vector.load %arg2[%c0_2, %c0_3, %c0_4] : memref<1x16x16xf32, #tpu.memory_space<vmem>>, vector<1x16x16xf32>
    %5 = vector.shape_cast %4 : vector<1x16x16xf32> to vector<16x16xf32>
    %cst_5 = arith.constant dense<0.000000e+00> : vector<16x16xf32>
    %6 = tpu.matmul %3, %5, %cst_5 {dimension_numbers = #tpu.dot_dimension_numbers<[0], [0], [1], [1], [0, 1, 1, 1], [], []>} : vector<16x16xf32>, vector<16x16xf32>, vector<16x16xf32> -> vector<16x16xf32>
    %c0_6 = arith.constant 0 : index
    %c0_7 = arith.constant 0 : index
    %c0_8 = arith.constant 0 : index
    %7 = vector.load %arg4[%c0_6, %c0_7, %c0_8] : memref<1x1x16xf32, #tpu.memory_space<vmem>>, vector<1x1x16xf32>
    %8 = vector.shape_cast %7 : vector<1x1x16xf32> to vector<1x16xf32>
    %9 = vector.broadcast %8 : vector<1x16xf32> to vector<16x16xf32>
    %10 = arith.subf %6, %9 : vector<16x16xf32>
    %11 = tpu.iota {dimensions = array<i32: 1>} : vector<16x16xi32>
    %cst_9 = arith.constant dense<0xFF800000> : vector<16xf32>
    %12 = vector.multi_reduction <maximumf>, %10, %cst_9 [1] : vector<16x16xf32> to vector<16xf32>
    %13 = vector.shape_cast %12 : vector<16xf32> to vector<16x1xf32>
    %14 = vector.broadcast %13 : vector<16x1xf32> to vector<16x16xf32>
    %15 = arith.cmpf oge, %10, %14 : vector<16x16xf32>
    %c16_i32 = arith.constant 16 : i32
    %16 = vector.broadcast %c16_i32 : i32 to vector<16x16xi32>
    %17 = arith.select %15, %11, %16 : vector<16x16xi1>, vector<16x16xi32>
    %cst_10 = arith.constant dense<2147483647> : vector<16xi32>
    %18 = vector.multi_reduction <minsi>, %17, %cst_10 [1] : vector<16x16xi32> to vector<16xi32>
    %19 = vector.shape_cast %18 : vector<16xi32> to vector<16x1xi32>
    %20 = vector.broadcast %19 : vector<16x1xi32> to vector<16x16xi32>
    %21 = arith.cmpi eq, %11, %20 : vector<16x16xi32>
    %cst_11 = arith.constant 0xFF800000 : f32
    %22 = vector.broadcast %cst_11 : f32 to vector<16x16xf32>
    %23 = arith.select %21, %22, %10 : vector<16x16xi1>, vector<16x16xf32>
    %cst_12 = arith.constant dense<0xFF800000> : vector<16xf32>
    %24 = vector.multi_reduction <maximumf>, %23, %cst_12 [1] : vector<16x16xf32> to vector<16xf32>
    %25 = vector.shape_cast %24 : vector<16xf32> to vector<16x1xf32>
    %26 = vector.broadcast %25 : vector<16x1xf32> to vector<16x16xf32>
    %27 = arith.cmpf oge, %23, %26 : vector<16x16xf32>
    %c16_i32_13 = arith.constant 16 : i32
    %28 = vector.broadcast %c16_i32_13 : i32 to vector<16x16xi32>
    %29 = arith.select %27, %11, %28 : vector<16x16xi1>, vector<16x16xi32>
    %cst_14 = arith.constant dense<2147483647> : vector<16xi32>
    %30 = vector.multi_reduction <minsi>, %29, %cst_14 [1] : vector<16x16xi32> to vector<16xi32>
    %31 = vector.shape_cast %30 : vector<16xi32> to vector<16x1xi32>
    %32 = vector.broadcast %31 : vector<16x1xi32> to vector<16x16xi32>
    %33 = arith.cmpi eq, %11, %32 : vector<16x16xi32>
    %cst_15 = arith.constant 0xFF800000 : f32
    %34 = vector.broadcast %cst_15 : f32 to vector<16x16xf32>
    %35 = arith.select %33, %34, %23 : vector<16x16xi1>, vector<16x16xf32>
    %cst_16 = arith.constant dense<0xFF800000> : vector<16xf32>
    %36 = vector.multi_reduction <maximumf>, %35, %cst_16 [1] : vector<16x16xf32> to vector<16xf32>
    %37 = vector.shape_cast %36 : vector<16xf32> to vector<16x1xf32>
    %38 = vector.broadcast %37 : vector<16x1xf32> to vector<16x16xf32>
    %39 = arith.cmpf oge, %35, %38 : vector<16x16xf32>
    %c16_i32_17 = arith.constant 16 : i32
    %40 = vector.broadcast %c16_i32_17 : i32 to vector<16x16xi32>
    %41 = arith.select %39, %11, %40 : vector<16x16xi1>, vector<16x16xi32>
    %cst_18 = arith.constant dense<2147483647> : vector<16xi32>
    %42 = vector.multi_reduction <minsi>, %41, %cst_18 [1] : vector<16x16xi32> to vector<16xi32>
    %43 = vector.shape_cast %42 : vector<16xi32> to vector<16x1xi32>
    %44 = vector.broadcast %43 : vector<16x1xi32> to vector<16x16xi32>
    %45 = arith.cmpi eq, %11, %44 : vector<16x16xi32>
    %cst_19 = arith.constant 0xFF800000 : f32
    %46 = vector.broadcast %cst_19 : f32 to vector<16x16xf32>
    %47 = arith.select %45, %46, %35 : vector<16x16xi1>, vector<16x16xf32>
    %cst_20 = arith.constant dense<0xFF800000> : vector<16xf32>
    %48 = vector.multi_reduction <maximumf>, %47, %cst_20 [1] : vector<16x16xf32> to vector<16xf32>
    %49 = vector.shape_cast %48 : vector<16xf32> to vector<16x1xf32>
    %50 = vector.broadcast %49 : vector<16x1xf32> to vector<16x16xf32>
    %51 = arith.cmpf oge, %47, %50 : vector<16x16xf32>
    %c16_i32_21 = arith.constant 16 : i32
    %52 = vector.broadcast %c16_i32_21 : i32 to vector<16x16xi32>
    %53 = arith.select %51, %11, %52 : vector<16x16xi1>, vector<16x16xi32>
    %cst_22 = arith.constant dense<2147483647> : vector<16xi32>
    %54 = vector.multi_reduction <minsi>, %53, %cst_22 [1] : vector<16x16xi32> to vector<16xi32>
    %55 = vector.shape_cast %54 : vector<16xi32> to vector<16x1xi32>
    %56 = vector.broadcast %55 : vector<16x1xi32> to vector<16x16xi32>
    %57 = arith.cmpi eq, %11, %56 : vector<16x16xi32>
    %cst_23 = arith.constant 0xFF800000 : f32
    %58 = vector.broadcast %cst_23 : f32 to vector<16x16xf32>
    %59 = arith.select %57, %58, %47 : vector<16x16xi1>, vector<16x16xf32>
    %cst_24 = arith.constant dense<0xFF800000> : vector<16xf32>
    %60 = vector.multi_reduction <maximumf>, %59, %cst_24 [1] : vector<16x16xf32> to vector<16xf32>
    %61 = vector.shape_cast %60 : vector<16xf32> to vector<16x1xf32>
    %62 = vector.broadcast %61 : vector<16x1xf32> to vector<16x16xf32>
    %63 = arith.cmpf oge, %59, %62 : vector<16x16xf32>
    %c16_i32_25 = arith.constant 16 : i32
    %64 = vector.broadcast %c16_i32_25 : i32 to vector<16x16xi32>
    %65 = arith.select %63, %11, %64 : vector<16x16xi1>, vector<16x16xi32>
    %cst_26 = arith.constant dense<2147483647> : vector<16xi32>
    %66 = vector.multi_reduction <minsi>, %65, %cst_26 [1] : vector<16x16xi32> to vector<16xi32>
    %67 = vector.shape_cast %66 : vector<16xi32> to vector<16x1xi32>
    %68 = vector.broadcast %67 : vector<16x1xi32> to vector<16x16xi32>
    %69 = arith.cmpi eq, %11, %68 : vector<16x16xi32>
    %cst_27 = arith.constant 0xFF800000 : f32
    %70 = vector.broadcast %cst_27 : f32 to vector<16x16xf32>
    %71 = arith.select %69, %70, %59 : vector<16x16xi1>, vector<16x16xf32>
    %cst_28 = arith.constant dense<0xFF800000> : vector<16xf32>
    %72 = vector.multi_reduction <maximumf>, %71, %cst_28 [1] : vector<16x16xf32> to vector<16xf32>
    %73 = vector.shape_cast %72 : vector<16xf32> to vector<16x1xf32>
    %74 = vector.broadcast %73 : vector<16x1xf32> to vector<16x16xf32>
    %75 = arith.cmpf oge, %71, %74 : vector<16x16xf32>
    %c16_i32_29 = arith.constant 16 : i32
    %76 = vector.broadcast %c16_i32_29 : i32 to vector<16x16xi32>
    %77 = arith.select %75, %11, %76 : vector<16x16xi1>, vector<16x16xi32>
    %cst_30 = arith.constant dense<2147483647> : vector<16xi32>
    %78 = vector.multi_reduction <minsi>, %77, %cst_30 [1] : vector<16x16xi32> to vector<16xi32>
    %79 = vector.shape_cast %78 : vector<16xi32> to vector<16x1xi32>
    %80 = vector.broadcast %79 : vector<16x1xi32> to vector<16x16xi32>
    %81 = arith.cmpi eq, %11, %80 : vector<16x16xi32>
    %cst_31 = arith.constant 0xFF800000 : f32
    %82 = vector.broadcast %cst_31 : f32 to vector<16x16xf32>
    %83 = arith.select %81, %82, %71 : vector<16x16xi1>, vector<16x16xf32>
    %cst_32 = arith.constant dense<0xFF800000> : vector<16xf32>
    %84 = vector.multi_reduction <maximumf>, %83, %cst_32 [1] : vector<16x16xf32> to vector<16xf32>
    %85 = vector.shape_cast %84 : vector<16xf32> to vector<16x1xf32>
    %86 = vector.broadcast %85 : vector<16x1xf32> to vector<16x16xf32>
    %87 = arith.cmpf oge, %83, %86 : vector<16x16xf32>
    %c16_i32_33 = arith.constant 16 : i32
    %88 = vector.broadcast %c16_i32_33 : i32 to vector<16x16xi32>
    %89 = arith.select %87, %11, %88 : vector<16x16xi1>, vector<16x16xi32>
    %cst_34 = arith.constant dense<2147483647> : vector<16xi32>
    %90 = vector.multi_reduction <minsi>, %89, %cst_34 [1] : vector<16x16xi32> to vector<16xi32>
    %91 = vector.shape_cast %90 : vector<16xi32> to vector<16x1xi32>
    %92 = vector.broadcast %91 : vector<16x1xi32> to vector<16x16xi32>
    %93 = arith.cmpi eq, %11, %92 : vector<16x16xi32>
    %cst_35 = arith.constant 0xFF800000 : f32
    %94 = vector.broadcast %cst_35 : f32 to vector<16x16xf32>
    %95 = arith.select %93, %94, %83 : vector<16x16xi1>, vector<16x16xf32>
    %cst_36 = arith.constant dense<0xFF800000> : vector<16xf32>
    %96 = vector.multi_reduction <maximumf>, %95, %cst_36 [1] : vector<16x16xf32> to vector<16xf32>
    %97 = vector.shape_cast %96 : vector<16xf32> to vector<16x1xf32>
    %98 = vector.broadcast %97 : vector<16x1xf32> to vector<16x16xf32>
    %99 = arith.cmpf oge, %95, %98 : vector<16x16xf32>
    %c16_i32_37 = arith.constant 16 : i32
    %100 = vector.broadcast %c16_i32_37 : i32 to vector<16x16xi32>
    %101 = arith.select %99, %11, %100 : vector<16x16xi1>, vector<16x16xi32>
    %cst_38 = arith.constant dense<2147483647> : vector<16xi32>
    %102 = vector.multi_reduction <minsi>, %101, %cst_38 [1] : vector<16x16xi32> to vector<16xi32>
    %103 = vector.shape_cast %102 : vector<16xi32> to vector<16x1xi32>
    %104 = vector.broadcast %103 : vector<16x1xi32> to vector<16x16xi32>
    %105 = arith.cmpi eq, %11, %104 : vector<16x16xi32>
    %cst_39 = arith.constant 0xFF800000 : f32
    %106 = vector.broadcast %cst_39 : f32 to vector<16x16xf32>
    %107 = arith.select %105, %106, %95 : vector<16x16xi1>, vector<16x16xf32>
    %cst_40 = arith.constant dense<0xFF800000> : vector<16xf32>
    %108 = vector.multi_reduction <maximumf>, %107, %cst_40 [1] : vector<16x16xf32> to vector<16xf32>
    %109 = vector.shape_cast %108 : vector<16xf32> to vector<16x1xf32>
    %110 = vector.broadcast %109 : vector<16x1xf32> to vector<16x16xf32>
    %111 = arith.cmpf oge, %107, %110 : vector<16x16xf32>
    %c16_i32_41 = arith.constant 16 : i32
    %112 = vector.broadcast %c16_i32_41 : i32 to vector<16x16xi32>
    %113 = arith.select %111, %11, %112 : vector<16x16xi1>, vector<16x16xi32>
    %cst_42 = arith.constant dense<2147483647> : vector<16xi32>
    %114 = vector.multi_reduction <minsi>, %113, %cst_42 [1] : vector<16x16xi32> to vector<16xi32>
    %115 = vector.shape_cast %114 : vector<16xi32> to vector<16x1xi32>
    %116 = vector.broadcast %115 : vector<16x1xi32> to vector<16x16xi32>
    %117 = arith.cmpi eq, %11, %116 : vector<16x16xi32>
    %cst_43 = arith.constant 0xFF800000 : f32
    %118 = vector.broadcast %cst_43 : f32 to vector<16x16xf32>
    %119 = arith.select %117, %118, %107 : vector<16x16xi1>, vector<16x16xf32>
    %cst_44 = arith.constant dense<0xFF800000> : vector<16xf32>
    %120 = vector.multi_reduction <maximumf>, %119, %cst_44 [1] : vector<16x16xf32> to vector<16xf32>
    %121 = vector.shape_cast %120 : vector<16xf32> to vector<16x1xf32>
    %122 = vector.broadcast %121 : vector<16x1xf32> to vector<16x16xf32>
    %123 = arith.cmpf oge, %119, %122 : vector<16x16xf32>
    %c16_i32_45 = arith.constant 16 : i32
    %124 = vector.broadcast %c16_i32_45 : i32 to vector<16x16xi32>
    %125 = arith.select %123, %11, %124 : vector<16x16xi1>, vector<16x16xi32>
    %cst_46 = arith.constant dense<2147483647> : vector<16xi32>
    %126 = vector.multi_reduction <minsi>, %125, %cst_46 [1] : vector<16x16xi32> to vector<16xi32>
    %127 = vector.shape_cast %126 : vector<16xi32> to vector<16x1xi32>
    %128 = vector.broadcast %127 : vector<16x1xi32> to vector<16x16xi32>
    %129 = arith.cmpi eq, %11, %128 : vector<16x16xi32>
    %cst_47 = arith.constant 0xFF800000 : f32
    %130 = vector.broadcast %cst_47 : f32 to vector<16x16xf32>
    %131 = arith.select %129, %130, %119 : vector<16x16xi1>, vector<16x16xf32>
    %cst_48 = arith.constant dense<0xFF800000> : vector<16xf32>
    %132 = vector.multi_reduction <maximumf>, %131, %cst_48 [1] : vector<16x16xf32> to vector<16xf32>
    %133 = vector.shape_cast %132 : vector<16xf32> to vector<16x1xf32>
    %134 = vector.broadcast %133 : vector<16x1xf32> to vector<16x16xf32>
    %135 = arith.cmpf oge, %131, %134 : vector<16x16xf32>
    %c16_i32_49 = arith.constant 16 : i32
    %136 = vector.broadcast %c16_i32_49 : i32 to vector<16x16xi32>
    %137 = arith.select %135, %11, %136 : vector<16x16xi1>, vector<16x16xi32>
    %cst_50 = arith.constant dense<2147483647> : vector<16xi32>
    %138 = vector.multi_reduction <minsi>, %137, %cst_50 [1] : vector<16x16xi32> to vector<16xi32>
    %139 = vector.shape_cast %138 : vector<16xi32> to vector<16x1xi32>
    %140 = vector.broadcast %139 : vector<16x1xi32> to vector<16x16xi32>
    %141 = arith.cmpi eq, %11, %140 : vector<16x16xi32>
    %cst_51 = arith.constant 0xFF800000 : f32
    %142 = vector.broadcast %cst_51 : f32 to vector<16x16xf32>
    %143 = arith.select %141, %142, %131 : vector<16x16xi1>, vector<16x16xf32>
    %cst_52 = arith.constant dense<0xFF800000> : vector<16xf32>
    %144 = vector.multi_reduction <maximumf>, %143, %cst_52 [1] : vector<16x16xf32> to vector<16xf32>
    %145 = vector.shape_cast %144 : vector<16xf32> to vector<16x1xf32>
    %146 = vector.broadcast %145 : vector<16x1xf32> to vector<16x16xf32>
    %147 = arith.cmpf oge, %143, %146 : vector<16x16xf32>
    %c16_i32_53 = arith.constant 16 : i32
    %148 = vector.broadcast %c16_i32_53 : i32 to vector<16x16xi32>
    %149 = arith.select %147, %11, %148 : vector<16x16xi1>, vector<16x16xi32>
    %cst_54 = arith.constant dense<2147483647> : vector<16xi32>
    %150 = vector.multi_reduction <minsi>, %149, %cst_54 [1] : vector<16x16xi32> to vector<16xi32>
    %151 = vector.shape_cast %150 : vector<16xi32> to vector<16x1xi32>
    %152 = vector.broadcast %151 : vector<16x1xi32> to vector<16x16xi32>
    %153 = arith.cmpi eq, %11, %152 : vector<16x16xi32>
    %cst_55 = arith.constant 0xFF800000 : f32
    %154 = vector.broadcast %cst_55 : f32 to vector<16x16xf32>
    %155 = arith.select %153, %154, %143 : vector<16x16xi1>, vector<16x16xf32>
    %cst_56 = arith.constant dense<0xFF800000> : vector<16xf32>
    %156 = vector.multi_reduction <maximumf>, %155, %cst_56 [1] : vector<16x16xf32> to vector<16xf32>
    %157 = vector.shape_cast %156 : vector<16xf32> to vector<16x1xf32>
    %158 = vector.broadcast %157 : vector<16x1xf32> to vector<16x16xf32>
    %159 = arith.cmpf oge, %155, %158 : vector<16x16xf32>
    %c16_i32_57 = arith.constant 16 : i32
    %160 = vector.broadcast %c16_i32_57 : i32 to vector<16x16xi32>
    %161 = arith.select %159, %11, %160 : vector<16x16xi1>, vector<16x16xi32>
    %cst_58 = arith.constant dense<2147483647> : vector<16xi32>
    %162 = vector.multi_reduction <minsi>, %161, %cst_58 [1] : vector<16x16xi32> to vector<16xi32>
    %163 = vector.shape_cast %162 : vector<16xi32> to vector<16x1xi32>
    %164 = vector.broadcast %163 : vector<16x1xi32> to vector<16x16xi32>
    %165 = arith.cmpi eq, %11, %164 : vector<16x16xi32>
    %cst_59 = arith.constant 0xFF800000 : f32
    %166 = vector.broadcast %cst_59 : f32 to vector<16x16xf32>
    %167 = arith.select %165, %166, %155 : vector<16x16xi1>, vector<16x16xf32>
    %cst_60 = arith.constant dense<0xFF800000> : vector<16xf32>
    %168 = vector.multi_reduction <maximumf>, %167, %cst_60 [1] : vector<16x16xf32> to vector<16xf32>
    %169 = vector.shape_cast %168 : vector<16xf32> to vector<16x1xf32>
    %170 = vector.broadcast %169 : vector<16x1xf32> to vector<16x16xf32>
    %171 = arith.cmpf oge, %167, %170 : vector<16x16xf32>
    %c16_i32_61 = arith.constant 16 : i32
    %172 = vector.broadcast %c16_i32_61 : i32 to vector<16x16xi32>
    %173 = arith.select %171, %11, %172 : vector<16x16xi1>, vector<16x16xi32>
    %cst_62 = arith.constant dense<2147483647> : vector<16xi32>
    %174 = vector.multi_reduction <minsi>, %173, %cst_62 [1] : vector<16x16xi32> to vector<16xi32>
    %175 = vector.shape_cast %174 : vector<16xi32> to vector<16x1xi32>
    %176 = vector.broadcast %175 : vector<16x1xi32> to vector<16x16xi32>
    %177 = arith.cmpi eq, %11, %176 : vector<16x16xi32>
    %cst_63 = arith.constant 0xFF800000 : f32
    %178 = vector.broadcast %cst_63 : f32 to vector<16x16xf32>
    %179 = arith.select %177, %178, %167 : vector<16x16xi1>, vector<16x16xf32>
    %cst_64 = arith.constant dense<0xFF800000> : vector<16xf32>
    %180 = vector.multi_reduction <maximumf>, %179, %cst_64 [1] : vector<16x16xf32> to vector<16xf32>
    %181 = vector.shape_cast %180 : vector<16xf32> to vector<16x1xf32>
    %182 = vector.broadcast %181 : vector<16x1xf32> to vector<16x16xf32>
    %183 = arith.cmpf oge, %179, %182 : vector<16x16xf32>
    %c16_i32_65 = arith.constant 16 : i32
    %184 = vector.broadcast %c16_i32_65 : i32 to vector<16x16xi32>
    %185 = arith.select %183, %11, %184 : vector<16x16xi1>, vector<16x16xi32>
    %cst_66 = arith.constant dense<2147483647> : vector<16xi32>
    %186 = vector.multi_reduction <minsi>, %185, %cst_66 [1] : vector<16x16xi32> to vector<16xi32>
    %187 = vector.shape_cast %186 : vector<16xi32> to vector<16x1xi32>
    %188 = vector.broadcast %187 : vector<16x1xi32> to vector<16x16xi32>
    %189 = arith.cmpi eq, %11, %188 : vector<16x16xi32>
    %cst_67 = arith.constant 0xFF800000 : f32
    %190 = vector.broadcast %cst_67 : f32 to vector<16x16xf32>
    %191 = arith.select %189, %190, %179 : vector<16x16xi1>, vector<16x16xf32>
    %cst_68 = arith.constant dense<0xFF800000> : vector<16xf32>
    %192 = vector.multi_reduction <maximumf>, %191, %cst_68 [1] : vector<16x16xf32> to vector<16xf32>
    %193 = vector.shape_cast %192 : vector<16xf32> to vector<16x1xf32>
    %194 = vector.broadcast %193 : vector<16x1xf32> to vector<16x16xf32>
    %195 = arith.cmpf oge, %191, %194 : vector<16x16xf32>
    %c16_i32_69 = arith.constant 16 : i32
    %196 = vector.broadcast %c16_i32_69 : i32 to vector<16x16xi32>
    %197 = arith.select %195, %11, %196 : vector<16x16xi1>, vector<16x16xi32>
    %cst_70 = arith.constant dense<2147483647> : vector<16xi32>
    %198 = vector.multi_reduction <minsi>, %197, %cst_70 [1] : vector<16x16xi32> to vector<16xi32>
    %199 = vector.shape_cast %198 : vector<16xi32> to vector<16x1xi32>
    %200 = tpu.concatenate %19, %31, %43, %55, %67, %79, %91, %103, %115, %127, %139, %151, %163, %175, %187, %199 in 1 : vector<16x1xi32>, vector<16x1xi32>, vector<16x1xi32>, vector<16x1xi32>, vector<16x1xi32>, vector<16x1xi32>, vector<16x1xi32>, vector<16x1xi32>, vector<16x1xi32>, vector<16x1xi32>, vector<16x1xi32>, vector<16x1xi32>, vector<16x1xi32>, vector<16x1xi32>, vector<16x1xi32>, vector<16x1xi32> -> vector<16x16xi32>
    %c0_71 = arith.constant 0 : index
    %c0_72 = arith.constant 0 : index
    %c0_73 = arith.constant 0 : index
    %201 = vector.load %arg5[%c0_71, %c0_72, %c0_73] : memref<1x16x16xi32, #tpu.memory_space<vmem>>, vector<1x16x16xi32>
    %202 = vector.shape_cast %201 : vector<1x16x16xi32> to vector<16x16xi32>
    %203 = vector.shape_cast %200 : vector<16x16xi32> to vector<1x16x16xi32>
    tpu.vector_store %arg5[%c0_71, %c0_72, %c0_73], %203 {strides = array<i32>} : memref<1x16x16xi32, #tpu.memory_space<vmem>>, vector<1x16x16xi32>,
    return
  }
  func.func @transform_0(%arg0: i32, %arg1: i32) -> (i32, i32, i32) {
    %c0_i32 = arith.constant 0 : i32
    %c0_i32_0 = arith.constant 0 : i32
    %c0_i32_1 = arith.constant 0 : i32
    return %arg0, %c0_i32, %c0_i32_0 : i32, i32, i32
  }
  func.func @transform_1(%arg0: i32, %arg1: i32) -> (i32, i32, i32) {
    %c0_i32 = arith.constant 0 : i32
    %c0_i32_0 = arith.constant 0 : i32
    return %arg0, %c0_i32, %arg1 : i32, i32, i32
  }
  func.func @transform_2(%arg0: i32, %arg1: i32) -> (i32, i32, i32) {
    %c0_i32 = arith.constant 0 : i32
    %c0_i32_0 = arith.constant 0 : i32
    %c0_i32_1 = arith.constant 0 : i32
    return %arg0, %c0_i32, %c0_i32_0 : i32, i32, i32
  }
  func.func @transform_3(%arg0: i32, %arg1: i32) -> (i32, i32, i32) {
    %c0_i32 = arith.constant 0 : i32
    %c0_i32_0 = arith.constant 0 : i32
    return %arg0, %arg1, %c0_i32 : i32, i32, i32
  }
}

module attributes {stable_mosaic.version = 11 : i64} {
  func.func @dgcnn_stats_kernel(%arg0: i32, %arg1: i32, %arg2: memref<1x15x32x16xbf16, #tpu.memory_space<vmem>>, %arg3: memref<1x32x16xbf16, #tpu.memory_space<vmem>>, %arg4: memref<32x32xbf16, #tpu.memory_space<vmem>>, %arg5: memref<32x32xbf16, #tpu.memory_space<vmem>>, %arg6: memref<1x1x32x2xf32, #tpu.memory_space<vmem>>) attributes {dimension_semantics = [#tpu.dimension_semantics<parallel>, #tpu.dimension_semantics<parallel>], iteration_bounds = array<i64: 2, 1>, scalar_prefetch = 0 : i64, scratch_operands = 0 : i64, tpu.core_type = #tpu.core_type<tc>, window_params = [{transform_indices = @transform_0, window_bounds = array<i64: 1, 15, 32, 16>}, {transform_indices = @transform_1, window_bounds = array<i64: 1, 32, 16>}, {pipeline_mode = #tpu.pipeline_mode<synchronous>, transform_indices = @transform_2, window_bounds = array<i64: 32, 32>}, {pipeline_mode = #tpu.pipeline_mode<synchronous>, transform_indices = @transform_3, window_bounds = array<i64: 32, 32>}, {transform_indices = @transform_4, window_bounds = array<i64: 1, 1, 32, 2>}]} {
    %c0 = arith.constant 0 : index
    %c0_0 = arith.constant 0 : index
    %c0_1 = arith.constant 0 : index
    %0 = vector.load %arg3[%c0, %c0_0, %c0_1] : memref<1x32x16xbf16, #tpu.memory_space<vmem>>, vector<1x32x16xbf16>
    %1 = vector.shape_cast %0 : vector<1x32x16xbf16> to vector<32x16xbf16>
    %c0_2 = arith.constant 0 : index
    %c0_3 = arith.constant 0 : index
    %2 = vector.load %arg4[%c0_2, %c0_3] : memref<32x32xbf16, #tpu.memory_space<vmem>>, vector<32x32xbf16>
    %c0_4 = arith.constant 0 : index
    %c0_5 = arith.constant 0 : index
    %3 = vector.load %arg5[%c0_4, %c0_5] : memref<32x32xbf16, #tpu.memory_space<vmem>>, vector<32x32xbf16>
    %cst = arith.constant dense<0.000000e+00> : vector<32x16xf32>
    %4 = tpu.matmul %3, %1, %cst {dimension_numbers = #tpu.dot_dimension_numbers<[1], [0], [0], [1], [0, 0, 1, 1], [], []>} : vector<32x32xbf16>, vector<32x16xbf16>, vector<32x16xf32> -> vector<32x16xf32>
    %cst_6 = arith.constant 0.000000e+00 : f32
    %5 = vector.broadcast %cst_6 : f32 to vector<32x16xf32>
    %cst_7 = arith.constant 0.000000e+00 : f32
    %6 = vector.broadcast %cst_7 : f32 to vector<32x16xf32>
    %c0_8 = arith.constant 0 : index
    %c0_9 = arith.constant 0 : index
    %c0_10 = arith.constant 0 : index
    %c0_11 = arith.constant 0 : index
    %7 = vector.load %arg2[%c0_8, %c0_9, %c0_10, %c0_11] : memref<1x15x32x16xbf16, #tpu.memory_space<vmem>>, vector<1x1x32x16xbf16>
    %8 = vector.shape_cast %7 : vector<1x1x32x16xbf16> to vector<32x16xbf16>
    %cst_12 = arith.constant dense<0.000000e+00> : vector<32x16xf32>
    %9 = tpu.matmul %2, %8, %cst_12 {dimension_numbers = #tpu.dot_dimension_numbers<[1], [0], [0], [1], [0, 0, 1, 1], [], []>} : vector<32x32xbf16>, vector<32x16xbf16>, vector<32x16xf32> -> vector<32x16xf32>
    %10 = arith.addf %9, %4 : vector<32x16xf32>
    %11 = arith.addf %5, %10 : vector<32x16xf32>
    %12 = arith.mulf %10, %10 : vector<32x16xf32>
    %13 = arith.addf %6, %12 : vector<32x16xf32>
    %c0_13 = arith.constant 0 : index
    %c1 = arith.constant 1 : index
    %c0_14 = arith.constant 0 : index
    %c0_15 = arith.constant 0 : index
    %14 = vector.load %arg2[%c0_13, %c1, %c0_14, %c0_15] : memref<1x15x32x16xbf16, #tpu.memory_space<vmem>>, vector<1x1x32x16xbf16>
    %15 = vector.shape_cast %14 : vector<1x1x32x16xbf16> to vector<32x16xbf16>
    %cst_16 = arith.constant dense<0.000000e+00> : vector<32x16xf32>
    %16 = tpu.matmul %2, %15, %cst_16 {dimension_numbers = #tpu.dot_dimension_numbers<[1], [0], [0], [1], [0, 0, 1, 1], [], []>} : vector<32x32xbf16>, vector<32x16xbf16>, vector<32x16xf32> -> vector<32x16xf32>
    %17 = arith.addf %16, %4 : vector<32x16xf32>
    %18 = arith.addf %11, %17 : vector<32x16xf32>
    %19 = arith.mulf %17, %17 : vector<32x16xf32>
    %20 = arith.addf %13, %19 : vector<32x16xf32>
    %c0_17 = arith.constant 0 : index
    %c2 = arith.constant 2 : index
    %c0_18 = arith.constant 0 : index
    %c0_19 = arith.constant 0 : index
    %21 = vector.load %arg2[%c0_17, %c2, %c0_18, %c0_19] : memref<1x15x32x16xbf16, #tpu.memory_space<vmem>>, vector<1x1x32x16xbf16>
    %22 = vector.shape_cast %21 : vector<1x1x32x16xbf16> to vector<32x16xbf16>
    %cst_20 = arith.constant dense<0.000000e+00> : vector<32x16xf32>
    %23 = tpu.matmul %2, %22, %cst_20 {dimension_numbers = #tpu.dot_dimension_numbers<[1], [0], [0], [1], [0, 0, 1, 1], [], []>} : vector<32x32xbf16>, vector<32x16xbf16>, vector<32x16xf32> -> vector<32x16xf32>
    %24 = arith.addf %23, %4 : vector<32x16xf32>
    %25 = arith.addf %18, %24 : vector<32x16xf32>
    %26 = arith.mulf %24, %24 : vector<32x16xf32>
    %27 = arith.addf %20, %26 : vector<32x16xf32>
    %c0_21 = arith.constant 0 : index
    %c3 = arith.constant 3 : index
    %c0_22 = arith.constant 0 : index
    %c0_23 = arith.constant 0 : index
    %28 = vector.load %arg2[%c0_21, %c3, %c0_22, %c0_23] : memref<1x15x32x16xbf16, #tpu.memory_space<vmem>>, vector<1x1x32x16xbf16>
    %29 = vector.shape_cast %28 : vector<1x1x32x16xbf16> to vector<32x16xbf16>
    %cst_24 = arith.constant dense<0.000000e+00> : vector<32x16xf32>
    %30 = tpu.matmul %2, %29, %cst_24 {dimension_numbers = #tpu.dot_dimension_numbers<[1], [0], [0], [1], [0, 0, 1, 1], [], []>} : vector<32x32xbf16>, vector<32x16xbf16>, vector<32x16xf32> -> vector<32x16xf32>
    %31 = arith.addf %30, %4 : vector<32x16xf32>
    %32 = arith.addf %25, %31 : vector<32x16xf32>
    %33 = arith.mulf %31, %31 : vector<32x16xf32>
    %34 = arith.addf %27, %33 : vector<32x16xf32>
    %c0_25 = arith.constant 0 : index
    %c4 = arith.constant 4 : index
    %c0_26 = arith.constant 0 : index
    %c0_27 = arith.constant 0 : index
    %35 = vector.load %arg2[%c0_25, %c4, %c0_26, %c0_27] : memref<1x15x32x16xbf16, #tpu.memory_space<vmem>>, vector<1x1x32x16xbf16>
    %36 = vector.shape_cast %35 : vector<1x1x32x16xbf16> to vector<32x16xbf16>
    %cst_28 = arith.constant dense<0.000000e+00> : vector<32x16xf32>
    %37 = tpu.matmul %2, %36, %cst_28 {dimension_numbers = #tpu.dot_dimension_numbers<[1], [0], [0], [1], [0, 0, 1, 1], [], []>} : vector<32x32xbf16>, vector<32x16xbf16>, vector<32x16xf32> -> vector<32x16xf32>
    %38 = arith.addf %37, %4 : vector<32x16xf32>
    %39 = arith.addf %32, %38 : vector<32x16xf32>
    %40 = arith.mulf %38, %38 : vector<32x16xf32>
    %41 = arith.addf %34, %40 : vector<32x16xf32>
    %c0_29 = arith.constant 0 : index
    %c5 = arith.constant 5 : index
    %c0_30 = arith.constant 0 : index
    %c0_31 = arith.constant 0 : index
    %42 = vector.load %arg2[%c0_29, %c5, %c0_30, %c0_31] : memref<1x15x32x16xbf16, #tpu.memory_space<vmem>>, vector<1x1x32x16xbf16>
    %43 = vector.shape_cast %42 : vector<1x1x32x16xbf16> to vector<32x16xbf16>
    %cst_32 = arith.constant dense<0.000000e+00> : vector<32x16xf32>
    %44 = tpu.matmul %2, %43, %cst_32 {dimension_numbers = #tpu.dot_dimension_numbers<[1], [0], [0], [1], [0, 0, 1, 1], [], []>} : vector<32x32xbf16>, vector<32x16xbf16>, vector<32x16xf32> -> vector<32x16xf32>
    %45 = arith.addf %44, %4 : vector<32x16xf32>
    %46 = arith.addf %39, %45 : vector<32x16xf32>
    %47 = arith.mulf %45, %45 : vector<32x16xf32>
    %48 = arith.addf %41, %47 : vector<32x16xf32>
    %c0_33 = arith.constant 0 : index
    %c6 = arith.constant 6 : index
    %c0_34 = arith.constant 0 : index
    %c0_35 = arith.constant 0 : index
    %49 = vector.load %arg2[%c0_33, %c6, %c0_34, %c0_35] : memref<1x15x32x16xbf16, #tpu.memory_space<vmem>>, vector<1x1x32x16xbf16>
    %50 = vector.shape_cast %49 : vector<1x1x32x16xbf16> to vector<32x16xbf16>
    %cst_36 = arith.constant dense<0.000000e+00> : vector<32x16xf32>
    %51 = tpu.matmul %2, %50, %cst_36 {dimension_numbers = #tpu.dot_dimension_numbers<[1], [0], [0], [1], [0, 0, 1, 1], [], []>} : vector<32x32xbf16>, vector<32x16xbf16>, vector<32x16xf32> -> vector<32x16xf32>
    %52 = arith.addf %51, %4 : vector<32x16xf32>
    %53 = arith.addf %46, %52 : vector<32x16xf32>
    %54 = arith.mulf %52, %52 : vector<32x16xf32>
    %55 = arith.addf %48, %54 : vector<32x16xf32>
    %c0_37 = arith.constant 0 : index
    %c7 = arith.constant 7 : index
    %c0_38 = arith.constant 0 : index
    %c0_39 = arith.constant 0 : index
    %56 = vector.load %arg2[%c0_37, %c7, %c0_38, %c0_39] : memref<1x15x32x16xbf16, #tpu.memory_space<vmem>>, vector<1x1x32x16xbf16>
    %57 = vector.shape_cast %56 : vector<1x1x32x16xbf16> to vector<32x16xbf16>
    %cst_40 = arith.constant dense<0.000000e+00> : vector<32x16xf32>
    %58 = tpu.matmul %2, %57, %cst_40 {dimension_numbers = #tpu.dot_dimension_numbers<[1], [0], [0], [1], [0, 0, 1, 1], [], []>} : vector<32x32xbf16>, vector<32x16xbf16>, vector<32x16xf32> -> vector<32x16xf32>
    %59 = arith.addf %58, %4 : vector<32x16xf32>
    %60 = arith.addf %53, %59 : vector<32x16xf32>
    %61 = arith.mulf %59, %59 : vector<32x16xf32>
    %62 = arith.addf %55, %61 : vector<32x16xf32>
    %c0_41 = arith.constant 0 : index
    %c8 = arith.constant 8 : index
    %c0_42 = arith.constant 0 : index
    %c0_43 = arith.constant 0 : index
    %63 = vector.load %arg2[%c0_41, %c8, %c0_42, %c0_43] : memref<1x15x32x16xbf16, #tpu.memory_space<vmem>>, vector<1x1x32x16xbf16>
    %64 = vector.shape_cast %63 : vector<1x1x32x16xbf16> to vector<32x16xbf16>
    %cst_44 = arith.constant dense<0.000000e+00> : vector<32x16xf32>
    %65 = tpu.matmul %2, %64, %cst_44 {dimension_numbers = #tpu.dot_dimension_numbers<[1], [0], [0], [1], [0, 0, 1, 1], [], []>} : vector<32x32xbf16>, vector<32x16xbf16>, vector<32x16xf32> -> vector<32x16xf32>
    %66 = arith.addf %65, %4 : vector<32x16xf32>
    %67 = arith.addf %60, %66 : vector<32x16xf32>
    %68 = arith.mulf %66, %66 : vector<32x16xf32>
    %69 = arith.addf %62, %68 : vector<32x16xf32>
    %c0_45 = arith.constant 0 : index
    %c9 = arith.constant 9 : index
    %c0_46 = arith.constant 0 : index
    %c0_47 = arith.constant 0 : index
    %70 = vector.load %arg2[%c0_45, %c9, %c0_46, %c0_47] : memref<1x15x32x16xbf16, #tpu.memory_space<vmem>>, vector<1x1x32x16xbf16>
    %71 = vector.shape_cast %70 : vector<1x1x32x16xbf16> to vector<32x16xbf16>
    %cst_48 = arith.constant dense<0.000000e+00> : vector<32x16xf32>
    %72 = tpu.matmul %2, %71, %cst_48 {dimension_numbers = #tpu.dot_dimension_numbers<[1], [0], [0], [1], [0, 0, 1, 1], [], []>} : vector<32x32xbf16>, vector<32x16xbf16>, vector<32x16xf32> -> vector<32x16xf32>
    %73 = arith.addf %72, %4 : vector<32x16xf32>
    %74 = arith.addf %67, %73 : vector<32x16xf32>
    %75 = arith.mulf %73, %73 : vector<32x16xf32>
    %76 = arith.addf %69, %75 : vector<32x16xf32>
    %c0_49 = arith.constant 0 : index
    %c10 = arith.constant 10 : index
    %c0_50 = arith.constant 0 : index
    %c0_51 = arith.constant 0 : index
    %77 = vector.load %arg2[%c0_49, %c10, %c0_50, %c0_51] : memref<1x15x32x16xbf16, #tpu.memory_space<vmem>>, vector<1x1x32x16xbf16>
    %78 = vector.shape_cast %77 : vector<1x1x32x16xbf16> to vector<32x16xbf16>
    %cst_52 = arith.constant dense<0.000000e+00> : vector<32x16xf32>
    %79 = tpu.matmul %2, %78, %cst_52 {dimension_numbers = #tpu.dot_dimension_numbers<[1], [0], [0], [1], [0, 0, 1, 1], [], []>} : vector<32x32xbf16>, vector<32x16xbf16>, vector<32x16xf32> -> vector<32x16xf32>
    %80 = arith.addf %79, %4 : vector<32x16xf32>
    %81 = arith.addf %74, %80 : vector<32x16xf32>
    %82 = arith.mulf %80, %80 : vector<32x16xf32>
    %83 = arith.addf %76, %82 : vector<32x16xf32>
    %c0_53 = arith.constant 0 : index
    %c11 = arith.constant 11 : index
    %c0_54 = arith.constant 0 : index
    %c0_55 = arith.constant 0 : index
    %84 = vector.load %arg2[%c0_53, %c11, %c0_54, %c0_55] : memref<1x15x32x16xbf16, #tpu.memory_space<vmem>>, vector<1x1x32x16xbf16>
    %85 = vector.shape_cast %84 : vector<1x1x32x16xbf16> to vector<32x16xbf16>
    %cst_56 = arith.constant dense<0.000000e+00> : vector<32x16xf32>
    %86 = tpu.matmul %2, %85, %cst_56 {dimension_numbers = #tpu.dot_dimension_numbers<[1], [0], [0], [1], [0, 0, 1, 1], [], []>} : vector<32x32xbf16>, vector<32x16xbf16>, vector<32x16xf32> -> vector<32x16xf32>
    %87 = arith.addf %86, %4 : vector<32x16xf32>
    %88 = arith.addf %81, %87 : vector<32x16xf32>
    %89 = arith.mulf %87, %87 : vector<32x16xf32>
    %90 = arith.addf %83, %89 : vector<32x16xf32>
    %c0_57 = arith.constant 0 : index
    %c12 = arith.constant 12 : index
    %c0_58 = arith.constant 0 : index
    %c0_59 = arith.constant 0 : index
    %91 = vector.load %arg2[%c0_57, %c12, %c0_58, %c0_59] : memref<1x15x32x16xbf16, #tpu.memory_space<vmem>>, vector<1x1x32x16xbf16>
    %92 = vector.shape_cast %91 : vector<1x1x32x16xbf16> to vector<32x16xbf16>
    %cst_60 = arith.constant dense<0.000000e+00> : vector<32x16xf32>
    %93 = tpu.matmul %2, %92, %cst_60 {dimension_numbers = #tpu.dot_dimension_numbers<[1], [0], [0], [1], [0, 0, 1, 1], [], []>} : vector<32x32xbf16>, vector<32x16xbf16>, vector<32x16xf32> -> vector<32x16xf32>
    %94 = arith.addf %93, %4 : vector<32x16xf32>
    %95 = arith.addf %88, %94 : vector<32x16xf32>
    %96 = arith.mulf %94, %94 : vector<32x16xf32>
    %97 = arith.addf %90, %96 : vector<32x16xf32>
    %c0_61 = arith.constant 0 : index
    %c13 = arith.constant 13 : index
    %c0_62 = arith.constant 0 : index
    %c0_63 = arith.constant 0 : index
    %98 = vector.load %arg2[%c0_61, %c13, %c0_62, %c0_63] : memref<1x15x32x16xbf16, #tpu.memory_space<vmem>>, vector<1x1x32x16xbf16>
    %99 = vector.shape_cast %98 : vector<1x1x32x16xbf16> to vector<32x16xbf16>
    %cst_64 = arith.constant dense<0.000000e+00> : vector<32x16xf32>
    %100 = tpu.matmul %2, %99, %cst_64 {dimension_numbers = #tpu.dot_dimension_numbers<[1], [0], [0], [1], [0, 0, 1, 1], [], []>} : vector<32x32xbf16>, vector<32x16xbf16>, vector<32x16xf32> -> vector<32x16xf32>
    %101 = arith.addf %100, %4 : vector<32x16xf32>
    %102 = arith.addf %95, %101 : vector<32x16xf32>
    %103 = arith.mulf %101, %101 : vector<32x16xf32>
    %104 = arith.addf %97, %103 : vector<32x16xf32>
    %c0_65 = arith.constant 0 : index
    %c14 = arith.constant 14 : index
    %c0_66 = arith.constant 0 : index
    %c0_67 = arith.constant 0 : index
    %105 = vector.load %arg2[%c0_65, %c14, %c0_66, %c0_67] : memref<1x15x32x16xbf16, #tpu.memory_space<vmem>>, vector<1x1x32x16xbf16>
    %106 = vector.shape_cast %105 : vector<1x1x32x16xbf16> to vector<32x16xbf16>
    %cst_68 = arith.constant dense<0.000000e+00> : vector<32x16xf32>
    %107 = tpu.matmul %2, %106, %cst_68 {dimension_numbers = #tpu.dot_dimension_numbers<[1], [0], [0], [1], [0, 0, 1, 1], [], []>} : vector<32x32xbf16>, vector<32x16xbf16>, vector<32x16xf32> -> vector<32x16xf32>
    %108 = arith.addf %107, %4 : vector<32x16xf32>
    %109 = arith.addf %102, %108 : vector<32x16xf32>
    %110 = arith.mulf %108, %108 : vector<32x16xf32>
    %111 = arith.addf %104, %110 : vector<32x16xf32>
    %cst_69 = arith.constant dense<0.000000e+00> : vector<32xf32>
    %112 = vector.multi_reduction <add>, %109, %cst_69 [1] : vector<32x16xf32> to vector<32xf32>
    %113 = vector.shape_cast %112 : vector<32xf32> to vector<32x1xf32>
    %cst_70 = arith.constant dense<0.000000e+00> : vector<32xf32>
    %114 = vector.multi_reduction <add>, %111, %cst_70 [1] : vector<32x16xf32> to vector<32xf32>
    %115 = vector.shape_cast %114 : vector<32xf32> to vector<32x1xf32>
    %116 = tpu.concatenate %113, %115 in 1 : vector<32x1xf32>, vector<32x1xf32> -> vector<32x2xf32>
    %c0_71 = arith.constant 0 : index
    %c0_72 = arith.constant 0 : index
    %c0_73 = arith.constant 0 : index
    %c0_74 = arith.constant 0 : index
    %117 = vector.load %arg6[%c0_71, %c0_72, %c0_73, %c0_74] : memref<1x1x32x2xf32, #tpu.memory_space<vmem>>, vector<1x1x32x2xf32>
    %118 = vector.shape_cast %117 : vector<1x1x32x2xf32> to vector<32x2xf32>
    %119 = vector.shape_cast %116 : vector<32x2xf32> to vector<1x1x32x2xf32>
    tpu.vector_store %arg6[%c0_71, %c0_72, %c0_73, %c0_74], %119 {strides = array<i32>} : memref<1x1x32x2xf32, #tpu.memory_space<vmem>>, vector<1x1x32x2xf32>,
    return
  }
  func.func @transform_0(%arg0: i32, %arg1: i32) -> (i32, i32, i32, i32) {
    %c0_i32 = arith.constant 0 : i32
    %c0_i32_0 = arith.constant 0 : i32
    %c0_i32_1 = arith.constant 0 : i32
    return %arg0, %c0_i32, %c0_i32_0, %arg1 : i32, i32, i32, i32
  }
  func.func @transform_1(%arg0: i32, %arg1: i32) -> (i32, i32, i32) {
    %c0_i32 = arith.constant 0 : i32
    %c0_i32_0 = arith.constant 0 : i32
    return %arg0, %c0_i32, %arg1 : i32, i32, i32
  }
  func.func @transform_2(%arg0: i32, %arg1: i32) -> (i32, i32) {
    %c0_i32 = arith.constant 0 : i32
    %c0_i32_0 = arith.constant 0 : i32
    %c0_i32_1 = arith.constant 0 : i32
    return %c0_i32, %c0_i32_0 : i32, i32
  }
  func.func @transform_3(%arg0: i32, %arg1: i32) -> (i32, i32) {
    %c0_i32 = arith.constant 0 : i32
    %c0_i32_0 = arith.constant 0 : i32
    %c0_i32_1 = arith.constant 0 : i32
    return %c0_i32, %c0_i32_0 : i32, i32
  }
  func.func @transform_4(%arg0: i32, %arg1: i32) -> (i32, i32, i32, i32) {
    %c0_i32 = arith.constant 0 : i32
    %c0_i32_0 = arith.constant 0 : i32
    %c0_i32_1 = arith.constant 0 : i32
    return %arg0, %arg1, %c0_i32, %c0_i32_0 : i32, i32, i32, i32
  }
}

module attributes {stable_mosaic.version = 11 : i64} {
  func.func @dgcnn_main_kernel(%arg0: i32, %arg1: i32, %arg2: memref<1x15x32x16xbf16, #tpu.memory_space<vmem>>, %arg3: memref<1x32x16xbf16, #tpu.memory_space<vmem>>, %arg4: memref<32x32xbf16, #tpu.memory_space<vmem>>, %arg5: memref<32x32xbf16, #tpu.memory_space<vmem>>, %arg6: memref<32x1xf32, #tpu.memory_space<vmem>>, %arg7: memref<32x96xbf16, #tpu.memory_space<vmem>>, %arg8: memref<1x32x16xf32, #tpu.memory_space<vmem>>, %arg9: memref<1x1x32x2xf32, #tpu.memory_space<vmem>>) attributes {dimension_semantics = [#tpu.dimension_semantics<parallel>, #tpu.dimension_semantics<parallel>], iteration_bounds = array<i64: 2, 1>, scalar_prefetch = 0 : i64, scratch_operands = 0 : i64, tpu.core_type = #tpu.core_type<tc>, window_params = [{transform_indices = @transform_0, window_bounds = array<i64: 1, 15, 32, 16>}, {transform_indices = @transform_1, window_bounds = array<i64: 1, 32, 16>}, {pipeline_mode = #tpu.pipeline_mode<synchronous>, transform_indices = @transform_2, window_bounds = array<i64: 32, 32>}, {pipeline_mode = #tpu.pipeline_mode<synchronous>, transform_indices = @transform_3, window_bounds = array<i64: 32, 32>}, {pipeline_mode = #tpu.pipeline_mode<synchronous>, transform_indices = @transform_4, window_bounds = array<i64: 32, 1>}, {pipeline_mode = #tpu.pipeline_mode<synchronous>, transform_indices = @transform_5, window_bounds = array<i64: 32, 96>}, {transform_indices = @transform_6, window_bounds = array<i64: 1, 32, 16>}, {transform_indices = @transform_7, window_bounds = array<i64: 1, 1, 32, 2>}]} {
    %c0 = arith.constant 0 : index
    %c0_0 = arith.constant 0 : index
    %c0_1 = arith.constant 0 : index
    %0 = vector.load %arg3[%c0, %c0_0, %c0_1] : memref<1x32x16xbf16, #tpu.memory_space<vmem>>, vector<1x32x16xbf16>
    %1 = vector.shape_cast %0 : vector<1x32x16xbf16> to vector<32x16xbf16>
    %c0_2 = arith.constant 0 : index
    %c0_3 = arith.constant 0 : index
    %2 = vector.load %arg4[%c0_2, %c0_3] : memref<32x32xbf16, #tpu.memory_space<vmem>>, vector<32x32xbf16>
    %c0_4 = arith.constant 0 : index
    %c0_5 = arith.constant 0 : index
    %3 = vector.load %arg5[%c0_4, %c0_5] : memref<32x32xbf16, #tpu.memory_space<vmem>>, vector<32x32xbf16>
    %cst = arith.constant dense<0.000000e+00> : vector<32x16xf32>
    %4 = tpu.matmul %3, %1, %cst {dimension_numbers = #tpu.dot_dimension_numbers<[1], [0], [0], [1], [0, 0, 1, 1], [], []>} : vector<32x32xbf16>, vector<32x16xbf16>, vector<32x16xf32> -> vector<32x16xf32>
    %c0_6 = arith.constant 0 : index
    %c0_7 = arith.constant 0 : index
    %5 = vector.load %arg6[%c0_6, %c0_7] : memref<32x1xf32, #tpu.memory_space<vmem>>, vector<32x1xf32>
    %6 = vector.broadcast %5 : vector<32x1xf32> to vector<32x16xf32>
    %7 = arith.addf %4, %6 : vector<32x16xf32>
    %c0_8 = arith.constant 0 : index
    %c0_9 = arith.constant 0 : index
    %c0_10 = arith.constant 0 : index
    %c0_11 = arith.constant 0 : index
    %8 = vector.load %arg2[%c0_8, %c0_9, %c0_10, %c0_11] : memref<1x15x32x16xbf16, #tpu.memory_space<vmem>>, vector<1x1x32x16xbf16>
    %9 = vector.shape_cast %8 : vector<1x1x32x16xbf16> to vector<32x16xbf16>
    %cst_12 = arith.constant dense<0.000000e+00> : vector<32x16xf32>
    %10 = tpu.matmul %2, %9, %cst_12 {dimension_numbers = #tpu.dot_dimension_numbers<[1], [0], [0], [1], [0, 0, 1, 1], [], []>} : vector<32x32xbf16>, vector<32x16xbf16>, vector<32x16xf32> -> vector<32x16xf32>
    %11 = arith.addf %10, %7 : vector<32x16xf32>
    %cst_13 = arith.constant 0.000000e+00 : f32
    %12 = vector.broadcast %cst_13 : f32 to vector<32x16xf32>
    %13 = arith.maximumf %11, %12 : vector<32x16xf32>
    %c0_14 = arith.constant 0 : index
    %c1 = arith.constant 1 : index
    %c0_15 = arith.constant 0 : index
    %c0_16 = arith.constant 0 : index
    %14 = vector.load %arg2[%c0_14, %c1, %c0_15, %c0_16] : memref<1x15x32x16xbf16, #tpu.memory_space<vmem>>, vector<1x1x32x16xbf16>
    %15 = vector.shape_cast %14 : vector<1x1x32x16xbf16> to vector<32x16xbf16>
    %cst_17 = arith.constant dense<0.000000e+00> : vector<32x16xf32>
    %16 = tpu.matmul %2, %15, %cst_17 {dimension_numbers = #tpu.dot_dimension_numbers<[1], [0], [0], [1], [0, 0, 1, 1], [], []>} : vector<32x32xbf16>, vector<32x16xbf16>, vector<32x16xf32> -> vector<32x16xf32>
    %17 = arith.addf %16, %7 : vector<32x16xf32>
    %cst_18 = arith.constant 0.000000e+00 : f32
    %18 = vector.broadcast %cst_18 : f32 to vector<32x16xf32>
    %19 = arith.maximumf %17, %18 : vector<32x16xf32>
    %20 = arith.maximumf %13, %19 : vector<32x16xf32>
    %21 = arith.maximumf %9, %15 : vector<32x16xbf16>
    %c0_19 = arith.constant 0 : index
    %c2 = arith.constant 2 : index
    %c0_20 = arith.constant 0 : index
    %c0_21 = arith.constant 0 : index
    %22 = vector.load %arg2[%c0_19, %c2, %c0_20, %c0_21] : memref<1x15x32x16xbf16, #tpu.memory_space<vmem>>, vector<1x1x32x16xbf16>
    %23 = vector.shape_cast %22 : vector<1x1x32x16xbf16> to vector<32x16xbf16>
    %cst_22 = arith.constant dense<0.000000e+00> : vector<32x16xf32>
    %24 = tpu.matmul %2, %23, %cst_22 {dimension_numbers = #tpu.dot_dimension_numbers<[1], [0], [0], [1], [0, 0, 1, 1], [], []>} : vector<32x32xbf16>, vector<32x16xbf16>, vector<32x16xf32> -> vector<32x16xf32>
    %25 = arith.addf %24, %7 : vector<32x16xf32>
    %cst_23 = arith.constant 0.000000e+00 : f32
    %26 = vector.broadcast %cst_23 : f32 to vector<32x16xf32>
    %27 = arith.maximumf %25, %26 : vector<32x16xf32>
    %28 = arith.maximumf %20, %27 : vector<32x16xf32>
    %29 = arith.maximumf %21, %23 : vector<32x16xbf16>
    %c0_24 = arith.constant 0 : index
    %c3 = arith.constant 3 : index
    %c0_25 = arith.constant 0 : index
    %c0_26 = arith.constant 0 : index
    %30 = vector.load %arg2[%c0_24, %c3, %c0_25, %c0_26] : memref<1x15x32x16xbf16, #tpu.memory_space<vmem>>, vector<1x1x32x16xbf16>
    %31 = vector.shape_cast %30 : vector<1x1x32x16xbf16> to vector<32x16xbf16>
    %cst_27 = arith.constant dense<0.000000e+00> : vector<32x16xf32>
    %32 = tpu.matmul %2, %31, %cst_27 {dimension_numbers = #tpu.dot_dimension_numbers<[1], [0], [0], [1], [0, 0, 1, 1], [], []>} : vector<32x32xbf16>, vector<32x16xbf16>, vector<32x16xf32> -> vector<32x16xf32>
    %33 = arith.addf %32, %7 : vector<32x16xf32>
    %cst_28 = arith.constant 0.000000e+00 : f32
    %34 = vector.broadcast %cst_28 : f32 to vector<32x16xf32>
    %35 = arith.maximumf %33, %34 : vector<32x16xf32>
    %36 = arith.maximumf %28, %35 : vector<32x16xf32>
    %37 = arith.maximumf %29, %31 : vector<32x16xbf16>
    %c0_29 = arith.constant 0 : index
    %c4 = arith.constant 4 : index
    %c0_30 = arith.constant 0 : index
    %c0_31 = arith.constant 0 : index
    %38 = vector.load %arg2[%c0_29, %c4, %c0_30, %c0_31] : memref<1x15x32x16xbf16, #tpu.memory_space<vmem>>, vector<1x1x32x16xbf16>
    %39 = vector.shape_cast %38 : vector<1x1x32x16xbf16> to vector<32x16xbf16>
    %cst_32 = arith.constant dense<0.000000e+00> : vector<32x16xf32>
    %40 = tpu.matmul %2, %39, %cst_32 {dimension_numbers = #tpu.dot_dimension_numbers<[1], [0], [0], [1], [0, 0, 1, 1], [], []>} : vector<32x32xbf16>, vector<32x16xbf16>, vector<32x16xf32> -> vector<32x16xf32>
    %41 = arith.addf %40, %7 : vector<32x16xf32>
    %cst_33 = arith.constant 0.000000e+00 : f32
    %42 = vector.broadcast %cst_33 : f32 to vector<32x16xf32>
    %43 = arith.maximumf %41, %42 : vector<32x16xf32>
    %44 = arith.maximumf %36, %43 : vector<32x16xf32>
    %45 = arith.maximumf %37, %39 : vector<32x16xbf16>
    %c0_34 = arith.constant 0 : index
    %c5 = arith.constant 5 : index
    %c0_35 = arith.constant 0 : index
    %c0_36 = arith.constant 0 : index
    %46 = vector.load %arg2[%c0_34, %c5, %c0_35, %c0_36] : memref<1x15x32x16xbf16, #tpu.memory_space<vmem>>, vector<1x1x32x16xbf16>
    %47 = vector.shape_cast %46 : vector<1x1x32x16xbf16> to vector<32x16xbf16>
    %cst_37 = arith.constant dense<0.000000e+00> : vector<32x16xf32>
    %48 = tpu.matmul %2, %47, %cst_37 {dimension_numbers = #tpu.dot_dimension_numbers<[1], [0], [0], [1], [0, 0, 1, 1], [], []>} : vector<32x32xbf16>, vector<32x16xbf16>, vector<32x16xf32> -> vector<32x16xf32>
    %49 = arith.addf %48, %7 : vector<32x16xf32>
    %cst_38 = arith.constant 0.000000e+00 : f32
    %50 = vector.broadcast %cst_38 : f32 to vector<32x16xf32>
    %51 = arith.maximumf %49, %50 : vector<32x16xf32>
    %52 = arith.maximumf %44, %51 : vector<32x16xf32>
    %53 = arith.maximumf %45, %47 : vector<32x16xbf16>
    %c0_39 = arith.constant 0 : index
    %c6 = arith.constant 6 : index
    %c0_40 = arith.constant 0 : index
    %c0_41 = arith.constant 0 : index
    %54 = vector.load %arg2[%c0_39, %c6, %c0_40, %c0_41] : memref<1x15x32x16xbf16, #tpu.memory_space<vmem>>, vector<1x1x32x16xbf16>
    %55 = vector.shape_cast %54 : vector<1x1x32x16xbf16> to vector<32x16xbf16>
    %cst_42 = arith.constant dense<0.000000e+00> : vector<32x16xf32>
    %56 = tpu.matmul %2, %55, %cst_42 {dimension_numbers = #tpu.dot_dimension_numbers<[1], [0], [0], [1], [0, 0, 1, 1], [], []>} : vector<32x32xbf16>, vector<32x16xbf16>, vector<32x16xf32> -> vector<32x16xf32>
    %57 = arith.addf %56, %7 : vector<32x16xf32>
    %cst_43 = arith.constant 0.000000e+00 : f32
    %58 = vector.broadcast %cst_43 : f32 to vector<32x16xf32>
    %59 = arith.maximumf %57, %58 : vector<32x16xf32>
    %60 = arith.maximumf %52, %59 : vector<32x16xf32>
    %61 = arith.maximumf %53, %55 : vector<32x16xbf16>
    %c0_44 = arith.constant 0 : index
    %c7 = arith.constant 7 : index
    %c0_45 = arith.constant 0 : index
    %c0_46 = arith.constant 0 : index
    %62 = vector.load %arg2[%c0_44, %c7, %c0_45, %c0_46] : memref<1x15x32x16xbf16, #tpu.memory_space<vmem>>, vector<1x1x32x16xbf16>
    %63 = vector.shape_cast %62 : vector<1x1x32x16xbf16> to vector<32x16xbf16>
    %cst_47 = arith.constant dense<0.000000e+00> : vector<32x16xf32>
    %64 = tpu.matmul %2, %63, %cst_47 {dimension_numbers = #tpu.dot_dimension_numbers<[1], [0], [0], [1], [0, 0, 1, 1], [], []>} : vector<32x32xbf16>, vector<32x16xbf16>, vector<32x16xf32> -> vector<32x16xf32>
    %65 = arith.addf %64, %7 : vector<32x16xf32>
    %cst_48 = arith.constant 0.000000e+00 : f32
    %66 = vector.broadcast %cst_48 : f32 to vector<32x16xf32>
    %67 = arith.maximumf %65, %66 : vector<32x16xf32>
    %68 = arith.maximumf %60, %67 : vector<32x16xf32>
    %69 = arith.maximumf %61, %63 : vector<32x16xbf16>
    %c0_49 = arith.constant 0 : index
    %c8 = arith.constant 8 : index
    %c0_50 = arith.constant 0 : index
    %c0_51 = arith.constant 0 : index
    %70 = vector.load %arg2[%c0_49, %c8, %c0_50, %c0_51] : memref<1x15x32x16xbf16, #tpu.memory_space<vmem>>, vector<1x1x32x16xbf16>
    %71 = vector.shape_cast %70 : vector<1x1x32x16xbf16> to vector<32x16xbf16>
    %cst_52 = arith.constant dense<0.000000e+00> : vector<32x16xf32>
    %72 = tpu.matmul %2, %71, %cst_52 {dimension_numbers = #tpu.dot_dimension_numbers<[1], [0], [0], [1], [0, 0, 1, 1], [], []>} : vector<32x32xbf16>, vector<32x16xbf16>, vector<32x16xf32> -> vector<32x16xf32>
    %73 = arith.addf %72, %7 : vector<32x16xf32>
    %cst_53 = arith.constant 0.000000e+00 : f32
    %74 = vector.broadcast %cst_53 : f32 to vector<32x16xf32>
    %75 = arith.maximumf %73, %74 : vector<32x16xf32>
    %76 = arith.maximumf %68, %75 : vector<32x16xf32>
    %77 = arith.maximumf %69, %71 : vector<32x16xbf16>
    %c0_54 = arith.constant 0 : index
    %c9 = arith.constant 9 : index
    %c0_55 = arith.constant 0 : index
    %c0_56 = arith.constant 0 : index
    %78 = vector.load %arg2[%c0_54, %c9, %c0_55, %c0_56] : memref<1x15x32x16xbf16, #tpu.memory_space<vmem>>, vector<1x1x32x16xbf16>
    %79 = vector.shape_cast %78 : vector<1x1x32x16xbf16> to vector<32x16xbf16>
    %cst_57 = arith.constant dense<0.000000e+00> : vector<32x16xf32>
    %80 = tpu.matmul %2, %79, %cst_57 {dimension_numbers = #tpu.dot_dimension_numbers<[1], [0], [0], [1], [0, 0, 1, 1], [], []>} : vector<32x32xbf16>, vector<32x16xbf16>, vector<32x16xf32> -> vector<32x16xf32>
    %81 = arith.addf %80, %7 : vector<32x16xf32>
    %cst_58 = arith.constant 0.000000e+00 : f32
    %82 = vector.broadcast %cst_58 : f32 to vector<32x16xf32>
    %83 = arith.maximumf %81, %82 : vector<32x16xf32>
    %84 = arith.maximumf %76, %83 : vector<32x16xf32>
    %85 = arith.maximumf %77, %79 : vector<32x16xbf16>
    %c0_59 = arith.constant 0 : index
    %c10 = arith.constant 10 : index
    %c0_60 = arith.constant 0 : index
    %c0_61 = arith.constant 0 : index
    %86 = vector.load %arg2[%c0_59, %c10, %c0_60, %c0_61] : memref<1x15x32x16xbf16, #tpu.memory_space<vmem>>, vector<1x1x32x16xbf16>
    %87 = vector.shape_cast %86 : vector<1x1x32x16xbf16> to vector<32x16xbf16>
    %cst_62 = arith.constant dense<0.000000e+00> : vector<32x16xf32>
    %88 = tpu.matmul %2, %87, %cst_62 {dimension_numbers = #tpu.dot_dimension_numbers<[1], [0], [0], [1], [0, 0, 1, 1], [], []>} : vector<32x32xbf16>, vector<32x16xbf16>, vector<32x16xf32> -> vector<32x16xf32>
    %89 = arith.addf %88, %7 : vector<32x16xf32>
    %cst_63 = arith.constant 0.000000e+00 : f32
    %90 = vector.broadcast %cst_63 : f32 to vector<32x16xf32>
    %91 = arith.maximumf %89, %90 : vector<32x16xf32>
    %92 = arith.maximumf %84, %91 : vector<32x16xf32>
    %93 = arith.maximumf %85, %87 : vector<32x16xbf16>
    %c0_64 = arith.constant 0 : index
    %c11 = arith.constant 11 : index
    %c0_65 = arith.constant 0 : index
    %c0_66 = arith.constant 0 : index
    %94 = vector.load %arg2[%c0_64, %c11, %c0_65, %c0_66] : memref<1x15x32x16xbf16, #tpu.memory_space<vmem>>, vector<1x1x32x16xbf16>
    %95 = vector.shape_cast %94 : vector<1x1x32x16xbf16> to vector<32x16xbf16>
    %cst_67 = arith.constant dense<0.000000e+00> : vector<32x16xf32>
    %96 = tpu.matmul %2, %95, %cst_67 {dimension_numbers = #tpu.dot_dimension_numbers<[1], [0], [0], [1], [0, 0, 1, 1], [], []>} : vector<32x32xbf16>, vector<32x16xbf16>, vector<32x16xf32> -> vector<32x16xf32>
    %97 = arith.addf %96, %7 : vector<32x16xf32>
    %cst_68 = arith.constant 0.000000e+00 : f32
    %98 = vector.broadcast %cst_68 : f32 to vector<32x16xf32>
    %99 = arith.maximumf %97, %98 : vector<32x16xf32>
    %100 = arith.maximumf %92, %99 : vector<32x16xf32>
    %101 = arith.maximumf %93, %95 : vector<32x16xbf16>
    %c0_69 = arith.constant 0 : index
    %c12 = arith.constant 12 : index
    %c0_70 = arith.constant 0 : index
    %c0_71 = arith.constant 0 : index
    %102 = vector.load %arg2[%c0_69, %c12, %c0_70, %c0_71] : memref<1x15x32x16xbf16, #tpu.memory_space<vmem>>, vector<1x1x32x16xbf16>
    %103 = vector.shape_cast %102 : vector<1x1x32x16xbf16> to vector<32x16xbf16>
    %cst_72 = arith.constant dense<0.000000e+00> : vector<32x16xf32>
    %104 = tpu.matmul %2, %103, %cst_72 {dimension_numbers = #tpu.dot_dimension_numbers<[1], [0], [0], [1], [0, 0, 1, 1], [], []>} : vector<32x32xbf16>, vector<32x16xbf16>, vector<32x16xf32> -> vector<32x16xf32>
    %105 = arith.addf %104, %7 : vector<32x16xf32>
    %cst_73 = arith.constant 0.000000e+00 : f32
    %106 = vector.broadcast %cst_73 : f32 to vector<32x16xf32>
    %107 = arith.maximumf %105, %106 : vector<32x16xf32>
    %108 = arith.maximumf %100, %107 : vector<32x16xf32>
    %109 = arith.maximumf %101, %103 : vector<32x16xbf16>
    %c0_74 = arith.constant 0 : index
    %c13 = arith.constant 13 : index
    %c0_75 = arith.constant 0 : index
    %c0_76 = arith.constant 0 : index
    %110 = vector.load %arg2[%c0_74, %c13, %c0_75, %c0_76] : memref<1x15x32x16xbf16, #tpu.memory_space<vmem>>, vector<1x1x32x16xbf16>
    %111 = vector.shape_cast %110 : vector<1x1x32x16xbf16> to vector<32x16xbf16>
    %cst_77 = arith.constant dense<0.000000e+00> : vector<32x16xf32>
    %112 = tpu.matmul %2, %111, %cst_77 {dimension_numbers = #tpu.dot_dimension_numbers<[1], [0], [0], [1], [0, 0, 1, 1], [], []>} : vector<32x32xbf16>, vector<32x16xbf16>, vector<32x16xf32> -> vector<32x16xf32>
    %113 = arith.addf %112, %7 : vector<32x16xf32>
    %cst_78 = arith.constant 0.000000e+00 : f32
    %114 = vector.broadcast %cst_78 : f32 to vector<32x16xf32>
    %115 = arith.maximumf %113, %114 : vector<32x16xf32>
    %116 = arith.maximumf %108, %115 : vector<32x16xf32>
    %117 = arith.maximumf %109, %111 : vector<32x16xbf16>
    %c0_79 = arith.constant 0 : index
    %c14 = arith.constant 14 : index
    %c0_80 = arith.constant 0 : index
    %c0_81 = arith.constant 0 : index
    %118 = vector.load %arg2[%c0_79, %c14, %c0_80, %c0_81] : memref<1x15x32x16xbf16, #tpu.memory_space<vmem>>, vector<1x1x32x16xbf16>
    %119 = vector.shape_cast %118 : vector<1x1x32x16xbf16> to vector<32x16xbf16>
    %cst_82 = arith.constant dense<0.000000e+00> : vector<32x16xf32>
    %120 = tpu.matmul %2, %119, %cst_82 {dimension_numbers = #tpu.dot_dimension_numbers<[1], [0], [0], [1], [0, 0, 1, 1], [], []>} : vector<32x32xbf16>, vector<32x16xbf16>, vector<32x16xf32> -> vector<32x16xf32>
    %121 = arith.addf %120, %7 : vector<32x16xf32>
    %cst_83 = arith.constant 0.000000e+00 : f32
    %122 = vector.broadcast %cst_83 : f32 to vector<32x16xf32>
    %123 = arith.maximumf %121, %122 : vector<32x16xf32>
    %124 = arith.maximumf %116, %123 : vector<32x16xf32>
    %125 = arith.maximumf %117, %119 : vector<32x16xbf16>
    %126 = arith.truncf %124 : vector<32x16xf32> to vector<32x16xbf16>
    %127 = tpu.concatenate %125, %1, %126 in 0 : vector<32x16xbf16>, vector<32x16xbf16>, vector<32x16xbf16> -> vector<96x16xbf16>
    %c0_84 = arith.constant 0 : index
    %c0_85 = arith.constant 0 : index
    %128 = vector.load %arg7[%c0_84, %c0_85] : memref<32x96xbf16, #tpu.memory_space<vmem>>, vector<32x96xbf16>
    %cst_86 = arith.constant dense<0.000000e+00> : vector<32x16xf32>
    %129 = tpu.matmul %128, %127, %cst_86 {dimension_numbers = #tpu.dot_dimension_numbers<[1], [0], [0], [1], [0, 0, 1, 1], [], []>} : vector<32x96xbf16>, vector<96x16xbf16>, vector<32x16xf32> -> vector<32x16xf32>
    %c0_87 = arith.constant 0 : index
    %c0_88 = arith.constant 0 : index
    %c0_89 = arith.constant 0 : index
    %130 = vector.load %arg8[%c0_87, %c0_88, %c0_89] : memref<1x32x16xf32, #tpu.memory_space<vmem>>, vector<1x32x16xf32>
    %131 = vector.shape_cast %130 : vector<1x32x16xf32> to vector<32x16xf32>
    %132 = vector.shape_cast %129 : vector<32x16xf32> to vector<1x32x16xf32>
    tpu.vector_store %arg8[%c0_87, %c0_88, %c0_89], %132 {strides = array<i32>} : memref<1x32x16xf32, #tpu.memory_space<vmem>>, vector<1x32x16xf32>,
    %cst_90 = arith.constant dense<0.000000e+00> : vector<32xf32>
    %133 = vector.multi_reduction <add>, %129, %cst_90 [1] : vector<32x16xf32> to vector<32xf32>
    %134 = vector.shape_cast %133 : vector<32xf32> to vector<32x1xf32>
    %135 = arith.mulf %129, %129 : vector<32x16xf32>
    %cst_91 = arith.constant dense<0.000000e+00> : vector<32xf32>
    %136 = vector.multi_reduction <add>, %135, %cst_91 [1] : vector<32x16xf32> to vector<32xf32>
    %137 = vector.shape_cast %136 : vector<32xf32> to vector<32x1xf32>
    %138 = tpu.concatenate %134, %137 in 1 : vector<32x1xf32>, vector<32x1xf32> -> vector<32x2xf32>
    %c0_92 = arith.constant 0 : index
    %c0_93 = arith.constant 0 : index
    %c0_94 = arith.constant 0 : index
    %c0_95 = arith.constant 0 : index
    %139 = vector.load %arg9[%c0_92, %c0_93, %c0_94, %c0_95] : memref<1x1x32x2xf32, #tpu.memory_space<vmem>>, vector<1x1x32x2xf32>
    %140 = vector.shape_cast %139 : vector<1x1x32x2xf32> to vector<32x2xf32>
    %141 = vector.shape_cast %138 : vector<32x2xf32> to vector<1x1x32x2xf32>
    tpu.vector_store %arg9[%c0_92, %c0_93, %c0_94, %c0_95], %141 {strides = array<i32>} : memref<1x1x32x2xf32, #tpu.memory_space<vmem>>, vector<1x1x32x2xf32>,
    return
  }
  func.func @transform_0(%arg0: i32, %arg1: i32) -> (i32, i32, i32, i32) {
    %c0_i32 = arith.constant 0 : i32
    %c0_i32_0 = arith.constant 0 : i32
    %c0_i32_1 = arith.constant 0 : i32
    return %arg0, %c0_i32, %c0_i32_0, %arg1 : i32, i32, i32, i32
  }
  func.func @transform_1(%arg0: i32, %arg1: i32) -> (i32, i32, i32) {
    %c0_i32 = arith.constant 0 : i32
    %c0_i32_0 = arith.constant 0 : i32
    return %arg0, %c0_i32, %arg1 : i32, i32, i32
  }
  func.func @transform_2(%arg0: i32, %arg1: i32) -> (i32, i32) {
    %c0_i32 = arith.constant 0 : i32
    %c0_i32_0 = arith.constant 0 : i32
    %c0_i32_1 = arith.constant 0 : i32
    return %c0_i32, %c0_i32_0 : i32, i32
  }
  func.func @transform_3(%arg0: i32, %arg1: i32) -> (i32, i32) {
    %c0_i32 = arith.constant 0 : i32
    %c0_i32_0 = arith.constant 0 : i32
    %c0_i32_1 = arith.constant 0 : i32
    return %c0_i32, %c0_i32_0 : i32, i32
  }
  func.func @transform_4(%arg0: i32, %arg1: i32) -> (i32, i32) {
    %c0_i32 = arith.constant 0 : i32
    %c0_i32_0 = arith.constant 0 : i32
    %c0_i32_1 = arith.constant 0 : i32
    return %c0_i32, %c0_i32_0 : i32, i32
  }
  func.func @transform_5(%arg0: i32, %arg1: i32) -> (i32, i32) {
    %c0_i32 = arith.constant 0 : i32
    %c0_i32_0 = arith.constant 0 : i32
    %c0_i32_1 = arith.constant 0 : i32
    return %c0_i32, %c0_i32_0 : i32, i32
  }
  func.func @transform_6(%arg0: i32, %arg1: i32) -> (i32, i32, i32) {
    %c0_i32 = arith.constant 0 : i32
    %c0_i32_0 = arith.constant 0 : i32
    return %arg0, %c0_i32, %arg1 : i32, i32, i32
  }
  func.func @transform_7(%arg0: i32, %arg1: i32) -> (i32, i32, i32, i32) {
    %c0_i32 = arith.constant 0 : i32
    %c0_i32_0 = arith.constant 0 : i32
    %c0_i32_1 = arith.constant 0 : i32
    return %arg0, %arg1, %c0_i32, %c0_i32_0 : i32, i32, i32, i32
  }
}

</mosaic_0001>

<llo_original>
// kernel: posdiffnet_forward.3
$region0: #{posdiffnet_forward.3}
  #allocation0 [shape = 'u32[]', space=smem, size = 0x4, offset = 0x4, fixed_abs, tag = 'smem constant byte address 0x4 - core index']
  #allocation1 [shape = 'u32[144,128]{1,0:T(1,128)}', space=vmem, size = 0x12000, scoped, tag = 'internal scratch']
  %s0 = inlined_call_operand.vmem [shape: f32[2,16,16], index: 0, kind: input, shape index: {}, may-alias: {0,1}]
  %s1 = inlined_call_operand.vmem [shape: f32[2,16,16], index: 1, kind: input, shape index: {}, may-alias: {0,1}]
  %s2 = inlined_call_operand.vmem [shape: f32[2,1,16], index: 2, kind: input, shape index: {}]
  %s3 = inlined_call_operand.vmem [shape: s32[2,16,16], index: 3, kind: output, shape index: {}]
  %s4 = sld [smem:[#allocation0]]
  $region45: #{posdiffnet_forward.3} parent=0
    _
  %s6 = ssub.s32 1, %s4
  %s7 = scalar_select 0, %s6, %s4
  loop: start=0, step=1, limit=4
  $region2: #{posdiffnet_forward.3} parent=0 // loop_pre_header
    _
  $region3: #{posdiffnet_forward.3} parent=0 // loop_header
    %s9 = sphi 0, %s13
    %p10 = scmp.ge.s32.totalorder %s9, 4
    %s16 = sphi 0, %s28
    %s17 = sphi 0, %s24
    %s18 = sphi 0, %s16
    %s19 = sphi 0, %s17
    %s20 = sphi 0, %s18
    %s21 = sphi 0, %s19
    %s31 = sphi 0, %s33
    %s34 = sphi 0, %s31
    %s35 = sphi 0, %s34
    %s51 = sphi 0, %s35
    %s59 = sphi 0, %s61
    %s62 = sphi 0, %s59
    %s63 = sphi 0, %s62
    %s79 = sphi 0, %s63
    %s85 = sphi 0, %s87
    %s88 = sphi 0, %s85
    %s89 = sphi 0, %s88
    %s105 = sphi 0, %s89
    %s113 = sphi 0, %s115
    %s116 = sphi 0, %s113
    %s117 = sphi 0, %s116
    %s133 = sphi 0, %s117
  $region4: #{posdiffnet_forward.3} parent=0 // loop_header_branch
    %12 = sbr.rel (%p10) target = $region8
  $region5: #{posdiffnet_forward.3} parent=0 // loop_body
    %s14 = ssub.s32 %s9, 1
    %s15 = ssub.s32 %s9, 2
    %s22 = sadd.s32 1, %s17
    %p23 = scmp.ge.s32.totalorder %s22, 1
    %s24 = scalar_select %p23, 0, %s22
    %s25 = sadd.s32 1, %s16
    %s26 = scalar_select %p23, %s25, %s16
    %p27 = scmp.ge.s32.totalorder %s26, 2
    %s28 = scalar_select %p27, 0, %s26
    %s29 = ssub.s32 %s16, %s28
    %p30 = scmp.eq.s32.totalorder %s29, 0
    %s32 = sadd.s32 %s31, 1
    %s33 = scalar_select %p30, %s31, %s32
    %p36 = pneg %p30
    %p37 = scmp.eq.s32.totalorder %s9, 1
    %p38 = por %p36, %p37
    %p39 = scmp.ne.s32.totalorder %s31, %s34
    %p40 = scmp.eq.s32.totalorder %s9, 0
    %p41 = por %p39, %p40
    %p42 = scmp.ne.s32.totalorder %s31, %s34
    %p43 = scmp.eq.s32.totalorder %s14, 1
    %p44 = por %p42, %p43
    %p45 = scmp.ne.s32.totalorder %s34, %s35
    %p46 = scmp.eq.s32.totalorder %s14, 0
    %p47 = por %p45, %p46
    %p48 = scmp.ne.s32.totalorder %s34, %s35
    %p49 = scmp.eq.s32.totalorder %s15, 1
    %p50 = por %p48, %p49
    %p52 = scmp.ne.s32.totalorder %s35, %s51
    %p53 = scmp.eq.s32.totalorder %s15, 0
    %p54 = por %p52, %p53
    %s55 = ssub.s32 %s16, %s28
    %s56 = ssub.s32 %s17, %s24
    %s57 = sor.u32 %s55, %s56
    %p58 = scmp.eq.s32.totalorder %s57, 0
    %s60 = sadd.s32 %s59, 1
    %s61 = scalar_select %p58, %s59, %s60
    %p64 = pneg %p58
    %p65 = scmp.eq.s32.totalorder %s9, 1
    %p66 = por %p64, %p65
    %p67 = scmp.ne.s32.totalorder %s59, %s62
    %p68 = scmp.eq.s32.totalorder %s9, 0
    %p69 = por %p67, %p68
    %p70 = scmp.ne.s32.totalorder %s59, %s62
    %p71 = scmp.eq.s32.totalorder %s14, 1
    %p72 = por %p70, %p71
    %p73 = scmp.ne.s32.totalorder %s62, %s63
    %p74 = scmp.eq.s32.totalorder %s14, 0
    %p75 = por %p73, %p74
    %p76 = scmp.ne.s32.totalorder %s62, %s63
    %p77 = scmp.eq.s32.totalorder %s15, 1
    %p78 = por %p76, %p77
    %p80 = scmp.ne.s32.totalorder %s63, %s79
    %p81 = scmp.eq.s32.totalorder %s15, 0
    %p82 = por %p80, %p81
    %s83 = ssub.s32 %s16, %s28
    %p84 = scmp.eq.s32.totalorder %s83, 0
    %s86 = sadd.s32 %s85, 1
    %s87 = scalar_select %p84, %s85, %s86
    %p90 = pneg %p84
    %p91 = scmp.eq.s32.totalorder %s9, 1
    %p92 = por %p90, %p91
    %p93 = scmp.ne.s32.totalorder %s85, %s88
    %p94 = scmp.eq.s32.totalorder %s9, 0
    %p95 = por %p93, %p94
    %p96 = scmp.ne.s32.totalorder %s85, %s88
    %p97 = scmp.eq.s32.totalorder %s14, 1
    %p98 = por %p96, %p97
    %p99 = scmp.ne.s32.totalorder %s88, %s89
    %p100 = scmp.eq.s32.totalorder %s14, 0
    %p101 = por %p99, %p100
    %p102 = scmp.ne.s32.totalorder %s88, %s89
    %p103 = scmp.eq.s32.totalorder %s15, 1
    %p104 = por %p102, %p103
    %p106 = scmp.ne.s32.totalorder %s89, %s105
    %p107 = scmp.eq.s32.totalorder %s15, 0
    %p108 = por %p106, %p107
    %s109 = ssub.s32 %s16, %s28
    %s110 = ssub.s32 %s17, %s24
    %s111 = sor.u32 %s109, %s110
    %p112 = scmp.eq.s32.totalorder %s111, 0
    %s114 = sadd.s32 %s113, 1
    %s115 = scalar_select %p112, %s113, %s114
    %p118 = pneg %p112
    %p119 = scmp.eq.s32.totalorder %s9, 1
    %p120 = por %p118, %p119
    %p121 = scmp.ne.s32.totalorder %s113, %s116
    %p122 = scmp.eq.s32.totalorder %s9, 0
    %p123 = por %p121, %p122
    %p124 = scmp.ne.s32.totalorder %s113, %s116
    %p125 = scmp.eq.s32.totalorder %s14, 1
    %p126 = por %p124, %p125
    %p127 = scmp.ne.s32.totalorder %s116, %s117
    %p128 = scmp.eq.s32.totalorder %s14, 0
    %p129 = por %p127, %p128
    %p130 = scmp.ne.s32.totalorder %s116, %s117
    %p131 = scmp.eq.s32.totalorder %s15, 1
    %p132 = por %p130, %p131
    %p134 = scmp.ne.s32.totalorder %s117, %s133
    %p135 = scmp.eq.s32.totalorder %s15, 0
    %p136 = por %p134, %p135
    %p137 = scmp.le.s32.totalorder 1, %s9
    %p138 = scmp.lt.s32.totalorder %s9, 3
    %p139 = pnand %p137, %p138
    %p140 = pneg %p139
    // Predicated region
    $region9: #{posdiffnet_forward.3} parent=5 // pred_check
      _
    $region10: #{posdiffnet_forward.3} parent=5 // pred_check_branch
      %142 = sbr.rel (%p139) target = $region12
    $region11: #{posdiffnet_forward.3} parent=5 // pred_region
      %s143 = ssub.s32 %s9, 1
    $region12: #{posdiffnet_forward.3} parent=5 // pred_fallthru
      _
    %p144 = scmp.lt.s32.totalorder %s9, 2
    // Predicated region
    $region13: #{posdiffnet_forward.3} parent=5 // pred_check
      %p145 = pneg %p144
    $region14: #{posdiffnet_forward.3} parent=5 // pred_check_branch
      %147 = sbr.rel (%p145) target = $region16
    $region15: #{posdiffnet_forward.3} parent=5 // pred_region
      // Predicated region
      $region17: #{posdiffnet_forward.3} parent=15 // pred_check
        %p148 = pneg %p41
      $region18: #{posdiffnet_forward.3} parent=15 // pred_check_branch
        %150 = sbr.rel (%p148) target = $region20
      $region19: #{posdiffnet_forward.3} parent=15 // pred_region
        %p151 = scmp.lt.s32.totalorder %s16, 1
        %s152 = scalar_select %p151, %s16, 1
        %s153 = smul.addr %s152, 2
        %s154 = smul.addr %s153, 8
        %s155 = scalar_lea.vmem %s0, %s154
      $region20: #{posdiffnet_forward.3} parent=15 // pred_fallthru
        _
      // Predicated region
      $region21: #{posdiffnet_forward.3} parent=15 // pred_check
        %p156 = pneg %p69
      $region22: #{posdiffnet_forward.3} parent=15 // pred_check_branch
        %158 = sbr.rel (%p156) target = $region24
      $region23: #{posdiffnet_forward.3} parent=15 // pred_region
        %p159 = scmp.lt.s32.totalorder %s16, 1
        %s160 = scalar_select %p159, %s16, 1
        %p161 = scmp.lt.s32.totalorder %s17, 0
        %s162 = scalar_select %p161, %s17, 0
        %s163 = smul.addr %s160, 2
        %s164 = sadd.s32 %s162, %s163
        %s165 = smul.addr %s164, 8
        %s166 = scalar_lea.vmem %s1, %s165
      $region24: #{posdiffnet_forward.3} parent=15 // pred_fallthru
        _
      // Predicated region
      $region25: #{posdiffnet_forward.3} parent=15 // pred_check
        %p167 = pneg %p95
      $region26: #{posdiffnet_forward.3} parent=15 // pred_check_branch
        %169 = sbr.rel (%p167) target = $region28
      $region27: #{posdiffnet_forward.3} parent=15 // pred_region
        %p170 = scmp.lt.s32.totalorder %s16, 1
        %s171 = scalar_select %p170, %s16, 1
        %s172 = scalar_lea.vmem %s2, %s171
      $region28: #{posdiffnet_forward.3} parent=15 // pred_fallthru
        _
    $region16: #{posdiffnet_forward.3} parent=5 // pred_fallthru
      _
    %p173 = scmp.le.s32.totalorder 1, %s9
    %p174 = scmp.lt.s32.totalorder %s9, 3
    %p175 = pnand %p173, %p174
    %p176 = pneg %p175
    // Predicated region
    $region29: #{posdiffnet_forward.3} parent=5 // pred_check
      _
    $region30: #{posdiffnet_forward.3} parent=5 // pred_check_branch
      %178 = sbr.rel (%p175) target = $region32
    $region31: #{posdiffnet_forward.3} parent=5 // pred_region
      %s179 = ssub.s32 %s9, 1
      %p180 = scmp.lt.s32.totalorder %s18, 1
      %s181 = scalar_select %p180, %s18, 1
      %s182 = smul.addr %s181, 2
      %s183 = smul.addr %s182, 8
      %s184 = scalar_lea.vmem %s0, %s183
      %p185 = pneg %p47
      %p186 = pneg %p44
      %p187 = scmp.lt.s32.totalorder %s18, 1
      %s188 = scalar_select %p187, %s18, 1
      %p189 = scmp.lt.s32.totalorder %s19, 0
      %s190 = scalar_select %p189, %s19, 0
      %s191 = smul.addr %s188, 2
      %s192 = sadd.s32 %s190, %s191
      %s193 = smul.addr %s192, 8
      %s194 = scalar_lea.vmem %s1, %s193
      %p195 = pneg %p75
      %p196 = pneg %p72
      %p197 = scmp.lt.s32.totalorder %s18, 1
      %s198 = scalar_select %p197, %s18, 1
      %s199 = scalar_lea.vmem %s2, %s198
      %p200 = pneg %p101
      %p201 = pneg %p98
      %p202 = pneg %p129
      %p203 = pneg %p126
      %s204 = smul.u32 2, %s19
      %p205 = scmp.lt.s32.totalorder %s18, 1
      %s206 = scalar_select %p205, %s18, 1
      %p207 = scmp.lt.s32.totalorder %s204, 1
      %s208 = scalar_select %p207, %s204, 1
      %s209 = smul.addr %s206, 2
      %s210 = sadd.s32 %s208, %s209
      %s211 = smul.addr %s210, 8
      %s212 = scalar_lea.vmem %s3, %s211
      %p213 = scmp.lt.s32.totalorder %s18, 1
      %s214 = scalar_select %p213, %s18, 1
      %s215 = smul.addr %s214, 2
      %s216 = smul.addr %s215, 8
      %s217 = scalar_lea.vmem %s0, %s216
      %p218 = scmp.lt.s32.totalorder %s18, 1
      %s219 = scalar_select %p218, %s18, 1
      %p220 = scmp.lt.s32.totalorder %s19, 0
      %s221 = scalar_select %p220, %s19, 0
      %s222 = smul.addr %s219, 2
      %s223 = sadd.s32 %s221, %s222
      %s224 = smul.addr %s223, 8
      %s225 = scalar_lea.vmem %s1, %s224
      %p226 = scmp.lt.s32.totalorder %s18, 1
      %s227 = scalar_select %p226, %s18, 1
      %s228 = scalar_lea.vmem %s2, %s227
      %s229 = smul.u32 2, %s19
      %p230 = scmp.lt.s32.totalorder %s18, 1
      %s231 = scalar_select %p230, %s18, 1
      %p232 = scmp.lt.s32.totalorder %s229, 1
      %s233 = scalar_select %p232, %s229, 1
      %s234 = smul.addr %s231, 2
      %s235 = sadd.s32 %s233, %s234
      %s236 = smul.addr %s235, 8
      %s237 = scalar_lea.vmem %s3, %s236
      %s238 = smul.u32 2, %s19
      %v239 = vld [vmem:[%s225] sm:$0xff]
      %v240 = vld [vmem:[%s225 + $0x8] sm:$0xff]
      %v241 = vmul.f32 %v239, 2.0
      %v242 = vmul.f32 %v240, 2.0
      %v243 = vld [vmem:[%s217] sm:$0xff]
      %v244 = vld [vmem:[%s217 + $0x8] sm:$0xff]
      %245 = vxpose.xlu0.b32.start [1/16] %v241, 128
      %246 = vxpose.xlu0.b32.cont [2/16] %v242, 128
      %247 = vxpose.xlu0.b32.cont [3/16] 0.0, 128
      %248 = vxpose.xlu0.b32.cont [4/16] 0.0, 128
      %249 = vxpose.xlu0.b32.cont [5/16] 0.0, 128
      %250 = vxpose.xlu0.b32.cont [6/16] 0.0, 128
      %251 = vxpose.xlu0.b32.cont [7/16] 0.0, 128
      %252 = vxpose.xlu0.b32.cont [8/16] 0.0, 128
      %253 = vxpose.xlu0.b32.cont [9/16] 0.0, 128
      %254 = vxpose.xlu0.b32.cont [10/16] 0.0, 128
      %255 = vxpose.xlu0.b32.cont [11/16] 0.0, 128
      %256 = vxpose.xlu0.b32.cont [12/16] 0.0, 128
      %257 = vxpose.xlu0.b32.cont [13/16] 0.0, 128
      %258 = vxpose.xlu0.b32.cont [14/16] 0.0, 128
      %259 = vxpose.xlu0.b32.cont [15/16] 0.0, 128
      %260 = vxpose.xlu0.b32.end [16/16] 0.0, 128
      %v261 = vpop.trf.xlu0
      %v262 = vpop.trf.xlu0
      %v263 = vpop.trf.xlu0
      %v264 = vpop.trf.xlu0
      %v265 = vpop.trf.xlu0
      %v266 = vpop.trf.xlu0
      %v267 = vpop.trf.xlu0
      %v268 = vpop.trf.xlu0
      %v269 = vpop.trf.xlu0
      %v270 = vpop.trf.xlu0
      %v271 = vpop.trf.xlu0
      %v272 = vpop.trf.xlu0
      %v273 = vpop.trf.xlu0
      %v274 = vpop.trf.xlu0
      %v275 = vpop.trf.xlu0
      %v276 = vpop.trf.xlu0
      %vm277 = vcmask 130048
      %v279 = vsel %vm277, %v261, 0
      %v282 = vsel %vm277, %v262, 0
      %284 = vmatprep.subr.mxu0 0.0
      %285 = vmatpush1.msra.mxu0 %v243
      %286 = vmatprep.subr.mxu0 0.0
      %287 = vmatpush1.msra.mxu0 %v244
      %288 = vmatprep.subr.mxu0 0.0
      %289 = vmatpush1.msra.mxu0 0.0
      %290 = vmatprep.subr.mxu0 0.0
      %291 = vmatpush1.msra.mxu0 0.0
      %292 = vmatprep.subr.mxu0 0.0
      %293 = vmatpush1.msra.mxu0 0.0
      %294 = vmatprep.subr.mxu0 0.0
      %295 = vmatpush1.msra.mxu0 0.0
      %296 = vmatprep.subr.mxu0 0.0
      %297 = vmatpush1.msra.mxu0 0.0
      %298 = vmatprep.subr.mxu0 0.0
      %299 = vmatpush1.msra.mxu0 0.0
      %300 = vmatprep.subr.mxu0 0.0
      %301 = vmatpush1.msra.mxu0 0.0
      %302 = vmatprep.subr.mxu0 0.0
      %303 = vmatpush1.msra.mxu0 0.0
      %304 = vmatprep.subr.mxu0 0.0
      %305 = vmatpush1.msra.mxu0 0.0
      %306 = vmatprep.subr.mxu0 0.0
      %307 = vmatpush1.msra.mxu0 0.0
      %308 = vmatprep.subr.mxu0 0.0
      %309 = vmatpush1.msra.mxu0 0.0
      %310 = vmatprep.subr.mxu0 0.0
      %311 = vmatpush1.msra.mxu0 0.0
      %312 = vmatprep.subr.mxu0 0.0
      %313 = vmatpush1.msra.mxu0 0.0
      %314 = vmatprep.subr.mxu0 0.0
      %315 = vmatpush1.msra.mxu0 0.0
      %316 = vmatprep.subr.mxu0 0.0
      %317 = vmatpush1.msra.mxu0 0.0
      %318 = vmatprep.subr.mxu0 0.0
      %319 = vmatpush1.msra.mxu0 0.0
      %320 = vmatprep.subr.mxu0 0.0
      %321 = vmatpush1.msra.mxu0 0.0
      %322 = vmatprep.subr.mxu0 0.0
      %323 = vmatpush1.msra.mxu0 0.0
      %324 = vmatprep.subr.mxu0 0.0
      %325 = vmatpush1.msra.mxu0 0.0
      %326 = vmatprep.subr.mxu0 0.0
      %327 = vmatpush1.msra.mxu0 0.0
      %328 = vmatprep.subr.mxu0 0.0
      %329 = vmatpush1.msra.mxu0 0.0
      %330 = vmatprep.subr.mxu0 0.0
      %331 = vmatpush1.msra.mxu0 0.0
      %332 = vmatprep.subr.mxu0 0.0
      %333 = vmatpush1.msra.mxu0 0.0
      %334 = vmatprep.subr.mxu0 0.0
      %335 = vmatpush1.msra.mxu0 0.0
      %336 = vmatprep.subr.mxu0 0.0
      %337 = vmatpush1.msra.mxu0 0.0
      %338 = vmatprep.subr.mxu0 0.0
      %339 = vmatpush1.msra.mxu0 0.0
      %340 = vmatprep.subr.mxu0 0.0
      %341 = vmatpush1.msra.mxu0 0.0
      %342 = vmatprep.subr.mxu0 0.0
      %343 = vmatpush1.msra.mxu0 0.0
      %344 = vmatprep.subr.mxu0 0.0
      %345 = vmatpush1.msra.mxu0 0.0
      %346 = vmatprep.subr.mxu0 0.0
      %347 = vmatpush1.msra.mxu0 0.0
      %348 = vmatprep.mubr.f32.mxu0 0.0
      %349 = vmatmul.mubr.f32.gmra.mrb[0].mxu0 %v279
      %v350 = vpop.f32.mrb[0].mxu0
      %v351 = vadd.f32 0.0, %v350
      %v352 = vpop.f32.mrb[0].mxu0
      %353 = vmatprep.mubr.f32.mxu0 0.0
      %354 = vmatmul.mubr.f32.gmra.mrb[0].mxu0 %v282
      %v355 = vpop.f32.mrb[0].mxu0
      %v356 = vadd.f32 0.0, %v355
      %v357 = vpop.f32.mrb[0].mxu0
      %358 = vdwg.mxu0
      %v359 = vld [vmem:[%s228] sm:$0x1]
      %v361 = vlaneseq
      %v362 = vshrl.u32 %v361, 7
      %v363 = vsub.s32 0, %v362
      %v364 = vrot.slane %v359, %v363
      %v366 = vsub.f32 %v351, %v364
      %v367 = vsub.f32 %v356, %v364
      %v368 = vlaneseq
      %v369 = vand.u32 %v368, 127
      %v370 = vsel %vm277, %v366, -inf
      %371 = vmax.xlane.f32.xlu0 %v370
      %v372 = vpop.xlane.xlu0 %371
      %v373 = vsel %vm277, %v367, -inf
      %374 = vmax.xlane.f32.xlu0 %v373
      %v375 = vpop.xlane.xlu0 %374
      %vm376 = vcmp.ge.f32.partialorder %v366, %v372
      %vm377 = vcmp.ge.f32.partialorder %v367, %v375
      %v378 = vsel %vm376, %v369, 16
      %v379 = vsel %vm377, %v369, 16
      %v380 = vsel %vm277, %v378, 2147483647
      %v381 = vand.u32 %v380, 65535
      %v382 = vshra.s32 %v380, 16
      %v383 = vcvt.s32.f32 %v381
      %v384 = vcvt.s32.f32 %v382
      %385 = vmin.xlane.f32.xlu0 %v384
      %v386 = vpop.xlane.xlu0 %385
      %vm387 = vcmp.eq.f32.partialorder %v384, %v386
      %v388 = vsel %vm387, %v383, inf
      %389 = vmin.xlane.f32.xlu0 %v388
      %v390 = vpop.xlane.xlu0 %389
      %v391 = vcvt.f32.s32 %v390
      %v392 = vcvt.f32.s32 %v386
      %v393 = vshll.u32 %v392, 16
      %v394 = vadd.s32 %v393, %v391
      %v395 = vsel %vm277, %v379, 2147483647
      %v396 = vand.u32 %v395, 65535
      %v397 = vshra.s32 %v395, 16
      %v398 = vcvt.s32.f32 %v396
      %v399 = vcvt.s32.f32 %v397
      %400 = vmin.xlane.f32.xlu0 %v399
      %v401 = vpop.xlane.xlu0 %400
      %vm402 = vcmp.eq.f32.partialorder %v399, %v401
      %v403 = vsel %vm402, %v398, inf
      %404 = vmin.xlane.f32.xlu0 %v403
      %v405 = vpop.xlane.xlu0 %404
      %v406 = vcvt.f32.s32 %v405
      %v407 = vcvt.f32.s32 %v401
      %v408 = vshll.u32 %v407, 16
      %v409 = vadd.s32 %v408, %v406
      %vm410 = vcmp.eq.s32.totalorder %v369, %v394
      %vm411 = vcmp.eq.s32.totalorder %v369, %v409
      %v412 = vsel %vm410, -inf, %v366
      %v413 = vsel %vm411, -inf, %v367
      %v414 = vsel %vm277, %v412, -inf
      %415 = vmax.xlane.f32.xlu0 %v414
      %v416 = vpop.xlane.xlu0 %415
      %v417 = vsel %vm277, %v413, -inf
      %418 = vmax.xlane.f32.xlu0 %v417
      %v419 = vpop.xlane.xlu0 %418
      %vm420 = vcmp.ge.f32.partialorder %v412, %v416
      %vm421 = vcmp.ge.f32.partialorder %v413, %v419
      %v422 = vsel %vm420, %v369, 16
      %v423 = vsel %vm421, %v369, 16
      %v424 = vsel %vm277, %v422, 2147483647
      %v425 = vand.u32 %v424, 65535
      %v426 = vshra.s32 %v424, 16
      %v427 = vcvt.s32.f32 %v425
      %v428 = vcvt.s32.f32 %v426
      %429 = vmin.xlane.f32.xlu0 %v428
      %v430 = vpop.xlane.xlu0 %429
      %vm431 = vcmp.eq.f32.partialorder %v428, %v430
      %v432 = vsel %vm431, %v427, inf
      %433 = vmin.xlane.f32.xlu0 %v432
      %v434 = vpop.xlane.xlu0 %433
      %v435 = vcvt.f32.s32 %v434
      %v436 = vcvt.f32.s32 %v430
      %v437 = vshll.u32 %v436, 16
      %v438 = vadd.s32 %v437, %v435
      %v439 = vsel %vm277, %v423, 2147483647
      %v440 = vand.u32 %v439, 65535
      %v441 = vshra.s32 %v439, 16
      %v442 = vcvt.s32.f32 %v440
      %v443 = vcvt.s32.f32 %v441
      %444 = vmin.xlane.f32.xlu0 %v443
      %v445 = vpop.xlane.xlu0 %444
      %vm446 = vcmp.eq.f32.partialorder %v443, %v445
      %v447 = vsel %vm446, %v442, inf
      %448 = vmin.xlane.f32.xlu0 %v447
      %v449 = vpop.xlane.xlu0 %448
      %v450 = vcvt.f32.s32 %v449
      %v451 = vcvt.f32.s32 %v445
      %v452 = vshll.u32 %v451, 16
      %v453 = vadd.s32 %v452, %v450
      %vm454 = vcmp.eq.s32.totalorder %v369, %v438
      %vm455 = vcmp.eq.s32.totalorder %v369, %v453
      %v456 = vsel %vm454, -inf, %v412
      %v457 = vsel %vm455, -inf, %v413
      %v458 = vsel %vm277, %v456, -inf
      %459 = vmax.xlane.f32.xlu0 %v458
      %v460 = vpop.xlane.xlu0 %459
      %v461 = vsel %vm277, %v457, -inf
      %462 = vmax.xlane.f32.xlu0 %v461
      %v463 = vpop.xlane.xlu0 %462
      %vm464 = vcmp.ge.f32.partialorder %v456, %v460
      %vm465 = vcmp.ge.f32.partialorder %v457, %v463
      %v466 = vsel %vm464, %v369, 16
      %v467 = vsel %vm465, %v369, 16
      %v468 = vsel %vm277, %v466, 2147483647
      %v469 = vand.u32 %v468, 65535
      %v470 = vshra.s32 %v468, 16
      %v471 = vcvt.s32.f32 %v469
      %v472 = vcvt.s32.f32 %v470
      %473 = vmin.xlane.f32.xlu0 %v472
      %v474 = vpop.xlane.xlu0 %473
      %vm475 = vcmp.eq.f32.partialorder %v472, %v474
      %v476 = vsel %vm475, %v471, inf
      %477 = vmin.xlane.f32.xlu0 %v476
      %v478 = vpop.xlane.xlu0 %477
      %v479 = vcvt.f32.s32 %v478
      %v480 = vcvt.f32.s32 %v474
      %v481 = vshll.u32 %v480, 16
      %v482 = vadd.s32 %v481, %v479
      %v483 = vsel %vm277, %v467, 2147483647
      %v484 = vand.u32 %v483, 65535
      %v485 = vshra.s32 %v483, 16
      %v486 = vcvt.s32.f32 %v484
      %v487 = vcvt.s32.f32 %v485
      %488 = vmin.xlane.f32.xlu0 %v487
      %v489 = vpop.xlane.xlu0 %488
      %vm490 = vcmp.eq.f32.partialorder %v487, %v489
      %v491 = vsel %vm490, %v486, inf
      %492 = vmin.xlane.f32.xlu0 %v491
      %v493 = vpop.xlane.xlu0 %492
      %v494 = vcvt.f32.s32 %v493
      %v495 = vcvt.f32.s32 %v489
      %v496 = vshll.u32 %v495, 16
      %v497 = vadd.s32 %v496, %v494
      %vm498 = vcmp.eq.s32.totalorder %v369, %v482
      %vm499 = vcmp.eq.s32.totalorder %v369, %v497
      %v500 = vsel %vm498, -inf, %v456
      %v501 = vsel %vm499, -inf, %v457
      %v502 = vsel %vm277, %v500, -inf
      %503 = vmax.xlane.f32.xlu0 %v502
      %v504 = vpop.xlane.xlu0 %503
      %v505 = vsel %vm277, %v501, -inf
      %506 = vmax.xlane.f32.xlu0 %v505
      %v507 = vpop.xlane.xlu0 %506
      %vm508 = vcmp.ge.f32.partialorder %v500, %v504
      %vm509 = vcmp.ge.f32.partialorder %v501, %v507
      %v510 = vsel %vm508, %v369, 16
      %v511 = vsel %vm509, %v369, 16
      %v512 = vsel %vm277, %v510, 2147483647
      %v513 = vand.u32 %v512, 65535
      %v514 = vshra.s32 %v512, 16
      %v515 = vcvt.s32.f32 %v513
      %v516 = vcvt.s32.f32 %v514
      %517 = vmin.xlane.f32.xlu0 %v516
      %v518 = vpop.xlane.xlu0 %517
      %vm519 = vcmp.eq.f32.partialorder %v516, %v518
      %v520 = vsel %vm519, %v515, inf
      %521 = vmin.xlane.f32.xlu0 %v520
      %v522 = vpop.xlane.xlu0 %521
      %v523 = vcvt.f32.s32 %v522
      %v524 = vcvt.f32.s32 %v518
      %v525 = vshll.u32 %v524, 16
      %v526 = vadd.s32 %v525, %v523
      %v527 = vsel %vm277, %v511, 2147483647
      %v528 = vand.u32 %v527, 65535
      %v529 = vshra.s32 %v527, 16
      %v530 = vcvt.s32.f32 %v528
      %v531 = vcvt.s32.f32 %v529
      %532 = vmin.xlane.f32.xlu0 %v531
      %v533 = vpop.xlane.xlu0 %532
      %vm534 = vcmp.eq.f32.partialorder %v531, %v533
      %v535 = vsel %vm534, %v530, inf
      %536 = vmin.xlane.f32.xlu0 %v535
      %v537 = vpop.xlane.xlu0 %536
      %v538 = vcvt.f32.s32 %v537
      %v539 = vcvt.f32.s32 %v533
      %v540 = vshll.u32 %v539, 16
      %v541 = vadd.s32 %v540, %v538
      %vm542 = vcmp.eq.s32.totalorder %v369, %v526
      %vm543 = vcmp.eq.s32.totalorder %v369, %v541
      %v544 = vsel %vm542, -inf, %v500
      %v545 = vsel %vm543, -inf, %v501
      %v546 = vsel %vm277, %v544, -inf
      %547 = vmax.xlane.f32.xlu0 %v546
      %v548 = vpop.xlane.xlu0 %547
      %v549 = vsel %vm277, %v545, -inf
      %550 = vmax.xlane.f32.xlu0 %v549
      %v551 = vpop.xlane.xlu0 %550
      %vm552 = vcmp.ge.f32.partialorder %v544, %v548
      %vm553 = vcmp.ge.f32.partialorder %v545, %v551
      %v554 = vsel %vm552, %v369, 16
      %v555 = vsel %vm553, %v369, 16
      %v556 = vsel %vm277, %v554, 2147483647
      %v557 = vand.u32 %v556, 65535
      %v558 = vshra.s32 %v556, 16
      %v559 = vcvt.s32.f32 %v557
      %v560 = vcvt.s32.f32 %v558
      %561 = vmin.xlane.f32.xlu0 %v560
      %v562 = vpop.xlane.xlu0 %561
      %vm563 = vcmp.eq.f32.partialorder %v560, %v562
      %v564 = vsel %vm563, %v559, inf
      %565 = vmin.xlane.f32.xlu0 %v564
      %v566 = vpop.xlane.xlu0 %565
      %v567 = vcvt.f32.s32 %v566
      %v568 = vcvt.f32.s32 %v562
      %v569 = vshll.u32 %v568, 16
      %v570 = vadd.s32 %v569, %v567
      %v571 = vsel %vm277, %v555, 2147483647
      %v572 = vand.u32 %v571, 65535
      %v573 = vshra.s32 %v571, 16
      %v574 = vcvt.s32.f32 %v572
      %v575 = vcvt.s32.f32 %v573
      %576 = vmin.xlane.f32.xlu0 %v575
      %v577 = vpop.xlane.xlu0 %576
      %vm578 = vcmp.eq.f32.partialorder %v575, %v577
      %v579 = vsel %vm578, %v574, inf
      %580 = vmin.xlane.f32.xlu0 %v579
      %v581 = vpop.xlane.xlu0 %580
      %v582 = vcvt.f32.s32 %v581
      %v583 = vcvt.f32.s32 %v577
      %v584 = vshll.u32 %v583, 16
      %v585 = vadd.s32 %v584, %v582
      %vm586 = vcmp.eq.s32.totalorder %v369, %v570
      %vm587 = vcmp.eq.s32.totalorder %v369, %v585
      %v588 = vsel %vm586, -inf, %v544
      %v589 = vsel %vm587, -inf, %v545
      %v590 = vsel %vm277, %v588, -inf
      %591 = vmax.xlane.f32.xlu0 %v590
      %v592 = vpop.xlane.xlu0 %591
      %v593 = vsel %vm277, %v589, -inf
      %594 = vmax.xlane.f32.xlu0 %v593
      %v595 = vpop.xlane.xlu0 %594
      %vm596 = vcmp.ge.f32.partialorder %v588, %v592
      %vm597 = vcmp.ge.f32.partialorder %v589, %v595
      %v598 = vsel %vm596, %v369, 16
      %v599 = vsel %vm597, %v369, 16
      %v600 = vsel %vm277, %v598, 2147483647
      %v601 = vand.u32 %v600, 65535
      %v602 = vshra.s32 %v600, 16
      %v603 = vcvt.s32.f32 %v601
      %v604 = vcvt.s32.f32 %v602
      %605 = vmin.xlane.f32.xlu0 %v604
      %v606 = vpop.xlane.xlu0 %605
      %vm607 = vcmp.eq.f32.partialorder %v604, %v606
      %v608 = vsel %vm607, %v603, inf
      %609 = vmin.xlane.f32.xlu0 %v608
      %v610 = vpop.xlane.xlu0 %609
      %v611 = vcvt.f32.s32 %v610
      %v612 = vcvt.f32.s32 %v606
      %v613 = vshll.u32 %v612, 16
      %v614 = vadd.s32 %v613, %v611
      %v615 = vsel %vm277, %v599, 2147483647
      %v616 = vand.u32 %v615, 65535
      %v617 = vshra.s32 %v615, 16
      %v618 = vcvt.s32.f32 %v616
      %v619 = vcvt.s32.f32 %v617
      %620 = vmin.xlane.f32.xlu0 %v619
      %v621 = vpop.xlane.xlu0 %620
      %vm622 = vcmp.eq.f32.partialorder %v619, %v621
      %v623 = vsel %vm622, %v618, inf
      %624 = vmin.xlane.f32.xlu0 %v623
      %v625 = vpop.xlane.xlu0 %624
      %v626 = vcvt.f32.s32 %v625
      %v627 = vcvt.f32.s32 %v621
      %v628 = vshll.u32 %v627, 16
      %v629 = vadd.s32 %v628, %v626
      %vm630 = vcmp.eq.s32.totalorder %v369, %v614
      %vm631 = vcmp.eq.s32.totalorder %v369, %v629
      %v632 = vsel %vm630, -inf, %v588
      %v633 = vsel %vm631, -inf, %v589
      %v634 = vsel %vm277, %v632, -inf
      %635 = vmax.xlane.f32.xlu0 %v634
      %v636 = vpop.xlane.xlu0 %635
      %v637 = vsel %vm277, %v633, -inf
      %638 = vmax.xlane.f32.xlu0 %v637
      %v639 = vpop.xlane.xlu0 %638
      %vm640 = vcmp.ge.f32.partialorder %v632, %v636
      %vm641 = vcmp.ge.f32.partialorder %v633, %v639
      %v642 = vsel %vm640, %v369, 16
      %v643 = vsel %vm641, %v369, 16
      %v644 = vsel %vm277, %v642, 2147483647
      %v645 = vand.u32 %v644, 65535
      %v646 = vshra.s32 %v644, 16
      %v647 = vcvt.s32.f32 %v645
      %v648 = vcvt.s32.f32 %v646
      %649 = vmin.xlane.f32.xlu0 %v648
      %v650 = vpop.xlane.xlu0 %649
      %vm651 = vcmp.eq.f32.partialorder %v648, %v650
      %v652 = vsel %vm651, %v647, inf
      %653 = vmin.xlane.f32.xlu0 %v652
      %v654 = vpop.xlane.xlu0 %653
      %v655 = vcvt.f32.s32 %v654
      %v656 = vcvt.f32.s32 %v650
      %v657 = vshll.u32 %v656, 16
      %v658 = vadd.s32 %v657, %v655
      %v659 = vsel %vm277, %v643, 2147483647
      %v660 = vand.u32 %v659, 65535
      %v661 = vshra.s32 %v659, 16
      %v662 = vcvt.s32.f32 %v660
      %v663 = vcvt.s32.f32 %v661
      %664 = vmin.xlane.f32.xlu0 %v663
      %v665 = vpop.xlane.xlu0 %664
      %vm666 = vcmp.eq.f32.partialorder %v663, %v665
      %v667 = vsel %vm666, %v662, inf
      %668 = vmin.xlane.f32.xlu0 %v667
      %v669 = vpop.xlane.xlu0 %668
      %v670 = vcvt.f32.s32 %v669
      %v671 = vcvt.f32.s32 %v665
      %v672 = vshll.u32 %v671, 16
      %v673 = vadd.s32 %v672, %v670
      %vm674 = vcmp.eq.s32.totalorder %v369, %v658
      %vm675 = vcmp.eq.s32.totalorder %v369, %v673
      %v676 = vsel %vm674, -inf, %v632
      %v677 = vsel %vm675, -inf, %v633
      %v678 = vsel %vm277, %v676, -inf
      %679 = vmax.xlane.f32.xlu0 %v678
      %v680 = vpop.xlane.xlu0 %679
      %v681 = vsel %vm277, %v677, -inf
      %682 = vmax.xlane.f32.xlu0 %v681
      %v683 = vpop.xlane.xlu0 %682
      %vm684 = vcmp.ge.f32.partialorder %v676, %v680
      %vm685 = vcmp.ge.f32.partialorder %v677, %v683
      %v686 = vsel %vm684, %v369, 16
      %v687 = vsel %vm685, %v369, 16
      %v688 = vsel %vm277, %v686, 2147483647
      %v689 = vand.u32 %v688, 65535
      %v690 = vshra.s32 %v688, 16
      %v691 = vcvt.s32.f32 %v689
      %v692 = vcvt.s32.f32 %v690
      %693 = vmin.xlane.f32.xlu0 %v692
      %v694 = vpop.xlane.xlu0 %693
      %vm695 = vcmp.eq.f32.partialorder %v692, %v694
      %v696 = vsel %vm695, %v691, inf
      %697 = vmin.xlane.f32.xlu0 %v696
      %v698 = vpop.xlane.xlu0 %697
      %v699 = vcvt.f32.s32 %v698
      %v700 = vcvt.f32.s32 %v694
      %v701 = vshll.u32 %v700, 16
      %v702 = vadd.s32 %v701, %v699
      %v703 = vsel %vm277, %v687, 2147483647
      %v704 = vand.u32 %v703, 65535
      %v705 = vshra.s32 %v703, 16
      %v706 = vcvt.s32.f32 %v704
      %v707 = vcvt.s32.f32 %v705
      %708 = vmin.xlane.f32.xlu0 %v707
      %v709 = vpop.xlane.xlu0 %708
      %vm710 = vcmp.eq.f32.partialorder %v707, %v709
      %v711 = vsel %vm710, %v706, inf
      %712 = vmin.xlane.f32.xlu0 %v711
      %v713 = vpop.xlane.xlu0 %712
      %v714 = vcvt.f32.s32 %v713
      %v715 = vcvt.f32.s32 %v709
      %v716 = vshll.u32 %v715, 16
      %v717 = vadd.s32 %v716, %v714
      %vm718 = vcmp.eq.s32.totalorder %v369, %v702
      %vm719 = vcmp.eq.s32.totalorder %v369, %v717
      %v720 = vsel %vm718, -inf, %v676
      %v721 = vsel %vm719, -inf, %v677
      %v722 = vsel %vm277, %v720, -inf
      %723 = vmax.xlane.f32.xlu0 %v722
      %v724 = vpop.xlane.xlu0 %723
      %v725 = vsel %vm277, %v721, -inf
      %726 = vmax.xlane.f32.xlu0 %v725
      %v727 = vpop.xlane.xlu0 %726
      %vm728 = vcmp.ge.f32.partialorder %v720, %v724
      %vm729 = vcmp.ge.f32.partialorder %v721, %v727
      %v730 = vsel %vm728, %v369, 16
      %v731 = vsel %vm729, %v369, 16
      %v732 = vsel %vm277, %v730, 2147483647
      %v733 = vand.u32 %v732, 65535
      %v734 = vshra.s32 %v732, 16
      %v735 = vcvt.s32.f32 %v733
      %v736 = vcvt.s32.f32 %v734
      %737 = vmin.xlane.f32.xlu0 %v736
      %v738 = vpop.xlane.xlu0 %737
      %vm739 = vcmp.eq.f32.partialorder %v736, %v738
      %v740 = vsel %vm739, %v735, inf
      %741 = vmin.xlane.f32.xlu0 %v740
      %v742 = vpop.xlane.xlu0 %741
      %v743 = vcvt.f32.s32 %v742
      %v744 = vcvt.f32.s32 %v738
      %v745 = vshll.u32 %v744, 16
      %v746 = vadd.s32 %v745, %v743
      %v747 = vsel %vm277, %v731, 2147483647
      %v748 = vand.u32 %v747, 65535
      %v749 = vshra.s32 %v747, 16
      %v750 = vcvt.s32.f32 %v748
      %v751 = vcvt.s32.f32 %v749
      %752 = vmin.xlane.f32.xlu0 %v751
      %v753 = vpop.xlane.xlu0 %752
      %vm754 = vcmp.eq.f32.partialorder %v751, %v753
      %v755 = vsel %vm754, %v750, inf
      %756 = vmin.xlane.f32.xlu0 %v755
      %v757 = vpop.xlane.xlu0 %756
      %v758 = vcvt.f32.s32 %v757
      %v759 = vcvt.f32.s32 %v753
      %v760 = vshll.u32 %v759, 16
      %v761 = vadd.s32 %v760, %v758
      %vm762 = vcmp.eq.s32.totalorder %v369, %v746
      %vm763 = vcmp.eq.s32.totalorder %v369, %v761
      %v764 = vsel %vm762, -inf, %v720
      %v765 = vsel %vm763, -inf, %v721
      %v766 = vsel %vm277, %v764, -inf
      %767 = vmax.xlane.f32.xlu0 %v766
      %v768 = vpop.xlane.xlu0 %767
      %v769 = vsel %vm277, %v765, -inf
      %770 = vmax.xlane.f32.xlu0 %v769
      %v771 = vpop.xlane.xlu0 %770
      %vm772 = vcmp.ge.f32.partialorder %v764, %v768
      %vm773 = vcmp.ge.f32.partialorder %v765, %v771
      %v774 = vsel %vm772, %v369, 16
      %v775 = vsel %vm773, %v369, 16
      %v776 = vsel %vm277, %v774, 2147483647
      %v777 = vand.u32 %v776, 65535
      %v778 = vshra.s32 %v776, 16
      %v779 = vcvt.s32.f32 %v777
      %v780 = vcvt.s32.f32 %v778
      %781 = vmin.xlane.f32.xlu0 %v780
      %v782 = vpop.xlane.xlu0 %781
      %vm783 = vcmp.eq.f32.partialorder %v780, %v782
      %v784 = vsel %vm783, %v779, inf
      %785 = vmin.xlane.f32.xlu0 %v784
      %v786 = vpop.xlane.xlu0 %785
      %v787 = vcvt.f32.s32 %v786
      %v788 = vcvt.f32.s32 %v782
      %v789 = vshll.u32 %v788, 16
      %v790 = vadd.s32 %v789, %v787
      %v791 = vsel %vm277, %v775, 2147483647
      %v792 = vand.u32 %v791, 65535
      %v793 = vshra.s32 %v791, 16
      %v794 = vcvt.s32.f32 %v792
      %v795 = vcvt.s32.f32 %v793
      %796 = vmin.xlane.f32.xlu0 %v795
      %v797 = vpop.xlane.xlu0 %796
      %vm798 = vcmp.eq.f32.partialorder %v795, %v797
      %v799 = vsel %vm798, %v794, inf
      %800 = vmin.xlane.f32.xlu0 %v799
      %v801 = vpop.xlane.xlu0 %800
      %v802 = vcvt.f32.s32 %v801
      %v803 = vcvt.f32.s32 %v797
      %v804 = vshll.u32 %v803, 16
      %v805 = vadd.s32 %v804, %v802
      %vm806 = vcmp.eq.s32.totalorder %v369, %v790
      %vm807 = vcmp.eq.s32.totalorder %v369, %v805
      %v808 = vsel %vm806, -inf, %v764
      %v809 = vsel %vm807, -inf, %v765
      %v810 = vsel %vm277, %v808, -inf
      %811 = vmax.xlane.f32.xlu0 %v810
      %v812 = vpop.xlane.xlu0 %811
      %v813 = vsel %vm277, %v809, -inf
      %814 = vmax.xlane.f32.xlu0 %v813
      %v815 = vpop.xlane.xlu0 %814
      %vm816 = vcmp.ge.f32.partialorder %v808, %v812
      %vm817 = vcmp.ge.f32.partialorder %v809, %v815
      %v818 = vsel %vm816, %v369, 16
      %v819 = vsel %vm817, %v369, 16
      %v820 = vsel %vm277, %v818, 2147483647
      %v821 = vand.u32 %v820, 65535
      %v822 = vshra.s32 %v820, 16
      %v823 = vcvt.s32.f32 %v821
      %v824 = vcvt.s32.f32 %v822
      %825 = vmin.xlane.f32.xlu0 %v824
      %v826 = vpop.xlane.xlu0 %825
      %vm827 = vcmp.eq.f32.partialorder %v824, %v826
      %v828 = vsel %vm827, %v823, inf
      %829 = vmin.xlane.f32.xlu0 %v828
      %v830 = vpop.xlane.xlu0 %829
      %v831 = vcvt.f32.s32 %v830
      %v832 = vcvt.f32.s32 %v826
      %v833 = vshll.u32 %v832, 16
      %v834 = vadd.s32 %v833, %v831
      %v835 = vsel %vm277, %v819, 2147483647
      %v836 = vand.u32 %v835, 65535
      %v837 = vshra.s32 %v835, 16
      %v838 = vcvt.s32.f32 %v836
      %v839 = vcvt.s32.f32 %v837
      %840 = vmin.xlane.f32.xlu0 %v839
      %v841 = vpop.xlane.xlu0 %840
      %vm842 = vcmp.eq.f32.partialorder %v839, %v841
      %v843 = vsel %vm842, %v838, inf
      %844 = vmin.xlane.f32.xlu0 %v843
      %v845 = vpop.xlane.xlu0 %844
      %v846 = vcvt.f32.s32 %v845
      %v847 = vcvt.f32.s32 %v841
      %v848 = vshll.u32 %v847, 16
      %v849 = vadd.s32 %v848, %v846
      %vm850 = vcmp.eq.s32.totalorder %v369, %v834
      %vm851 = vcmp.eq.s32.totalorder %v369, %v849
      %v852 = vsel %vm850, -inf, %v808
      %v853 = vsel %vm851, -inf, %v809
      %v854 = vsel %vm277, %v852, -inf
      %855 = vmax.xlane.f32.xlu0 %v854
      %v856 = vpop.xlane.xlu0 %855
      %v857 = vsel %vm277, %v853, -inf
      %858 = vmax.xlane.f32.xlu0 %v857
      %v859 = vpop.xlane.xlu0 %858
      %vm860 = vcmp.ge.f32.partialorder %v852, %v856
      %vm861 = vcmp.ge.f32.partialorder %v853, %v859
      %v862 = vsel %vm860, %v369, 16
      %v863 = vsel %vm861, %v369, 16
      %v864 = vsel %vm277, %v862, 2147483647
      %v865 = vand.u32 %v864, 65535
      %v866 = vshra.s32 %v864, 16
      %v867 = vcvt.s32.f32 %v865
      %v868 = vcvt.s32.f32 %v866
      %869 = vmin.xlane.f32.xlu0 %v868
      %v870 = vpop.xlane.xlu0 %869
      %vm871 = vcmp.eq.f32.partialorder %v868, %v870
      %v872 = vsel %vm871, %v867, inf
      %873 = vmin.xlane.f32.xlu0 %v872
      %v874 = vpop.xlane.xlu0 %873
      %v875 = vcvt.f32.s32 %v874
      %v876 = vcvt.f32.s32 %v870
      %v877 = vshll.u32 %v876, 16
      %v878 = vadd.s32 %v877, %v875
      %v879 = vsel %vm277, %v863, 2147483647
      %v880 = vand.u32 %v879, 65535
      %v881 = vshra.s32 %v879, 16
      %v882 = vcvt.s32.f32 %v880
      %v883 = vcvt.s32.f32 %v881
      %884 = vmin.xlane.f32.xlu0 %v883
      %v885 = vpop.xlane.xlu0 %884
      %vm886 = vcmp.eq.f32.partialorder %v883, %v885
      %v887 = vsel %vm886, %v882, inf
      %888 = vmin.xlane.f32.xlu0 %v887
      %v889 = vpop.xlane.xlu0 %888
      %v890 = vcvt.f32.s32 %v889
      %v891 = vcvt.f32.s32 %v885
      %v892 = vshll.u32 %v891, 16
      %v893 = vadd.s32 %v892, %v890
      %vm894 = vcmp.eq.s32.totalorder %v369, %v878
      %vm895 = vcmp.eq.s32.totalorder %v369, %v893
      %v896 = vsel %vm894, -inf, %v852
      %v897 = vsel %vm895, -inf, %v853
      %v898 = vsel %vm277, %v896, -inf
      %899 = vmax.xlane.f32.xlu0 %v898
      %v900 = vpop.xlane.xlu0 %899
      %v901 = vsel %vm277, %v897, -inf
      %902 = vmax.xlane.f32.xlu0 %v901
      %v903 = vpop.xlane.xlu0 %902
      %vm904 = vcmp.ge.f32.partialorder %v896, %v900
      %vm905 = vcmp.ge.f32.partialorder %v897, %v903
      %v906 = vsel %vm904, %v369, 16
      %v907 = vsel %vm905, %v369, 16
      %v908 = vsel %vm277, %v906, 2147483647
      %v909 = vand.u32 %v908, 65535
      %v910 = vshra.s32 %v908, 16
      %v911 = vcvt.s32.f32 %v909
      %v912 = vcvt.s32.f32 %v910
      %913 = vmin.xlane.f32.xlu0 %v912
      %v914 = vpop.xlane.xlu0 %913
      %vm915 = vcmp.eq.f32.partialorder %v912, %v914
      %v916 = vsel %vm915, %v911, inf
      %917 = vmin.xlane.f32.xlu0 %v916
      %v918 = vpop.xlane.xlu0 %917
      %v919 = vcvt.f32.s32 %v918
      %v920 = vcvt.f32.s32 %v914
      %v921 = vshll.u32 %v920, 16
      %v922 = vadd.s32 %v921, %v919
      %v923 = vsel %vm277, %v907, 2147483647
      %v924 = vand.u32 %v923, 65535
      %v925 = vshra.s32 %v923, 16
      %v926 = vcvt.s32.f32 %v924
      %v927 = vcvt.s32.f32 %v925
      %928 = vmin.xlane.f32.xlu0 %v927
      %v929 = vpop.xlane.xlu0 %928
      %vm930 = vcmp.eq.f32.partialorder %v927, %v929
      %v931 = vsel %vm930, %v926, inf
      %932 = vmin.xlane.f32.xlu0 %v931
      %v933 = vpop.xlane.xlu0 %932
      %v934 = vcvt.f32.s32 %v933
      %v935 = vcvt.f32.s32 %v929
      %v936 = vshll.u32 %v935, 16
      %v937 = vadd.s32 %v936, %v934
      %vm938 = vcmp.eq.s32.totalorder %v369, %v922
      %vm939 = vcmp.eq.s32.totalorder %v369, %v937
      %v940 = vsel %vm938, -inf, %v896
      %v941 = vsel %vm939, -inf, %v897
      %v942 = vsel %vm277, %v940, -inf
      %943 = vmax.xlane.f32.xlu0 %v942
      %v944 = vpop.xlane.xlu0 %943
      %v945 = vsel %vm277, %v941, -inf
      %946 = vmax.xlane.f32.xlu0 %v945
      %v947 = vpop.xlane.xlu0 %946
      %vm948 = vcmp.ge.f32.partialorder %v940, %v944
      %vm949 = vcmp.ge.f32.partialorder %v941, %v947
      %v950 = vsel %vm948, %v369, 16
      %v951 = vsel %vm949, %v369, 16
      %v952 = vsel %vm277, %v950, 2147483647
      %v953 = vand.u32 %v952, 65535
      %v954 = vshra.s32 %v952, 16
      %v955 = vcvt.s32.f32 %v953
      %v956 = vcvt.s32.f32 %v954
      %957 = vmin.xlane.f32.xlu0 %v956
      %v958 = vpop.xlane.xlu0 %957
      %vm959 = vcmp.eq.f32.partialorder %v956, %v958
      %v960 = vsel %vm959, %v955, inf
      %961 = vmin.xlane.f32.xlu0 %v960
      %v962 = vpop.xlane.xlu0 %961
      %v963 = vcvt.f32.s32 %v962
      %v964 = vcvt.f32.s32 %v958
      %v965 = vshll.u32 %v964, 16
      %v966 = vadd.s32 %v965, %v963
      %v967 = vsel %vm277, %v951, 2147483647
      %v968 = vand.u32 %v967, 65535
      %v969 = vshra.s32 %v967, 16
      %v970 = vcvt.s32.f32 %v968
      %v971 = vcvt.s32.f32 %v969
      %972 = vmin.xlane.f32.xlu0 %v971
      %v973 = vpop.xlane.xlu0 %972
      %vm974 = vcmp.eq.f32.partialorder %v971, %v973
      %v975 = vsel %vm974, %v970, inf
      %976 = vmin.xlane.f32.xlu0 %v975
      %v977 = vpop.xlane.xlu0 %976
      %v978 = vcvt.f32.s32 %v977
      %v979 = vcvt.f32.s32 %v973
      %v980 = vshll.u32 %v979, 16
      %v981 = vadd.s32 %v980, %v978
      %vm982 = vcmp.eq.s32.totalorder %v369, %v966
      %vm983 = vcmp.eq.s32.totalorder %v369, %v981
      %v984 = vsel %vm982, -inf, %v940
      %v985 = vsel %vm983, -inf, %v941
      %v986 = vsel %vm277, %v984, -inf
      %987 = vmax.xlane.f32.xlu0 %v986
      %v988 = vpop.xlane.xlu0 %987
      %v989 = vsel %vm277, %v985, -inf
      %990 = vmax.xlane.f32.xlu0 %v989
      %v991 = vpop.xlane.xlu0 %990
      %vm992 = vcmp.ge.f32.partialorder %v984, %v988
      %vm993 = vcmp.ge.f32.partialorder %v985, %v991
      %v994 = vsel %vm992, %v369, 16
      %v995 = vsel %vm993, %v369, 16
      %v996 = vsel %vm277, %v994, 2147483647
      %v997 = vand.u32 %v996, 65535
      %v998 = vshra.s32 %v996, 16
      %v999 = vcvt.s32.f32 %v997
      %v1000 = vcvt.s32.f32 %v998
      %1001 = vmin.xlane.f32.xlu0 %v1000
      %v1002 = vpop.xlane.xlu0 %1001
      %vm1003 = vcmp.eq.f32.partialorder %v1000, %v1002
      %v1004 = vsel %vm1003, %v999, inf
      %1005 = vmin.xlane.f32.xlu0 %v1004
      %v1006 = vpop.xlane.xlu0 %1005
      %v1007 = vcvt.f32.s32 %v1006
      %v1008 = vcvt.f32.s32 %v1002
      %v1009 = vshll.u32 %v1008, 16
      %v1010 = vadd.s32 %v1009, %v1007
      %v1011 = vsel %vm277, %v995, 2147483647
      %v1012 = vand.u32 %v1011, 65535
      %v1013 = vshra.s32 %v1011, 16
      %v1014 = vcvt.s32.f32 %v1012
      %v1015 = vcvt.s32.f32 %v1013
      %1016 = vmin.xlane.f32.xlu0 %v1015
      %v1017 = vpop.xlane.xlu0 %1016
      %vm1018 = vcmp.eq.f32.partialorder %v1015, %v1017
      %v1019 = vsel %vm1018, %v1014, inf
      %1020 = vmin.xlane.f32.xlu0 %v1019
      %v1021 = vpop.xlane.xlu0 %1020
      %v1022 = vcvt.f32.s32 %v1021
      %v1023 = vcvt.f32.s32 %v1017
      %v1024 = vshll.u32 %v1023, 16
      %v1025 = vadd.s32 %v1024, %v1022
      %vm1026 = vcmp.eq.s32.totalorder %v369, %v1010
      %vm1027 = vcmp.eq.s32.totalorder %v369, %v1025
      %v1028 = vsel %vm1026, -inf, %v984
      %v1029 = vsel %vm1027, -inf, %v985
      %v1030 = vsel %vm277, %v1028, -inf
      %1031 = vmax.xlane.f32.xlu0 %v1030
      %v1032 = vpop.xlane.xlu0 %1031
      %v1033 = vsel %vm277, %v1029, -inf
      %1034 = vmax.xlane.f32.xlu0 %v1033
      %v1035 = vpop.xlane.xlu0 %1034
      %vm1036 = vcmp.ge.f32.partialorder %v1028, %v1032
      %vm1037 = vcmp.ge.f32.partialorder %v1029, %v1035
      %v1038 = vsel %vm1036, %v369, 16
      %v1039 = vsel %vm1037, %v369, 16
      %v1040 = vsel %vm277, %v1038, 2147483647
      %v1041 = vand.u32 %v1040, 65535
      %v1042 = vshra.s32 %v1040, 16
      %v1043 = vcvt.s32.f32 %v1041
      %v1044 = vcvt.s32.f32 %v1042
      %1045 = vmin.xlane.f32.xlu0 %v1044
      %v1046 = vpop.xlane.xlu0 %1045
      %vm1047 = vcmp.eq.f32.partialorder %v1044, %v1046
      %v1048 = vsel %vm1047, %v1043, inf
      %1049 = vmin.xlane.f32.xlu0 %v1048
      %v1050 = vpop.xlane.xlu0 %1049
      %v1051 = vcvt.f32.s32 %v1050
      %v1052 = vcvt.f32.s32 %v1046
      %v1053 = vshll.u32 %v1052, 16
      %v1054 = vadd.s32 %v1053, %v1051
      %v1055 = vsel %vm277, %v1039, 2147483647
      %v1056 = vand.u32 %v1055, 65535
      %v1057 = vshra.s32 %v1055, 16
      %v1058 = vcvt.s32.f32 %v1056
      %v1059 = vcvt.s32.f32 %v1057
      %1060 = vmin.xlane.f32.xlu0 %v1059
      %v1061 = vpop.xlane.xlu0 %1060
      %vm1062 = vcmp.eq.f32.partialorder %v1059, %v1061
      %v1063 = vsel %vm1062, %v1058, inf
      %1064 = vmin.xlane.f32.xlu0 %v1063
      %v1065 = vpop.xlane.xlu0 %1064
      %v1066 = vcvt.f32.s32 %v1065
      %v1067 = vcvt.f32.s32 %v1061
      %v1068 = vshll.u32 %v1067, 16
      %v1069 = vadd.s32 %v1068, %v1066
      %vm1070 = vcmask 7168
      %v1071 = vsel %vm1070, %v394, %v438
      %v1072 = vsel %vm1070, %v409, %v453
      %vm1073 = vcmask 15360
      %v1074 = vsel %vm1073, %v1071, %v482
      %v1075 = vsel %vm1073, %v1072, %v497
      %vm1076 = vcmask 23552
      %v1077 = vsel %vm1076, %v1074, %v526
      %v1078 = vsel %vm1076, %v1075, %v541
      %vm1079 = vcmask 31744
      %v1080 = vsel %vm1079, %v1077, %v570
      %v1081 = vsel %vm1079, %v1078, %v585
      %vm1082 = vcmask 39936
      %v1083 = vsel %vm1082, %v1080, %v614
      %v1084 = vsel %vm1082, %v1081, %v629
      %vm1085 = vcmask 48128
      %v1086 = vsel %vm1085, %v1083, %v658
      %v1087 = vsel %vm1085, %v1084, %v673
      %vm1088 = vcmask 56320
      %v1089 = vsel %vm1088, %v1086, %v702
      %v1090 = vsel %vm1088, %v1087, %v717
      %vm1091 = vcmask 64512
      %v1092 = vsel %vm1091, %v1089, %v746
      %v1093 = vsel %vm1091, %v1090, %v761
      %vm1094 = vcmask 72704
      %v1095 = vsel %vm1094, %v1092, %v790
      %v1096 = vsel %vm1094, %v1093, %v805
      %vm1097 = vcmask 80896
      %v1098 = vsel %vm1097, %v1095, %v834
      %v1099 = vsel %vm1097, %v1096, %v849
      %vm1100 = vcmask 89088
      %v1101 = vsel %vm1100, %v1098, %v878
      %v1102 = vsel %vm1100, %v1099, %v893
      %vm1103 = vcmask 97280
      %v1104 = vsel %vm1103, %v1101, %v922
      %v1105 = vsel %vm1103, %v1102, %v937
      %vm1106 = vcmask 105472
      %v1107 = vsel %vm1106, %v1104, %v966
      %v1108 = vsel %vm1106, %v1105, %v981
      %vm1109 = vcmask 113664
      %v1110 = vsel %vm1109, %v1107, %v1010
      %v1111 = vsel %vm1109, %v1108, %v1025
      %vm1112 = vcmask 121856
      %v1113 = vsel %vm1112, %v1110, %v1054
      %v1114 = vsel %vm1112, %v1111, %v1069
      %1115 = vst.msk [vmem:[%s237] sm:$0xff] %vm277, %v1113
      %1116 = vst.msk [vmem:[%s237 + $0x8] sm:$0xff] %vm277, %v1114
      %s1117 = smul.u32 2, %s19
      %p1118 = scmp.lt.s32.totalorder %s18, 1
      %s1119 = scalar_select %p1118, %s18, 1
      %p1120 = scmp.lt.s32.totalorder %s1117, 1
      %s1121 = scalar_select %p1120, %s1117, 1
      %s1122 = smul.addr %s1119, 2
      %s1123 = sadd.s32 %s1121, %s1122
      %s1124 = smul.addr %s1123, 8
      %s1125 = scalar_lea.vmem %s3, %s1124
      // Predicated region
      $region33: #{posdiffnet_forward.3} parent=31 // pred_check
        %p1126 = pneg %p126
      $region34: #{posdiffnet_forward.3} parent=31 // pred_check_branch
        %1128 = sbr.rel (%p1126) target = $region36
      $region35: #{posdiffnet_forward.3} parent=31 // pred_region
        %s1129 = smul.u32 2, %s19
      $region36: #{posdiffnet_forward.3} parent=31 // pred_fallthru
        _
    $region32: #{posdiffnet_forward.3} parent=5 // pred_fallthru
      _
    %p1130 = scmp.le.s32.totalorder 2, %s9
    // Predicated region
    $region37: #{posdiffnet_forward.3} parent=5 // pred_check
      %p1131 = pneg %p1130
    $region38: #{posdiffnet_forward.3} parent=5 // pred_check_branch
      %1133 = sbr.rel (%p1131) target = $region40
    $region39: #{posdiffnet_forward.3} parent=5 // pred_region
      %s1134 = ssub.s32 %s9, 2
      // Predicated region
      $region41: #{posdiffnet_forward.3} parent=39 // pred_check
        %p1135 = pneg %p132
      $region42: #{posdiffnet_forward.3} parent=39 // pred_check_branch
        %1137 = sbr.rel (%p1135) target = $region44
      $region43: #{posdiffnet_forward.3} parent=39 // pred_region
        %s1138 = smul.u32 2, %s21
        %p1139 = scmp.lt.s32.totalorder %s20, 1
        %s1140 = scalar_select %p1139, %s20, 1
        %p1141 = scmp.lt.s32.totalorder %s1138, 1
        %s1142 = scalar_select %p1141, %s1138, 1
        %s1143 = smul.addr %s1140, 2
        %s1144 = sadd.s32 %s1142, %s1143
        %s1145 = smul.addr %s1144, 8
        %s1146 = scalar_lea.vmem %s3, %s1145
      $region44: #{posdiffnet_forward.3} parent=39 // pred_fallthru
        _
    $region40: #{posdiffnet_forward.3} parent=5 // pred_fallthru
      _
  $region6: #{posdiffnet_forward.3} parent=0 // loop_footer
    %s13 = sadd.s32 1, %s9
  $region7: #{posdiffnet_forward.3} parent=0 // loop_footer_branch
    %8 = sbr.rel target = $region3
  $region8: #{posdiffnet_forward.3} parent=0 // loop_exit
    _

// kernel: posdiffnet_forward.4
$region0: #{posdiffnet_forward.4}
  #allocation0 [shape = 'u32[]', space=smem, size = 0x4, offset = 0x4, fixed_abs, tag = 'smem constant byte address 0x4 - core index']
  #allocation1 [shape = 'u32[144,128]{1,0:T(1,128)}', space=vmem, size = 0x12000, scoped, tag = 'internal scratch']
  %s0 = inlined_call_operand.vmem [shape: bf16[2,15,32,16], index: 0, kind: input, shape index: {}]
  %s1 = inlined_call_operand.vmem [shape: bf16[2,32,16], index: 1, kind: input, shape index: {}]
  %s2 = inlined_call_operand.vmem [shape: bf16[32,32], index: 2, kind: input, shape index: {}]
  %s3 = inlined_call_operand.vmem [shape: bf16[32,32], index: 3, kind: input, shape index: {}]
  %s4 = inlined_call_operand.vmem [shape: f32[2,1,32,2], index: 4, kind: output, shape index: {}]
  %s5 = sld [smem:[#allocation0]]
  $region49: #{posdiffnet_forward.4} parent=0
    _
  %s7 = ssub.s32 1, %s5
  %s8 = scalar_select 0, %s7, %s5
  loop: start=0, step=1, limit=4
  $region2: #{posdiffnet_forward.4} parent=0 // loop_pre_header
    _
  $region3: #{posdiffnet_forward.4} parent=0 // loop_header
    %s10 = sphi 0, %s14
    %p11 = scmp.ge.s32.totalorder %s10, 4
    %s17 = sphi 0, %s29
    %s18 = sphi 0, %s25
    %s19 = sphi 0, %s17
    %s20 = sphi 0, %s18
    %s21 = sphi 0, %s19
    %s22 = sphi 0, %s20
    %s34 = sphi 0, %s36
    %s37 = sphi 0, %s34
    %s38 = sphi 0, %s37
    %s54 = sphi 0, %s38
    %s62 = sphi 0, %s64
    %s65 = sphi 0, %s62
    %s66 = sphi 0, %s65
    %s82 = sphi 0, %s66
    %s86 = sphi 0, %s86
    %s88 = sphi 0, %s86
    %s89 = sphi 0, %s88
    %s103 = sphi 0, %s89
    %s107 = sphi 0, %s107
    %s109 = sphi 0, %s107
    %s110 = sphi 0, %s109
    %s124 = sphi 0, %s110
    %s132 = sphi 0, %s134
    %s135 = sphi 0, %s132
    %s136 = sphi 0, %s135
    %s152 = sphi 0, %s136
  $region4: #{posdiffnet_forward.4} parent=0 // loop_header_branch
    %13 = sbr.rel (%p11) target = $region8
  $region5: #{posdiffnet_forward.4} parent=0 // loop_body
    %s15 = ssub.s32 %s10, 1
    %s16 = ssub.s32 %s10, 2
    %s23 = sadd.s32 1, %s18
    %p24 = scmp.ge.s32.totalorder %s23, 1
    %s25 = scalar_select %p24, 0, %s23
    %s26 = sadd.s32 1, %s17
    %s27 = scalar_select %p24, %s26, %s17
    %p28 = scmp.ge.s32.totalorder %s27, 2
    %s29 = scalar_select %p28, 0, %s27
    %s30 = ssub.s32 %s17, %s29
    %s31 = ssub.s32 %s18, %s25
    %s32 = sor.u32 %s30, %s31
    %p33 = scmp.eq.s32.totalorder %s32, 0
    %s35 = sadd.s32 %s34, 1
    %s36 = scalar_select %p33, %s34, %s35
    %p39 = pneg %p33
    %p40 = scmp.eq.s32.totalorder %s10, 1
    %p41 = por %p39, %p40
    %p42 = scmp.ne.s32.totalorder %s34, %s37
    %p43 = scmp.eq.s32.totalorder %s10, 0
    %p44 = por %p42, %p43
    %p45 = scmp.ne.s32.totalorder %s34, %s37
    %p46 = scmp.eq.s32.totalorder %s15, 1
    %p47 = por %p45, %p46
    %p48 = scmp.ne.s32.totalorder %s37, %s38
    %p49 = scmp.eq.s32.totalorder %s15, 0
    %p50 = por %p48, %p49
    %p51 = scmp.ne.s32.totalorder %s37, %s38
    %p52 = scmp.eq.s32.totalorder %s16, 1
    %p53 = por %p51, %p52
    %p55 = scmp.ne.s32.totalorder %s38, %s54
    %p56 = scmp.eq.s32.totalorder %s16, 0
    %p57 = por %p55, %p56
    %s58 = ssub.s32 %s17, %s29
    %s59 = ssub.s32 %s18, %s25
    %s60 = sor.u32 %s58, %s59
    %p61 = scmp.eq.s32.totalorder %s60, 0
    %s63 = sadd.s32 %s62, 1
    %s64 = scalar_select %p61, %s62, %s63
    %p67 = pneg %p61
    %p68 = scmp.eq.s32.totalorder %s10, 1
    %p69 = por %p67, %p68
    %p70 = scmp.ne.s32.totalorder %s62, %s65
    %p71 = scmp.eq.s32.totalorder %s10, 0
    %p72 = por %p70, %p71
    %p73 = scmp.ne.s32.totalorder %s62, %s65
    %p74 = scmp.eq.s32.totalorder %s15, 1
    %p75 = por %p73, %p74
    %p76 = scmp.ne.s32.totalorder %s65, %s66
    %p77 = scmp.eq.s32.totalorder %s15, 0
    %p78 = por %p76, %p77
    %p79 = scmp.ne.s32.totalorder %s65, %s66
    %p80 = scmp.eq.s32.totalorder %s16, 1
    %p81 = por %p79, %p80
    %p83 = scmp.ne.s32.totalorder %s66, %s82
    %p84 = scmp.eq.s32.totalorder %s16, 0
    %p85 = por %p83, %p84
    %s87 = sadd.s32 %s86, 1
    %p90 = scmp.eq.s32.totalorder %s10, 1
    %p91 = scmp.ne.s32.totalorder %s86, %s88
    %p92 = scmp.eq.s32.totalorder %s10, 0
    %p93 = por %p91, %p92
    %p94 = scmp.ne.s32.totalorder %s86, %s88
    %p95 = scmp.eq.s32.totalorder %s15, 1
    %p96 = por %p94, %p95
    %p97 = scmp.ne.s32.totalorder %s88, %s89
    %p98 = scmp.eq.s32.totalorder %s15, 0
    %p99 = por %p97, %p98
    %p100 = scmp.ne.s32.totalorder %s88, %s89
    %p101 = scmp.eq.s32.totalorder %s16, 1
    %p102 = por %p100, %p101
    %p104 = scmp.ne.s32.totalorder %s89, %s103
    %p105 = scmp.eq.s32.totalorder %s16, 0
    %p106 = por %p104, %p105
    %s108 = sadd.s32 %s107, 1
    %p111 = scmp.eq.s32.totalorder %s10, 1
    %p112 = scmp.ne.s32.totalorder %s107, %s109
    %p113 = scmp.eq.s32.totalorder %s10, 0
    %p114 = por %p112, %p113
    %p115 = scmp.ne.s32.totalorder %s107, %s109
    %p116 = scmp.eq.s32.totalorder %s15, 1
    %p117 = por %p115, %p116
    %p118 = scmp.ne.s32.totalorder %s109, %s110
    %p119 = scmp.eq.s32.totalorder %s15, 0
    %p120 = por %p118, %p119
    %p121 = scmp.ne.s32.totalorder %s109, %s110
    %p122 = scmp.eq.s32.totalorder %s16, 1
    %p123 = por %p121, %p122
    %p125 = scmp.ne.s32.totalorder %s110, %s124
    %p126 = scmp.eq.s32.totalorder %s16, 0
    %p127 = por %p125, %p126
    %s128 = ssub.s32 %s17, %s29
    %s129 = ssub.s32 %s18, %s25
    %s130 = sor.u32 %s128, %s129
    %p131 = scmp.eq.s32.totalorder %s130, 0
    %s133 = sadd.s32 %s132, 1
    %s134 = scalar_select %p131, %s132, %s133
    %p137 = pneg %p131
    %p138 = scmp.eq.s32.totalorder %s10, 1
    %p139 = por %p137, %p138
    %p140 = scmp.ne.s32.totalorder %s132, %s135
    %p141 = scmp.eq.s32.totalorder %s10, 0
    %p142 = por %p140, %p141
    %p143 = scmp.ne.s32.totalorder %s132, %s135
    %p144 = scmp.eq.s32.totalorder %s15, 1
    %p145 = por %p143, %p144
    %p146 = scmp.ne.s32.totalorder %s135, %s136
    %p147 = scmp.eq.s32.totalorder %s15, 0
    %p148 = por %p146, %p147
    %p149 = scmp.ne.s32.totalorder %s135, %s136
    %p150 = scmp.eq.s32.totalorder %s16, 1
    %p151 = por %p149, %p150
    %p153 = scmp.ne.s32.totalorder %s136, %s152
    %p154 = scmp.eq.s32.totalorder %s16, 0
    %p155 = por %p153, %p154
    %p156 = scmp.le.s32.totalorder 1, %s10
    %p157 = scmp.lt.s32.totalorder %s10, 3
    %p158 = pnand %p156, %p157
    %p159 = pneg %p158
    // Predicated region
    $region9: #{posdiffnet_forward.4} parent=5 // pred_check
      _
    $region10: #{posdiffnet_forward.4} parent=5 // pred_check_branch
      %161 = sbr.rel (%p158) target = $region12
    $region11: #{posdiffnet_forward.4} parent=5 // pred_region
      %s162 = ssub.s32 %s10, 1
      // Predicated region
      $region13: #{posdiffnet_forward.4} parent=11 // pred_check
        %p163 = pneg %p99
      $region14: #{posdiffnet_forward.4} parent=11 // pred_check_branch
        %165 = sbr.rel (%p163) target = $region16
      $region15: #{posdiffnet_forward.4} parent=11 // pred_region
        _
      $region16: #{posdiffnet_forward.4} parent=11 // pred_fallthru
        _
      // Predicated region
      $region17: #{posdiffnet_forward.4} parent=11 // pred_check
        %p166 = pneg %p120
      $region18: #{posdiffnet_forward.4} parent=11 // pred_check_branch
        %168 = sbr.rel (%p166) target = $region20
      $region19: #{posdiffnet_forward.4} parent=11 // pred_region
        _
      $region20: #{posdiffnet_forward.4} parent=11 // pred_fallthru
        _
    $region12: #{posdiffnet_forward.4} parent=5 // pred_fallthru
      _
    %p169 = scmp.lt.s32.totalorder %s10, 2
    // Predicated region
    $region21: #{posdiffnet_forward.4} parent=5 // pred_check
      %p170 = pneg %p169
    $region22: #{posdiffnet_forward.4} parent=5 // pred_check_branch
      %172 = sbr.rel (%p170) target = $region24
    $region23: #{posdiffnet_forward.4} parent=5 // pred_region
      // Predicated region
      $region25: #{posdiffnet_forward.4} parent=23 // pred_check
        %p173 = pneg %p44
      $region26: #{posdiffnet_forward.4} parent=23 // pred_check_branch
        %175 = sbr.rel (%p173) target = $region28
      $region27: #{posdiffnet_forward.4} parent=23 // pred_region
        %p176 = scmp.lt.s32.totalorder %s17, 1
        %s177 = scalar_select %p176, %s17, 1
        %p178 = scmp.lt.s32.totalorder %s18, 0
        %s179 = scalar_select %p178, %s18, 0
        %s180 = smul.addr %s177, 60
        %s181 = sadd.s32 %s179, %s180
        %s182 = smul.addr %s181, 4
        %s183 = scalar_lea.vmem %s0, %s182
      $region28: #{posdiffnet_forward.4} parent=23 // pred_fallthru
        _
      // Predicated region
      $region29: #{posdiffnet_forward.4} parent=23 // pred_check
        %p184 = pneg %p72
      $region30: #{posdiffnet_forward.4} parent=23 // pred_check_branch
        %186 = sbr.rel (%p184) target = $region32
      $region31: #{posdiffnet_forward.4} parent=23 // pred_region
        %p187 = scmp.lt.s32.totalorder %s17, 1
        %s188 = scalar_select %p187, %s17, 1
        %p189 = scmp.lt.s32.totalorder %s18, 0
        %s190 = scalar_select %p189, %s18, 0
        %s191 = smul.addr %s188, 4
        %s192 = sadd.s32 %s190, %s191
        %s193 = smul.addr %s192, 4
        %s194 = scalar_lea.vmem %s1, %s193
      $region32: #{posdiffnet_forward.4} parent=23 // pred_fallthru
        _
    $region24: #{posdiffnet_forward.4} parent=5 // pred_fallthru
      _
    %p195 = scmp.le.s32.totalorder 1, %s10
    %p196 = scmp.lt.s32.totalorder %s10, 3
    %p197 = pnand %p195, %p196
    %p198 = pneg %p197
    // Predicated region
    $region33: #{posdiffnet_forward.4} parent=5 // pred_check
      _
    $region34: #{posdiffnet_forward.4} parent=5 // pred_check_branch
      %200 = sbr.rel (%p197) target = $region36
    $region35: #{posdiffnet_forward.4} parent=5 // pred_region
      %s201 = ssub.s32 %s10, 1
      %p202 = scmp.lt.s32.totalorder %s19, 1
      %s203 = scalar_select %p202, %s19, 1
      %p204 = scmp.lt.s32.totalorder %s20, 0
      %s205 = scalar_select %p204, %s20, 0
      %s206 = smul.addr %s203, 60
      %s207 = sadd.s32 %s205, %s206
      %s208 = smul.addr %s207, 4
      %s209 = scalar_lea.vmem %s0, %s208
      %p210 = pneg %p50
      %p211 = pneg %p47
      %p212 = scmp.lt.s32.totalorder %s19, 1
      %s213 = scalar_select %p212, %s19, 1
      %p214 = scmp.lt.s32.totalorder %s20, 0
      %s215 = scalar_select %p214, %s20, 0
      %s216 = smul.addr %s213, 4
      %s217 = sadd.s32 %s215, %s216
      %s218 = smul.addr %s217, 4
      %s219 = scalar_lea.vmem %s1, %s218
      %p220 = pneg %p78
      %p221 = pneg %p75
      %p222 = pneg %p99
      %p223 = pneg %p96
      %p224 = pneg %p120
      %p225 = pneg %p117
      %p226 = pneg %p148
      %p227 = pneg %p145
      %p228 = scmp.lt.s32.totalorder %s19, 1
      %s229 = scalar_select %p228, %s19, 1
      %p230 = scmp.lt.s32.totalorder %s20, 0
      %s231 = scalar_select %p230, %s20, 0
      %s232 = smul.addr %s231, 4
      %s233 = smul.addr %s229, 4
      %s234 = sadd.s32 %s232, %s233
      %s235 = smul.addr %s234, 8
      %s236 = scalar_lea.vmem %s4, %s235
      %p237 = scmp.lt.s32.totalorder %s19, 1
      %s238 = scalar_select %p237, %s19, 1
      %p239 = scmp.lt.s32.totalorder %s20, 0
      %s240 = scalar_select %p239, %s20, 0
      %s241 = smul.addr %s238, 60
      %s242 = sadd.s32 %s240, %s241
      %s243 = smul.addr %s242, 4
      %s244 = scalar_lea.vmem %s0, %s243
      %p245 = scmp.lt.s32.totalorder %s19, 1
      %s246 = scalar_select %p245, %s19, 1
      %p247 = scmp.lt.s32.totalorder %s20, 0
      %s248 = scalar_select %p247, %s20, 0
      %s249 = smul.addr %s246, 4
      %s250 = sadd.s32 %s248, %s249
      %s251 = smul.addr %s250, 4
      %s252 = scalar_lea.vmem %s1, %s251
      %p253 = scmp.lt.s32.totalorder %s19, 1
      %s254 = scalar_select %p253, %s19, 1
      %p255 = scmp.lt.s32.totalorder %s20, 0
      %s256 = scalar_select %p255, %s20, 0
      %s257 = smul.addr %s256, 4
      %s258 = smul.addr %s254, 4
      %s259 = sadd.s32 %s257, %s258
      %s260 = smul.addr %s259, 8
      %s261 = scalar_lea.vmem %s4, %s260
      %v263 = vld [vmem:[%s252] sm:$0xf]
      %v264 = vld [vmem:[%s252 + $0x4] sm:$0xf]
      %v265 = vld [vmem:[%s252 + $0x8] sm:$0xf]
      %v266 = vld [vmem:[%s252 + $0xc] sm:$0xf]
      %v267 = vld [vmem:[%s2] sm:$0xf]
      %v268 = vld [vmem:[%s2 + $0x4] sm:$0xf]
      %v269 = vld [vmem:[%s2 + $0x8] sm:$0xf]
      %v270 = vld [vmem:[%s2 + $0xc] sm:$0xf]
      %v271 = vld [vmem:[%s3] sm:$0xf]
      %v272 = vld [vmem:[%s3 + $0x4] sm:$0xf]
      %v273 = vld [vmem:[%s3 + $0x8] sm:$0xf]
      %v274 = vld [vmem:[%s3 + $0xc] sm:$0xf]
      %v279 = vunpack.c.l.b16 %v271
      %v280 = vunpack.c.l.b16 %v272
      %v281 = vunpack.c.l.b16 %v273
      %v282 = vunpack.c.l.b16 %v274
      %v283 = vpack.c.b16 %v280, %v279
      %v284 = vpack.c.b16 %v282, %v281
      %v289 = vunpack.c.l.b16 %v263
      %v290 = vunpack.c.l.b16 %v264
      %v291 = vunpack.c.l.b16 %v265
      %v292 = vunpack.c.l.b16 %v266
      %v293 = vpack.c.b16 %v290, %v289
      %v294 = vpack.c.b16 %v292, %v291
      %vm297 = vcmask 261120
      %v299 = vsel %vm297, %v283, 0
      %v302 = vsel %vm297, %v284, 0
      %304 = vmatprep.subr.bf16.mxu0 0
      %305 = vmatpush1.bf16.msra.mxu0 %v293
      %306 = vmatprep.subr.bf16.mxu0 0
      %307 = vmatpush1.bf16.msra.mxu0 %v294
      %308 = vmatprep.subr.bf16.mxu0 0
      %309 = vmatpush1.bf16.msra.mxu0 0
      %310 = vmatprep.subr.bf16.mxu0 0
      %311 = vmatpush1.bf16.msra.mxu0 0
      %312 = vmatprep.subr.bf16.mxu0 0
      %313 = vmatpush1.bf16.msra.mxu0 0
      %314 = vmatprep.subr.bf16.mxu0 0
      %315 = vmatpush1.bf16.msra.mxu0 0
      %316 = vmatprep.subr.bf16.mxu0 0
      %317 = vmatpush1.bf16.msra.mxu0 0
      %318 = vmatprep.subr.bf16.mxu0 0
      %319 = vmatpush1.bf16.msra.mxu0 0
      %320 = vmatprep.subr.bf16.mxu0 0
      %321 = vmatpush1.bf16.msra.mxu0 0
      %322 = vmatprep.subr.bf16.mxu0 0
      %323 = vmatpush1.bf16.msra.mxu0 0
      %324 = vmatprep.subr.bf16.mxu0 0
      %325 = vmatpush1.bf16.msra.mxu0 0
      %326 = vmatprep.subr.bf16.mxu0 0
      %327 = vmatpush1.bf16.msra.mxu0 0
      %328 = vmatprep.subr.bf16.mxu0 0
      %329 = vmatpush1.bf16.msra.mxu0 0
      %330 = vmatprep.subr.bf16.mxu0 0
      %331 = vmatpush1.bf16.msra.mxu0 0
      %332 = vmatprep.subr.bf16.mxu0 0
      %333 = vmatpush1.bf16.msra.mxu0 0
      %334 = vmatprep.subr.bf16.mxu0 0
      %335 = vmatpush1.bf16.msra.mxu0 0
      %336 = vmatprep.mubr.bf16.mxu0 0
      %337 = vmatmul.mubr.bf16.gmra.mrb[0].mxu0 %v299
      %v338 = vpop.f32.mrb[0].mxu0
      %v339 = vadd.f32 0.0, %v338
      %v340 = vpop.f32.mrb[0].mxu0
      %v341 = vpop.f32.mrb[0].mxu0
      %v342 = vadd.f32 0.0, %v341
      %v343 = vpop.f32.mrb[0].mxu0
      %344 = vmatprep.mubr.bf16.mxu0 0
      %345 = vmatmul.mubr.bf16.gmra.mrb[0].mxu0 %v302
      %v346 = vpop.f32.mrb[0].mxu0
      %v347 = vadd.f32 0.0, %v346
      %v348 = vpop.f32.mrb[0].mxu0
      %v349 = vpop.f32.mrb[0].mxu0
      %v350 = vadd.f32 0.0, %v349
      %v351 = vpop.f32.mrb[0].mxu0
      %352 = vdwg.mxu0
      %v353 = vld [vmem:[%s244] sm:$0xf]
      %v354 = vld [vmem:[%s244 + $0x4] sm:$0xf]
      %v355 = vld [vmem:[%s244 + $0x8] sm:$0xf]
      %v356 = vld [vmem:[%s244 + $0xc] sm:$0xf]
      %v361 = vunpack.c.l.b16 %v267
      %v362 = vunpack.c.l.b16 %v268
      %v363 = vunpack.c.l.b16 %v269
      %v364 = vunpack.c.l.b16 %v270
      %v365 = vpack.c.b16 %v362, %v361
      %v366 = vpack.c.b16 %v364, %v363
      %v371 = vunpack.c.l.b16 %v353
      %v372 = vunpack.c.l.b16 %v354
      %v373 = vunpack.c.l.b16 %v355
      %v374 = vunpack.c.l.b16 %v356
      %v375 = vpack.c.b16 %v372, %v371
      %v376 = vpack.c.b16 %v374, %v373
      %v380 = vsel %vm297, %v365, 0
      %v383 = vsel %vm297, %v366, 0
      %385 = vmatprep.subr.bf16.mxu0 0
      %386 = vmatpush1.bf16.msra.mxu0 %v375
      %387 = vmatprep.subr.bf16.mxu0 0
      %388 = vmatpush1.bf16.msra.mxu0 %v376
      %389 = vmatprep.subr.bf16.mxu0 0
      %390 = vmatpush1.bf16.msra.mxu0 0
      %391 = vmatprep.subr.bf16.mxu0 0
      %392 = vmatpush1.bf16.msra.mxu0 0
      %393 = vmatprep.subr.bf16.mxu0 0
      %394 = vmatpush1.bf16.msra.mxu0 0
      %395 = vmatprep.subr.bf16.mxu0 0
      %396 = vmatpush1.bf16.msra.mxu0 0
      %397 = vmatprep.subr.bf16.mxu0 0
      %398 = vmatpush1.bf16.msra.mxu0 0
      %399 = vmatprep.subr.bf16.mxu0 0
      %400 = vmatpush1.bf16.msra.mxu0 0
      %401 = vmatprep.subr.bf16.mxu0 0
      %402 = vmatpush1.bf16.msra.mxu0 0
      %403 = vmatprep.subr.bf16.mxu0 0
      %404 = vmatpush1.bf16.msra.mxu0 0
      %405 = vmatprep.subr.bf16.mxu0 0
      %406 = vmatpush1.bf16.msra.mxu0 0
      %407 = vmatprep.subr.bf16.mxu0 0
      %408 = vmatpush1.bf16.msra.mxu0 0
      %409 = vmatprep.subr.bf16.mxu0 0
      %410 = vmatpush1.bf16.msra.mxu0 0
      %411 = vmatprep.subr.bf16.mxu0 0
      %412 = vmatpush1.bf16.msra.mxu0 0
      %413 = vmatprep.subr.bf16.mxu0 0
      %414 = vmatpush1.bf16.msra.mxu0 0
      %415 = vmatprep.subr.bf16.mxu0 0
      %416 = vmatpush1.bf16.msra.mxu0 0
      %417 = vmatprep.mubr.bf16.mxu0 0
      %418 = vmatmul.mubr.bf16.gmra.mrb[0].mxu0 %v380
      %v419 = vpop.f32.mrb[0].mxu0
      %v420 = vadd.f32 %v339, %v419
      %v421 = vpop.f32.mrb[0].mxu0
      %v422 = vpop.f32.mrb[0].mxu0
      %v423 = vadd.f32 %v342, %v422
      %v424 = vpop.f32.mrb[0].mxu0
      %425 = vmatprep.mubr.bf16.mxu0 0
      %426 = vmatmul.mubr.bf16.gmra.mrb[0].mxu0 %v383
      %v427 = vpop.f32.mrb[0].mxu0
      %v428 = vadd.f32 %v347, %v427
      %v429 = vpop.f32.mrb[0].mxu0
      %v430 = vpop.f32.mrb[0].mxu0
      %v431 = vadd.f32 %v350, %v430
      %v432 = vpop.f32.mrb[0].mxu0
      %433 = vdwg.mxu0
      %v434 = vadd.f32 %v420, 0.0
      %v435 = vadd.f32 %v423, 0.0
      %v436 = vadd.f32 %v428, 0.0
      %v437 = vadd.f32 %v431, 0.0
      %v438 = vmul.f32 %v420, %v420
      %v439 = vmul.f32 %v423, %v423
      %v440 = vmul.f32 %v428, %v428
      %v441 = vmul.f32 %v431, %v431
      %v442 = vadd.f32 %v438, 0.0
      %v443 = vadd.f32 %v439, 0.0
      %v444 = vadd.f32 %v440, 0.0
      %v445 = vadd.f32 %v441, 0.0
      %s446 = scalar_lea.vmem %s244, 16
      %v447 = vld [vmem:[%s446] sm:$0xf]
      %v448 = vld [vmem:[%s446 + $0x4] sm:$0xf]
      %v449 = vld [vmem:[%s446 + $0x8] sm:$0xf]
      %v450 = vld [vmem:[%s446 + $0xc] sm:$0xf]
      %v455 = vunpack.c.l.b16 %v447
      %v456 = vunpack.c.l.b16 %v448
      %v457 = vunpack.c.l.b16 %v449
      %v458 = vunpack.c.l.b16 %v450
      %v459 = vpack.c.b16 %v456, %v455
      %v460 = vpack.c.b16 %v458, %v457
      %463 = vmatprep.subr.bf16.mxu0 0
      %464 = vmatpush1.bf16.msra.mxu0 %v459
      %465 = vmatprep.subr.bf16.mxu0 0
      %466 = vmatpush1.bf16.msra.mxu0 %v460
      %467 = vmatprep.subr.bf16.mxu0 0
      %468 = vmatpush1.bf16.msra.mxu0 0
      %469 = vmatprep.subr.bf16.mxu0 0
      %470 = vmatpush1.bf16.msra.mxu0 0
      %471 = vmatprep.subr.bf16.mxu0 0
      %472 = vmatpush1.bf16.msra.mxu0 0
      %473 = vmatprep.subr.bf16.mxu0 0
      %474 = vmatpush1.bf16.msra.mxu0 0
      %475 = vmatprep.subr.bf16.mxu0 0
      %476 = vmatpush1.bf16.msra.mxu0 0
      %477 = vmatprep.subr.bf16.mxu0 0
      %478 = vmatpush1.bf16.msra.mxu0 0
      %479 = vmatprep.subr.bf16.mxu0 0
      %480 = vmatpush1.bf16.msra.mxu0 0
      %481 = vmatprep.subr.bf16.mxu0 0
      %482 = vmatpush1.bf16.msra.mxu0 0
      %483 = vmatprep.subr.bf16.mxu0 0
      %484 = vmatpush1.bf16.msra.mxu0 0
      %485 = vmatprep.subr.bf16.mxu0 0
      %486 = vmatpush1.bf16.msra.mxu0 0
      %487 = vmatprep.subr.bf16.mxu0 0
      %488 = vmatpush1.bf16.msra.mxu0 0
      %489 = vmatprep.subr.bf16.mxu0 0
      %490 = vmatpush1.bf16.msra.mxu0 0
      %491 = vmatprep.subr.bf16.mxu0 0
      %492 = vmatpush1.bf16.msra.mxu0 0
      %493 = vmatprep.subr.bf16.mxu0 0
      %494 = vmatpush1.bf16.msra.mxu0 0
      %495 = vmatprep.mubr.bf16.mxu0 0
      %496 = vmatmul.mubr.bf16.gmra.mrb[0].mxu0 %v380
      %v497 = vpop.f32.mrb[0].mxu0
      %v498 = vadd.f32 %v339, %v497
      %v499 = vpop.f32.mrb[0].mxu0
      %v500 = vpop.f32.mrb[0].mxu0
      %v501 = vadd.f32 %v342, %v500
      %v502 = vpop.f32.mrb[0].mxu0
      %503 = vmatprep.mubr.bf16.mxu0 0
      %504 = vmatmul.mubr.bf16.gmra.mrb[0].mxu0 %v383
      %v505 = vpop.f32.mrb[0].mxu0
      %v506 = vadd.f32 %v347, %v505
      %v507 = vpop.f32.mrb[0].mxu0
      %v508 = vpop.f32.mrb[0].mxu0
      %v509 = vadd.f32 %v350, %v508
      %v510 = vpop.f32.mrb[0].mxu0
      %511 = vdwg.mxu0
      %v512 = vadd.f32 %v434, %v498
      %v513 = vadd.f32 %v435, %v501
      %v514 = vadd.f32 %v436, %v506
      %v515 = vadd.f32 %v437, %v509
      %v516 = vmul.f32 %v498, %v498
      %v517 = vmul.f32 %v501, %v501
      %v518 = vmul.f32 %v506, %v506
      %v519 = vmul.f32 %v509, %v509
      %v520 = vadd.f32 %v442, %v516
      %v521 = vadd.f32 %v443, %v517
      %v522 = vadd.f32 %v444, %v518
      %v523 = vadd.f32 %v445, %v519
      %s524 = scalar_lea.vmem %s244, 32
      %v525 = vld [vmem:[%s524] sm:$0xf]
      %v526 = vld [vmem:[%s524 + $0x4] sm:$0xf]
      %v527 = vld [vmem:[%s524 + $0x8] sm:$0xf]
      %v528 = vld [vmem:[%s524 + $0xc] sm:$0xf]
      %v533 = vunpack.c.l.b16 %v525
      %v534 = vunpack.c.l.b16 %v526
      %v535 = vunpack.c.l.b16 %v527
      %v536 = vunpack.c.l.b16 %v528
      %v537 = vpack.c.b16 %v534, %v533
      %v538 = vpack.c.b16 %v536, %v535
      %541 = vmatprep.subr.bf16.mxu0 0
      %542 = vmatpush1.bf16.msra.mxu0 %v537
      %543 = vmatprep.subr.bf16.mxu0 0
      %544 = vmatpush1.bf16.msra.mxu0 %v538
      %545 = vmatprep.subr.bf16.mxu0 0
      %546 = vmatpush1.bf16.msra.mxu0 0
      %547 = vmatprep.subr.bf16.mxu0 0
      %548 = vmatpush1.bf16.msra.mxu0 0
      %549 = vmatprep.subr.bf16.mxu0 0
      %550 = vmatpush1.bf16.msra.mxu0 0
      %551 = vmatprep.subr.bf16.mxu0 0
      %552 = vmatpush1.bf16.msra.mxu0 0
      %553 = vmatprep.subr.bf16.mxu0 0
      %554 = vmatpush1.bf16.msra.mxu0 0
      %555 = vmatprep.subr.bf16.mxu0 0
      %556 = vmatpush1.bf16.msra.mxu0 0
      %557 = vmatprep.subr.bf16.mxu0 0
      %558 = vmatpush1.bf16.msra.mxu0 0
      %559 = vmatprep.subr.bf16.mxu0 0
      %560 = vmatpush1.bf16.msra.mxu0 0
      %561 = vmatprep.subr.bf16.mxu0 0
      %562 = vmatpush1.bf16.msra.mxu0 0
      %563 = vmatprep.subr.bf16.mxu0 0
      %564 = vmatpush1.bf16.msra.mxu0 0
      %565 = vmatprep.subr.bf16.mxu0 0
      %566 = vmatpush1.bf16.msra.mxu0 0
      %567 = vmatprep.subr.bf16.mxu0 0
      %568 = vmatpush1.bf16.msra.mxu0 0
      %569 = vmatprep.subr.bf16.mxu0 0
      %570 = vmatpush1.bf16.msra.mxu0 0
      %571 = vmatprep.subr.bf16.mxu0 0
      %572 = vmatpush1.bf16.msra.mxu0 0
      %573 = vmatprep.mubr.bf16.mxu0 0
      %574 = vmatmul.mubr.bf16.gmra.mrb[0].mxu0 %v380
      %v575 = vpop.f32.mrb[0].mxu0
      %v576 = vadd.f32 %v339, %v575
      %v577 = vpop.f32.mrb[0].mxu0
      %v578 = vpop.f32.mrb[0].mxu0
      %v579 = vadd.f32 %v342, %v578
      %v580 = vpop.f32.mrb[0].mxu0
      %581 = vmatprep.mubr.bf16.mxu0 0
      %582 = vmatmul.mubr.bf16.gmra.mrb[0].mxu0 %v383
      %v583 = vpop.f32.mrb[0].mxu0
      %v584 = vadd.f32 %v347, %v583
      %v585 = vpop.f32.mrb[0].mxu0
      %v586 = vpop.f32.mrb[0].mxu0
      %v587 = vadd.f32 %v350, %v586
      %v588 = vpop.f32.mrb[0].mxu0
      %589 = vdwg.mxu0
      %v590 = vadd.f32 %v512, %v576
      %v591 = vadd.f32 %v513, %v579
      %v592 = vadd.f32 %v514, %v584
      %v593 = vadd.f32 %v515, %v587
      %v594 = vmul.f32 %v576, %v576
      %v595 = vmul.f32 %v579, %v579
      %v596 = vmul.f32 %v584, %v584
      %v597 = vmul.f32 %v587, %v587
      %v598 = vadd.f32 %v520, %v594
      %v599 = vadd.f32 %v521, %v595
      %v600 = vadd.f32 %v522, %v596
      %v601 = vadd.f32 %v523, %v597
      %s602 = scalar_lea.vmem %s244, 48
      %v603 = vld [vmem:[%s602] sm:$0xf]
      %v604 = vld [vmem:[%s602 + $0x4] sm:$0xf]
      %v605 = vld [vmem:[%s602 + $0x8] sm:$0xf]
      %v606 = vld [vmem:[%s602 + $0xc] sm:$0xf]
      %v611 = vunpack.c.l.b16 %v603
      %v612 = vunpack.c.l.b16 %v604
      %v613 = vunpack.c.l.b16 %v605
      %v614 = vunpack.c.l.b16 %v606
      %v615 = vpack.c.b16 %v612, %v611
      %v616 = vpack.c.b16 %v614, %v613
      %619 = vmatprep.subr.bf16.mxu0 0
      %620 = vmatpush1.bf16.msra.mxu0 %v615
      %621 = vmatprep.subr.bf16.mxu0 0
      %622 = vmatpush1.bf16.msra.mxu0 %v616
      %623 = vmatprep.subr.bf16.mxu0 0
      %624 = vmatpush1.bf16.msra.mxu0 0
      %625 = vmatprep.subr.bf16.mxu0 0
      %626 = vmatpush1.bf16.msra.mxu0 0
      %627 = vmatprep.subr.bf16.mxu0 0
      %628 = vmatpush1.bf16.msra.mxu0 0
      %629 = vmatprep.subr.bf16.mxu0 0
      %630 = vmatpush1.bf16.msra.mxu0 0
      %631 = vmatprep.subr.bf16.mxu0 0
      %632 = vmatpush1.bf16.msra.mxu0 0
      %633 = vmatprep.subr.bf16.mxu0 0
      %634 = vmatpush1.bf16.msra.mxu0 0
      %635 = vmatprep.subr.bf16.mxu0 0
      %636 = vmatpush1.bf16.msra.mxu0 0
      %637 = vmatprep.subr.bf16.mxu0 0
      %638 = vmatpush1.bf16.msra.mxu0 0
      %639 = vmatprep.subr.bf16.mxu0 0
      %640 = vmatpush1.bf16.msra.mxu0 0
      %641 = vmatprep.subr.bf16.mxu0 0
      %642 = vmatpush1.bf16.msra.mxu0 0
      %643 = vmatprep.subr.bf16.mxu0 0
      %644 = vmatpush1.bf16.msra.mxu0 0
      %645 = vmatprep.subr.bf16.mxu0 0
      %646 = vmatpush1.bf16.msra.mxu0 0
      %647 = vmatprep.subr.bf16.mxu0 0
      %648 = vmatpush1.bf16.msra.mxu0 0
      %649 = vmatprep.subr.bf16.mxu0 0
      %650 = vmatpush1.bf16.msra.mxu0 0
      %651 = vmatprep.mubr.bf16.mxu0 0
      %652 = vmatmul.mubr.bf16.gmra.mrb[0].mxu0 %v380
      %v653 = vpop.f32.mrb[0].mxu0
      %v654 = vadd.f32 %v339, %v653
      %v655 = vpop.f32.mrb[0].mxu0
      %v656 = vpop.f32.mrb[0].mxu0
      %v657 = vadd.f32 %v342, %v656
      %v658 = vpop.f32.mrb[0].mxu0
      %659 = vmatprep.mubr.bf16.mxu0 0
      %660 = vmatmul.mubr.bf16.gmra.mrb[0].mxu0 %v383
      %v661 = vpop.f32.mrb[0].mxu0
      %v662 = vadd.f32 %v347, %v661
      %v663 = vpop.f32.mrb[0].mxu0
      %v664 = vpop.f32.mrb[0].mxu0
      %v665 = vadd.f32 %v350, %v664
      %v666 = vpop.f32.mrb[0].mxu0
      %667 = vdwg.mxu0
      %v668 = vadd.f32 %v590, %v654
      %v669 = vadd.f32 %v591, %v657
      %v670 = vadd.f32 %v592, %v662
      %v671 = vadd.f32 %v593, %v665
      %v672 = vmul.f32 %v654, %v654
      %v673 = vmul.f32 %v657, %v657
      %v674 = vmul.f32 %v662, %v662
      %v675 = vmul.f32 %v665, %v665
      %v676 = vadd.f32 %v598, %v672
      %v677 = vadd.f32 %v599, %v673
      %v678 = vadd.f32 %v600, %v674
      %v679 = vadd.f32 %v601, %v675
      %s680 = scalar_lea.vmem %s244, 64
      %v681 = vld [vmem:[%s680] sm:$0xf]
      %v682 = vld [vmem:[%s680 + $0x4] sm:$0xf]
      %v683 = vld [vmem:[%s680 + $0x8] sm:$0xf]
      %v684 = vld [vmem:[%s680 + $0xc] sm:$0xf]
      %v689 = vunpack.c.l.b16 %v681
      %v690 = vunpack.c.l.b16 %v682
      %v691 = vunpack.c.l.b16 %v683
      %v692 = vunpack.c.l.b16 %v684
      %v693 = vpack.c.b16 %v690, %v689
      %v694 = vpack.c.b16 %v692, %v691
      %697 = vmatprep.subr.bf16.mxu0 0
      %698 = vmatpush1.bf16.msra.mxu0 %v693
      %699 = vmatprep.subr.bf16.mxu0 0
      %700 = vmatpush1.bf16.msra.mxu0 %v694
      %701 = vmatprep.subr.bf16.mxu0 0
      %702 = vmatpush1.bf16.msra.mxu0 0
      %703 = vmatprep.subr.bf16.mxu0 0
      %704 = vmatpush1.bf16.msra.mxu0 0
      %705 = vmatprep.subr.bf16.mxu0 0
      %706 = vmatpush1.bf16.msra.mxu0 0
      %707 = vmatprep.subr.bf16.mxu0 0
      %708 = vmatpush1.bf16.msra.mxu0 0
      %709 = vmatprep.subr.bf16.mxu0 0
      %710 = vmatpush1.bf16.msra.mxu0 0
      %711 = vmatprep.subr.bf16.mxu0 0
      %712 = vmatpush1.bf16.msra.mxu0 0
      %713 = vmatprep.subr.bf16.mxu0 0
      %714 = vmatpush1.bf16.msra.mxu0 0
      %715 = vmatprep.subr.bf16.mxu0 0
      %716 = vmatpush1.bf16.msra.mxu0 0
      %717 = vmatprep.subr.bf16.mxu0 0
      %718 = vmatpush1.bf16.msra.mxu0 0
      %719 = vmatprep.subr.bf16.mxu0 0
      %720 = vmatpush1.bf16.msra.mxu0 0
      %721 = vmatprep.subr.bf16.mxu0 0
      %722 = vmatpush1.bf16.msra.mxu0 0
      %723 = vmatprep.subr.bf16.mxu0 0
      %724 = vmatpush1.bf16.msra.mxu0 0
      %725 = vmatprep.subr.bf16.mxu0 0
      %726 = vmatpush1.bf16.msra.mxu0 0
      %727 = vmatprep.subr.bf16.mxu0 0
      %728 = vmatpush1.bf16.msra.mxu0 0
      %729 = vmatprep.mubr.bf16.mxu0 0
      %730 = vmatmul.mubr.bf16.gmra.mrb[0].mxu0 %v380
      %v731 = vpop.f32.mrb[0].mxu0
      %v732 = vadd.f32 %v339, %v731
      %v733 = vpop.f32.mrb[0].mxu0
      %v734 = vpop.f32.mrb[0].mxu0
      %v735 = vadd.f32 %v342, %v734
      %v736 = vpop.f32.mrb[0].mxu0
      %737 = vmatprep.mubr.bf16.mxu0 0
      %738 = vmatmul.mubr.bf16.gmra.mrb[0].mxu0 %v383
      %v739 = vpop.f32.mrb[0].mxu0
      %v740 = vadd.f32 %v347, %v739
      %v741 = vpop.f32.mrb[0].mxu0
      %v742 = vpop.f32.mrb[0].mxu0
      %v743 = vadd.f32 %v350, %v742
      %v744 = vpop.f32.mrb[0].mxu0
      %745 = vdwg.mxu0
      %v746 = vadd.f32 %v668, %v732
      %v747 = vadd.f32 %v669, %v735
      %v748 = vadd.f32 %v670, %v740
      %v749 = vadd.f32 %v671, %v743
      %v750 = vmul.f32 %v732, %v732
      %v751 = vmul.f32 %v735, %v735
      %v752 = vmul.f32 %v740, %v740
      %v753 = vmul.f32 %v743, %v743
      %v754 = vadd.f32 %v676, %v750
      %v755 = vadd.f32 %v677, %v751
      %v756 = vadd.f32 %v678, %v752
      %v757 = vadd.f32 %v679, %v753
      %s758 = scalar_lea.vmem %s244, 80
      %v759 = vld [vmem:[%s758] sm:$0xf]
      %v760 = vld [vmem:[%s758 + $0x4] sm:$0xf]
      %v761 = vld [vmem:[%s758 + $0x8] sm:$0xf]
      %v762 = vld [vmem:[%s758 + $0xc] sm:$0xf]
      %v767 = vunpack.c.l.b16 %v759
      %v768 = vunpack.c.l.b16 %v760
      %v769 = vunpack.c.l.b16 %v761
      %v770 = vunpack.c.l.b16 %v762
      %v771 = vpack.c.b16 %v768, %v767
      %v772 = vpack.c.b16 %v770, %v769
      %775 = vmatprep.subr.bf16.mxu0 0
      %776 = vmatpush1.bf16.msra.mxu0 %v771
      %777 = vmatprep.subr.bf16.mxu0 0
      %778 = vmatpush1.bf16.msra.mxu0 %v772
      %779 = vmatprep.subr.bf16.mxu0 0
      %780 = vmatpush1.bf16.msra.mxu0 0
      %781 = vmatprep.subr.bf16.mxu0 0
      %782 = vmatpush1.bf16.msra.mxu0 0
      %783 = vmatprep.subr.bf16.mxu0 0
      %784 = vmatpush1.bf16.msra.mxu0 0
      %785 = vmatprep.subr.bf16.mxu0 0
      %786 = vmatpush1.bf16.msra.mxu0 0
      %787 = vmatprep.subr.bf16.mxu0 0
      %788 = vmatpush1.bf16.msra.mxu0 0
      %789 = vmatprep.subr.bf16.mxu0 0
      %790 = vmatpush1.bf16.msra.mxu0 0
      %791 = vmatprep.subr.bf16.mxu0 0
      %792 = vmatpush1.bf16.msra.mxu0 0
      %793 = vmatprep.subr.bf16.mxu0 0
      %794 = vmatpush1.bf16.msra.mxu0 0
      %795 = vmatprep.subr.bf16.mxu0 0
      %796 = vmatpush1.bf16.msra.mxu0 0
      %797 = vmatprep.subr.bf16.mxu0 0
      %798 = vmatpush1.bf16.msra.mxu0 0
      %799 = vmatprep.subr.bf16.mxu0 0
      %800 = vmatpush1.bf16.msra.mxu0 0
      %801 = vmatprep.subr.bf16.mxu0 0
      %802 = vmatpush1.bf16.msra.mxu0 0
      %803 = vmatprep.subr.bf16.mxu0 0
      %804 = vmatpush1.bf16.msra.mxu0 0
      %805 = vmatprep.subr.bf16.mxu0 0
      %806 = vmatpush1.bf16.msra.mxu0 0
      %807 = vmatprep.mubr.bf16.mxu0 0
      %808 = vmatmul.mubr.bf16.gmra.mrb[0].mxu0 %v380
      %v809 = vpop.f32.mrb[0].mxu0
      %v810 = vadd.f32 %v339, %v809
      %v811 = vpop.f32.mrb[0].mxu0
      %v812 = vpop.f32.mrb[0].mxu0
      %v813 = vadd.f32 %v342, %v812
      %v814 = vpop.f32.mrb[0].mxu0
      %815 = vmatprep.mubr.bf16.mxu0 0
      %816 = vmatmul.mubr.bf16.gmra.mrb[0].mxu0 %v383
      %v817 = vpop.f32.mrb[0].mxu0
      %v818 = vadd.f32 %v347, %v817
      %v819 = vpop.f32.mrb[0].mxu0
      %v820 = vpop.f32.mrb[0].mxu0
      %v821 = vadd.f32 %v350, %v820
      %v822 = vpop.f32.mrb[0].mxu0
      %823 = vdwg.mxu0
      %v824 = vadd.f32 %v746, %v810
      %v825 = vadd.f32 %v747, %v813
      %v826 = vadd.f32 %v748, %v818
      %v827 = vadd.f32 %v749, %v821
      %v828 = vmul.f32 %v810, %v810
      %v829 = vmul.f32 %v813, %v813
      %v830 = vmul.f32 %v818, %v818
      %v831 = vmul.f32 %v821, %v821
      %v832 = vadd.f32 %v754, %v828
      %v833 = vadd.f32 %v755, %v829
      %v834 = vadd.f32 %v756, %v830
      %v835 = vadd.f32 %v757, %v831
      %s836 = scalar_lea.vmem %s244, 96
      %v837 = vld [vmem:[%s836] sm:$0xf]
      %v838 = vld [vmem:[%s836 + $0x4] sm:$0xf]
      %v839 = vld [vmem:[%s836 + $0x8] sm:$0xf]
      %v840 = vld [vmem:[%s836 + $0xc] sm:$0xf]
      %v845 = vunpack.c.l.b16 %v837
      %v846 = vunpack.c.l.b16 %v838
      %v847 = vunpack.c.l.b16 %v839
      %v848 = vunpack.c.l.b16 %v840
      %v849 = vpack.c.b16 %v846, %v845
      %v850 = vpack.c.b16 %v848, %v847
      %853 = vmatprep.subr.bf16.mxu0 0
      %854 = vmatpush1.bf16.msra.mxu0 %v849
      %855 = vmatprep.subr.bf16.mxu0 0
      %856 = vmatpush1.bf16.msra.mxu0 %v850
      %857 = vmatprep.subr.bf16.mxu0 0
      %858 = vmatpush1.bf16.msra.mxu0 0
      %859 = vmatprep.subr.bf16.mxu0 0
      %860 = vmatpush1.bf16.msra.mxu0 0
      %861 = vmatprep.subr.bf16.mxu0 0
      %862 = vmatpush1.bf16.msra.mxu0 0
      %863 = vmatprep.subr.bf16.mxu0 0
      %864 = vmatpush1.bf16.msra.mxu0 0
      %865 = vmatprep.subr.bf16.mxu0 0
      %866 = vmatpush1.bf16.msra.mxu0 0
      %867 = vmatprep.subr.bf16.mxu0 0
      %868 = vmatpush1.bf16.msra.mxu0 0
      %869 = vmatprep.subr.bf16.mxu0 0
      %870 = vmatpush1.bf16.msra.mxu0 0
      %871 = vmatprep.subr.bf16.mxu0 0
      %872 = vmatpush1.bf16.msra.mxu0 0
      %873 = vmatprep.subr.bf16.mxu0 0
      %874 = vmatpush1.bf16.msra.mxu0 0
      %875 = vmatprep.subr.bf16.mxu0 0
      %876 = vmatpush1.bf16.msra.mxu0 0
      %877 = vmatprep.subr.bf16.mxu0 0
      %878 = vmatpush1.bf16.msra.mxu0 0
      %879 = vmatprep.subr.bf16.mxu0 0
      %880 = vmatpush1.bf16.msra.mxu0 0
      %881 = vmatprep.subr.bf16.mxu0 0
      %882 = vmatpush1.bf16.msra.mxu0 0
      %883 = vmatprep.subr.bf16.mxu0 0
      %884 = vmatpush1.bf16.msra.mxu0 0
      %885 = vmatprep.mubr.bf16.mxu0 0
      %886 = vmatmul.mubr.bf16.gmra.mrb[0].mxu0 %v380
      %v887 = vpop.f32.mrb[0].mxu0
      %v888 = vadd.f32 %v339, %v887
      %v889 = vpop.f32.mrb[0].mxu0
      %v890 = vpop.f32.mrb[0].mxu0
      %v891 = vadd.f32 %v342, %v890
      %v892 = vpop.f32.mrb[0].mxu0
      %893 = vmatprep.mubr.bf16.mxu0 0
      %894 = vmatmul.mubr.bf16.gmra.mrb[0].mxu0 %v383
      %v895 = vpop.f32.mrb[0].mxu0
      %v896 = vadd.f32 %v347, %v895
      %v897 = vpop.f32.mrb[0].mxu0
      %v898 = vpop.f32.mrb[0].mxu0
      %v899 = vadd.f32 %v350, %v898
      %v900 = vpop.f32.mrb[0].mxu0
      %901 = vdwg.mxu0
      %v902 = vadd.f32 %v824, %v888
      %v903 = vadd.f32 %v825, %v891
      %v904 = vadd.f32 %v826, %v896
      %v905 = vadd.f32 %v827, %v899
      %v906 = vmul.f32 %v888, %v888
      %v907 = vmul.f32 %v891, %v891
      %v908 = vmul.f32 %v896, %v896
      %v909 = vmul.f32 %v899, %v899
      %v910 = vadd.f32 %v832, %v906
      %v911 = vadd.f32 %v833, %v907
      %v912 = vadd.f32 %v834, %v908
      %v913 = vadd.f32 %v835, %v909
      %s914 = scalar_lea.vmem %s244, 112
      %v915 = vld [vmem:[%s914] sm:$0xf]
      %v916 = vld [vmem:[%s914 + $0x4] sm:$0xf]
      %v917 = vld [vmem:[%s914 + $0x8] sm:$0xf]
      %v918 = vld [vmem:[%s914 + $0xc] sm:$0xf]
      %v923 = vunpack.c.l.b16 %v915
      %v924 = vunpack.c.l.b16 %v916
      %v925 = vunpack.c.l.b16 %v917
      %v926 = vunpack.c.l.b16 %v918
      %v927 = vpack.c.b16 %v924, %v923
      %v928 = vpack.c.b16 %v926, %v925
      %931 = vmatprep.subr.bf16.mxu0 0
      %932 = vmatpush1.bf16.msra.mxu0 %v927
      %933 = vmatprep.subr.bf16.mxu0 0
      %934 = vmatpush1.bf16.msra.mxu0 %v928
      %935 = vmatprep.subr.bf16.mxu0 0
      %936 = vmatpush1.bf16.msra.mxu0 0
      %937 = vmatprep.subr.bf16.mxu0 0
      %938 = vmatpush1.bf16.msra.mxu0 0
      %939 = vmatprep.subr.bf16.mxu0 0
      %940 = vmatpush1.bf16.msra.mxu0 0
      %941 = vmatprep.subr.bf16.mxu0 0
      %942 = vmatpush1.bf16.msra.mxu0 0
      %943 = vmatprep.subr.bf16.mxu0 0
      %944 = vmatpush1.bf16.msra.mxu0 0
      %945 = vmatprep.subr.bf16.mxu0 0
      %946 = vmatpush1.bf16.msra.mxu0 0
      %947 = vmatprep.subr.bf16.mxu0 0
      %948 = vmatpush1.bf16.msra.mxu0 0
      %949 = vmatprep.subr.bf16.mxu0 0
      %950 = vmatpush1.bf16.msra.mxu0 0
      %951 = vmatprep.subr.bf16.mxu0 0
      %952 = vmatpush1.bf16.msra.mxu0 0
      %953 = vmatprep.subr.bf16.mxu0 0
      %954 = vmatpush1.bf16.msra.mxu0 0
      %955 = vmatprep.subr.bf16.mxu0 0
      %956 = vmatpush1.bf16.msra.mxu0 0
      %957 = vmatprep.subr.bf16.mxu0 0
      %958 = vmatpush1.bf16.msra.mxu0 0
      %959 = vmatprep.subr.bf16.mxu0 0
      %960 = vmatpush1.bf16.msra.mxu0 0
      %961 = vmatprep.subr.bf16.mxu0 0
      %962 = vmatpush1.bf16.msra.mxu0 0
      %963 = vmatprep.mubr.bf16.mxu0 0
      %964 = vmatmul.mubr.bf16.gmra.mrb[0].mxu0 %v380
      %v965 = vpop.f32.mrb[0].mxu0
      %v966 = vadd.f32 %v339, %v965
      %v967 = vpop.f32.mrb[0].mxu0
      %v968 = vpop.f32.mrb[0].mxu0
      %v969 = vadd.f32 %v342, %v968
      %v970 = vpop.f32.mrb[0].mxu0
      %971 = vmatprep.mubr.bf16.mxu0 0
      %972 = vmatmul.mubr.bf16.gmra.mrb[0].mxu0 %v383
      %v973 = vpop.f32.mrb[0].mxu0
      %v974 = vadd.f32 %v347, %v973
      %v975 = vpop.f32.mrb[0].mxu0
      %v976 = vpop.f32.mrb[0].mxu0
      %v977 = vadd.f32 %v350, %v976
      %v978 = vpop.f32.mrb[0].mxu0
      %979 = vdwg.mxu0
      %v980 = vadd.f32 %v902, %v966
      %v981 = vadd.f32 %v903, %v969
      %v982 = vadd.f32 %v904, %v974
      %v983 = vadd.f32 %v905, %v977
      %v984 = vmul.f32 %v966, %v966
      %v985 = vmul.f32 %v969, %v969
      %v986 = vmul.f32 %v974, %v974
      %v987 = vmul.f32 %v977, %v977
      %v988 = vadd.f32 %v910, %v984
      %v989 = vadd.f32 %v911, %v985
      %v990 = vadd.f32 %v912, %v986
      %v991 = vadd.f32 %v913, %v987
      %s992 = scalar_lea.vmem %s244, 128
      %v993 = vld [vmem:[%s992] sm:$0xf]
      %v994 = vld [vmem:[%s992 + $0x4] sm:$0xf]
      %v995 = vld [vmem:[%s992 + $0x8] sm:$0xf]
      %v996 = vld [vmem:[%s992 + $0xc] sm:$0xf]
      %v1001 = vunpack.c.l.b16 %v993
      %v1002 = vunpack.c.l.b16 %v994
      %v1003 = vunpack.c.l.b16 %v995
      %v1004 = vunpack.c.l.b16 %v996
      %v1005 = vpack.c.b16 %v1002, %v1001
      %v1006 = vpack.c.b16 %v1004, %v1003
      %1009 = vmatprep.subr.bf16.mxu0 0
      %1010 = vmatpush1.bf16.msra.mxu0 %v1005
      %1011 = vmatprep.subr.bf16.mxu0 0
      %1012 = vmatpush1.bf16.msra.mxu0 %v1006
      %1013 = vmatprep.subr.bf16.mxu0 0
      %1014 = vmatpush1.bf16.msra.mxu0 0
      %1015 = vmatprep.subr.bf16.mxu0 0
      %1016 = vmatpush1.bf16.msra.mxu0 0
      %1017 = vmatprep.subr.bf16.mxu0 0
      %1018 = vmatpush1.bf16.msra.mxu0 0
      %1019 = vmatprep.subr.bf16.mxu0 0
      %1020 = vmatpush1.bf16.msra.mxu0 0
      %1021 = vmatprep.subr.bf16.mxu0 0
      %1022 = vmatpush1.bf16.msra.mxu0 0
      %1023 = vmatprep.subr.bf16.mxu0 0
      %1024 = vmatpush1.bf16.msra.mxu0 0
      %1025 = vmatprep.subr.bf16.mxu0 0
      %1026 = vmatpush1.bf16.msra.mxu0 0
      %1027 = vmatprep.subr.bf16.mxu0 0
      %1028 = vmatpush1.bf16.msra.mxu0 0
      %1029 = vmatprep.subr.bf16.mxu0 0
      %1030 = vmatpush1.bf16.msra.mxu0 0
      %1031 = vmatprep.subr.bf16.mxu0 0
      %1032 = vmatpush1.bf16.msra.mxu0 0
      %1033 = vmatprep.subr.bf16.mxu0 0
      %1034 = vmatpush1.bf16.msra.mxu0 0
      %1035 = vmatprep.subr.bf16.mxu0 0
      %1036 = vmatpush1.bf16.msra.mxu0 0
      %1037 = vmatprep.subr.bf16.mxu0 0
      %1038 = vmatpush1.bf16.msra.mxu0 0
      %1039 = vmatprep.subr.bf16.mxu0 0
      %1040 = vmatpush1.bf16.msra.mxu0 0
      %1041 = vmatprep.mubr.bf16.mxu0 0
      %1042 = vmatmul.mubr.bf16.gmra.mrb[0].mxu0 %v380
      %v1043 = vpop.f32.mrb[0].mxu0
      %v1044 = vadd.f32 %v339, %v1043
      %v1045 = vpop.f32.mrb[0].mxu0
      %v1046 = vpop.f32.mrb[0].mxu0
      %v1047 = vadd.f32 %v342, %v1046
      %v1048 = vpop.f32.mrb[0].mxu0
      %1049 = vmatprep.mubr.bf16.mxu0 0
      %1050 = vmatmul.mubr.bf16.gmra.mrb[0].mxu0 %v383
      %v1051 = vpop.f32.mrb[0].mxu0
      %v1052 = vadd.f32 %v347, %v1051
      %v1053 = vpop.f32.mrb[0].mxu0
      %v1054 = vpop.f32.mrb[0].mxu0
      %v1055 = vadd.f32 %v350, %v1054
      %v1056 = vpop.f32.mrb[0].mxu0
      %1057 = vdwg.mxu0
      %v1058 = vadd.f32 %v980, %v1044
      %v1059 = vadd.f32 %v981, %v1047
      %v1060 = vadd.f32 %v982, %v1052
      %v1061 = vadd.f32 %v983, %v1055
      %v1062 = vmul.f32 %v1044, %v1044
      %v1063 = vmul.f32 %v1047, %v1047
      %v1064 = vmul.f32 %v1052, %v1052
      %v1065 = vmul.f32 %v1055, %v1055
      %v1066 = vadd.f32 %v988, %v1062
      %v1067 = vadd.f32 %v989, %v1063
      %v1068 = vadd.f32 %v990, %v1064
      %v1069 = vadd.f32 %v991, %v1065
      %s1070 = scalar_lea.vmem %s244, 144
      %v1071 = vld [vmem:[%s1070] sm:$0xf]
      %v1072 = vld [vmem:[%s1070 + $0x4] sm:$0xf]
      %v1073 = vld [vmem:[%s1070 + $0x8] sm:$0xf]
      %v1074 = vld [vmem:[%s1070 + $0xc] sm:$0xf]
      %v1079 = vunpack.c.l.b16 %v1071
      %v1080 = vunpack.c.l.b16 %v1072
      %v1081 = vunpack.c.l.b16 %v1073
      %v1082 = vunpack.c.l.b16 %v1074
      %v1083 = vpack.c.b16 %v1080, %v1079
      %v1084 = vpack.c.b16 %v1082, %v1081
      %1087 = vmatprep.subr.bf16.mxu0 0
      %1088 = vmatpush1.bf16.msra.mxu0 %v1083
      %1089 = vmatprep.subr.bf16.mxu0 0
      %1090 = vmatpush1.bf16.msra.mxu0 %v1084
      %1091 = vmatprep.subr.bf16.mxu0 0
      %1092 = vmatpush1.bf16.msra.mxu0 0
      %1093 = vmatprep.subr.bf16.mxu0 0
      %1094 = vmatpush1.bf16.msra.mxu0 0
      %1095 = vmatprep.subr.bf16.mxu0 0
      %1096 = vmatpush1.bf16.msra.mxu0 0
      %1097 = vmatprep.subr.bf16.mxu0 0
      %1098 = vmatpush1.bf16.msra.mxu0 0
      %1099 = vmatprep.subr.bf16.mxu0 0
      %1100 = vmatpush1.bf16.msra.mxu0 0
      %1101 = vmatprep.subr.bf16.mxu0 0
      %1102 = vmatpush1.bf16.msra.mxu0 0
      %1103 = vmatprep.subr.bf16.mxu0 0
      %1104 = vmatpush1.bf16.msra.mxu0 0
      %1105 = vmatprep.subr.bf16.mxu0 0
      %1106 = vmatpush1.bf16.msra.mxu0 0
      %1107 = vmatprep.subr.bf16.mxu0 0
      %1108 = vmatpush1.bf16.msra.mxu0 0
      %1109 = vmatprep.subr.bf16.mxu0 0
      %1110 = vmatpush1.bf16.msra.mxu0 0
      %1111 = vmatprep.subr.bf16.mxu0 0
      %1112 = vmatpush1.bf16.msra.mxu0 0
      %1113 = vmatprep.subr.bf16.mxu0 0
      %1114 = vmatpush1.bf16.msra.mxu0 0
      %1115 = vmatprep.subr.bf16.mxu0 0
      %1116 = vmatpush1.bf16.msra.mxu0 0
      %1117 = vmatprep.subr.bf16.mxu0 0
      %1118 = vmatpush1.bf16.msra.mxu0 0
      %1119 = vmatprep.mubr.bf16.mxu0 0
      %1120 = vmatmul.mubr.bf16.gmra.mrb[0].mxu0 %v380
      %v1121 = vpop.f32.mrb[0].mxu0
      %v1122 = vadd.f32 %v339, %v1121
      %v1123 = vpop.f32.mrb[0].mxu0
      %v1124 = vpop.f32.mrb[0].mxu0
      %v1125 = vadd.f32 %v342, %v1124
      %v1126 = vpop.f32.mrb[0].mxu0
      %1127 = vmatprep.mubr.bf16.mxu0 0
      %1128 = vmatmul.mubr.bf16.gmra.mrb[0].mxu0 %v383
      %v1129 = vpop.f32.mrb[0].mxu0
      %v1130 = vadd.f32 %v347, %v1129
      %v1131 = vpop.f32.mrb[0].mxu0
      %v1132 = vpop.f32.mrb[0].mxu0
      %v1133 = vadd.f32 %v350, %v1132
      %v1134 = vpop.f32.mrb[0].mxu0
      %1135 = vdwg.mxu0
      %v1136 = vadd.f32 %v1058, %v1122
      %v1137 = vadd.f32 %v1059, %v1125
      %v1138 = vadd.f32 %v1060, %v1130
      %v1139 = vadd.f32 %v1061, %v1133
      %v1140 = vmul.f32 %v1122, %v1122
      %v1141 = vmul.f32 %v1125, %v1125
      %v1142 = vmul.f32 %v1130, %v1130
      %v1143 = vmul.f32 %v1133, %v1133
      %v1144 = vadd.f32 %v1066, %v1140
      %v1145 = vadd.f32 %v1067, %v1141
      %v1146 = vadd.f32 %v1068, %v1142
      %v1147 = vadd.f32 %v1069, %v1143
      %s1148 = scalar_lea.vmem %s244, 160
      %v1149 = vld [vmem:[%s1148] sm:$0xf]
      %v1150 = vld [vmem:[%s1148 + $0x4] sm:$0xf]
      %v1151 = vld [vmem:[%s1148 + $0x8] sm:$0xf]
      %v1152 = vld [vmem:[%s1148 + $0xc] sm:$0xf]
      %v1157 = vunpack.c.l.b16 %v1149
      %v1158 = vunpack.c.l.b16 %v1150
      %v1159 = vunpack.c.l.b16 %v1151
      %v1160 = vunpack.c.l.b16 %v1152
      %v1161 = vpack.c.b16 %v1158, %v1157
      %v1162 = vpack.c.b16 %v1160, %v1159
      %1165 = vmatprep.subr.bf16.mxu0 0
      %1166 = vmatpush1.bf16.msra.mxu0 %v1161
      %1167 = vmatprep.subr.bf16.mxu0 0
      %1168 = vmatpush1.bf16.msra.mxu0 %v1162
      %1169 = vmatprep.subr.bf16.mxu0 0
      %1170 = vmatpush1.bf16.msra.mxu0 0
      %1171 = vmatprep.subr.bf16.mxu0 0
      %1172 = vmatpush1.bf16.msra.mxu0 0
      %1173 = vmatprep.subr.bf16.mxu0 0
      %1174 = vmatpush1.bf16.msra.mxu0 0
      %1175 = vmatprep.subr.bf16.mxu0 0
      %1176 = vmatpush1.bf16.msra.mxu0 0
      %1177 = vmatprep.subr.bf16.mxu0 0
      %1178 = vmatpush1.bf16.msra.mxu0 0
      %1179 = vmatprep.subr.bf16.mxu0 0
      %1180 = vmatpush1.bf16.msra.mxu0 0
      %1181 = vmatprep.subr.bf16.mxu0 0
      %1182 = vmatpush1.bf16.msra.mxu0 0
      %1183 = vmatprep.subr.bf16.mxu0 0
      %1184 = vmatpush1.bf16.msra.mxu0 0
      %1185 = vmatprep.subr.bf16.mxu0 0
      %1186 = vmatpush1.bf16.msra.mxu0 0
      %1187 = vmatprep.subr.bf16.mxu0 0
      %1188 = vmatpush1.bf16.msra.mxu0 0
      %1189 = vmatprep.subr.bf16.mxu0 0
      %1190 = vmatpush1.bf16.msra.mxu0 0
      %1191 = vmatprep.subr.bf16.mxu0 0
      %1192 = vmatpush1.bf16.msra.mxu0 0
      %1193 = vmatprep.subr.bf16.mxu0 0
      %1194 = vmatpush1.bf16.msra.mxu0 0
      %1195 = vmatprep.subr.bf16.mxu0 0
      %1196 = vmatpush1.bf16.msra.mxu0 0
      %1197 = vmatprep.mubr.bf16.mxu0 0
      %1198 = vmatmul.mubr.bf16.gmra.mrb[0].mxu0 %v380
      %v1199 = vpop.f32.mrb[0].mxu0
      %v1200 = vadd.f32 %v339, %v1199
      %v1201 = vpop.f32.mrb[0].mxu0
      %v1202 = vpop.f32.mrb[0].mxu0
      %v1203 = vadd.f32 %v342, %v1202
      %v1204 = vpop.f32.mrb[0].mxu0
      %1205 = vmatprep.mubr.bf16.mxu0 0
      %1206 = vmatmul.mubr.bf16.gmra.mrb[0].mxu0 %v383
      %v1207 = vpop.f32.mrb[0].mxu0
      %v1208 = vadd.f32 %v347, %v1207
      %v1209 = vpop.f32.mrb[0].mxu0
      %v1210 = vpop.f32.mrb[0].mxu0
      %v1211 = vadd.f32 %v350, %v1210
      %v1212 = vpop.f32.mrb[0].mxu0
      %1213 = vdwg.mxu0
      %v1214 = vadd.f32 %v1136, %v1200
      %v1215 = vadd.f32 %v1137, %v1203
      %v1216 = vadd.f32 %v1138, %v1208
      %v1217 = vadd.f32 %v1139, %v1211
      %v1218 = vmul.f32 %v1200, %v1200
      %v1219 = vmul.f32 %v1203, %v1203
      %v1220 = vmul.f32 %v1208, %v1208
      %v1221 = vmul.f32 %v1211, %v1211
      %v1222 = vadd.f32 %v1144, %v1218
      %v1223 = vadd.f32 %v1145, %v1219
      %v1224 = vadd.f32 %v1146, %v1220
      %v1225 = vadd.f32 %v1147, %v1221
      %s1226 = scalar_lea.vmem %s244, 176
      %v1227 = vld [vmem:[%s1226] sm:$0xf]
      %v1228 = vld [vmem:[%s1226 + $0x4] sm:$0xf]
      %v1229 = vld [vmem:[%s1226 + $0x8] sm:$0xf]
      %v1230 = vld [vmem:[%s1226 + $0xc] sm:$0xf]
      %v1235 = vunpack.c.l.b16 %v1227
      %v1236 = vunpack.c.l.b16 %v1228
      %v1237 = vunpack.c.l.b16 %v1229
      %v1238 = vunpack.c.l.b16 %v1230
      %v1239 = vpack.c.b16 %v1236, %v1235
      %v1240 = vpack.c.b16 %v1238, %v1237
      %1243 = vmatprep.subr.bf16.mxu0 0
      %1244 = vmatpush1.bf16.msra.mxu0 %v1239
      %1245 = vmatprep.subr.bf16.mxu0 0
      %1246 = vmatpush1.bf16.msra.mxu0 %v1240
      %1247 = vmatprep.subr.bf16.mxu0 0
      %1248 = vmatpush1.bf16.msra.mxu0 0
      %1249 = vmatprep.subr.bf16.mxu0 0
      %1250 = vmatpush1.bf16.msra.mxu0 0
      %1251 = vmatprep.subr.bf16.mxu0 0
      %1252 = vmatpush1.bf16.msra.mxu0 0
      %1253 = vmatprep.subr.bf16.mxu0 0
      %1254 = vmatpush1.bf16.msra.mxu0 0
      %1255 = vmatprep.subr.bf16.mxu0 0
      %1256 = vmatpush1.bf16.msra.mxu0 0
      %1257 = vmatprep.subr.bf16.mxu0 0
      %1258 = vmatpush1.bf16.msra.mxu0 0
      %1259 = vmatprep.subr.bf16.mxu0 0
      %1260 = vmatpush1.bf16.msra.mxu0 0
      %1261 = vmatprep.subr.bf16.mxu0 0
      %1262 = vmatpush1.bf16.msra.mxu0 0
      %1263 = vmatprep.subr.bf16.mxu0 0
      %1264 = vmatpush1.bf16.msra.mxu0 0
      %1265 = vmatprep.subr.bf16.mxu0 0
      %1266 = vmatpush1.bf16.msra.mxu0 0
      %1267 = vmatprep.subr.bf16.mxu0 0
      %1268 = vmatpush1.bf16.msra.mxu0 0
      %1269 = vmatprep.subr.bf16.mxu0 0
      %1270 = vmatpush1.bf16.msra.mxu0 0
      %1271 = vmatprep.subr.bf16.mxu0 0
      %1272 = vmatpush1.bf16.msra.mxu0 0
      %1273 = vmatprep.subr.bf16.mxu0 0
      %1274 = vmatpush1.bf16.msra.mxu0 0
      %1275 = vmatprep.mubr.bf16.mxu0 0
      %1276 = vmatmul.mubr.bf16.gmra.mrb[0].mxu0 %v380
      %v1277 = vpop.f32.mrb[0].mxu0
      %v1278 = vadd.f32 %v339, %v1277
      %v1279 = vpop.f32.mrb[0].mxu0
      %v1280 = vpop.f32.mrb[0].mxu0
      %v1281 = vadd.f32 %v342, %v1280
      %v1282 = vpop.f32.mrb[0].mxu0
      %1283 = vmatprep.mubr.bf16.mxu0 0
      %1284 = vmatmul.mubr.bf16.gmra.mrb[0].mxu0 %v383
      %v1285 = vpop.f32.mrb[0].mxu0
      %v1286 = vadd.f32 %v347, %v1285
      %v1287 = vpop.f32.mrb[0].mxu0
      %v1288 = vpop.f32.mrb[0].mxu0
      %v1289 = vadd.f32 %v350, %v1288
      %v1290 = vpop.f32.mrb[0].mxu0
      %1291 = vdwg.mxu0
      %v1292 = vadd.f32 %v1214, %v1278
      %v1293 = vadd.f32 %v1215, %v1281
      %v1294 = vadd.f32 %v1216, %v1286
      %v1295 = vadd.f32 %v1217, %v1289
      %v1296 = vmul.f32 %v1278, %v1278
      %v1297 = vmul.f32 %v1281, %v1281
      %v1298 = vmul.f32 %v1286, %v1286
      %v1299 = vmul.f32 %v1289, %v1289
      %v1300 = vadd.f32 %v1222, %v1296
      %v1301 = vadd.f32 %v1223, %v1297
      %v1302 = vadd.f32 %v1224, %v1298
      %v1303 = vadd.f32 %v1225, %v1299
      %s1304 = scalar_lea.vmem %s244, 192
      %v1305 = vld [vmem:[%s1304] sm:$0xf]
      %v1306 = vld [vmem:[%s1304 + $0x4] sm:$0xf]
      %v1307 = vld [vmem:[%s1304 + $0x8] sm:$0xf]
      %v1308 = vld [vmem:[%s1304 + $0xc] sm:$0xf]
      %v1313 = vunpack.c.l.b16 %v1305
      %v1314 = vunpack.c.l.b16 %v1306
      %v1315 = vunpack.c.l.b16 %v1307
      %v1316 = vunpack.c.l.b16 %v1308
      %v1317 = vpack.c.b16 %v1314, %v1313
      %v1318 = vpack.c.b16 %v1316, %v1315
      %1321 = vmatprep.subr.bf16.mxu0 0
      %1322 = vmatpush1.bf16.msra.mxu0 %v1317
      %1323 = vmatprep.subr.bf16.mxu0 0
      %1324 = vmatpush1.bf16.msra.mxu0 %v1318
      %1325 = vmatprep.subr.bf16.mxu0 0
      %1326 = vmatpush1.bf16.msra.mxu0 0
      %1327 = vmatprep.subr.bf16.mxu0 0
      %1328 = vmatpush1.bf16.msra.mxu0 0
      %1329 = vmatprep.subr.bf16.mxu0 0
      %1330 = vmatpush1.bf16.msra.mxu0 0
      %1331 = vmatprep.subr.bf16.mxu0 0
      %1332 = vmatpush1.bf16.msra.mxu0 0
      %1333 = vmatprep.subr.bf16.mxu0 0
      %1334 = vmatpush1.bf16.msra.mxu0 0
      %1335 = vmatprep.subr.bf16.mxu0 0
      %1336 = vmatpush1.bf16.msra.mxu0 0
      %1337 = vmatprep.subr.bf16.mxu0 0
      %1338 = vmatpush1.bf16.msra.mxu0 0
      %1339 = vmatprep.subr.bf16.mxu0 0
      %1340 = vmatpush1.bf16.msra.mxu0 0
      %1341 = vmatprep.subr.bf16.mxu0 0
      %1342 = vmatpush1.bf16.msra.mxu0 0
      %1343 = vmatprep.subr.bf16.mxu0 0
      %1344 = vmatpush1.bf16.msra.mxu0 0
      %1345 = vmatprep.subr.bf16.mxu0 0
      %1346 = vmatpush1.bf16.msra.mxu0 0
      %1347 = vmatprep.subr.bf16.mxu0 0
      %1348 = vmatpush1.bf16.msra.mxu0 0
      %1349 = vmatprep.subr.bf16.mxu0 0
      %1350 = vmatpush1.bf16.msra.mxu0 0
      %1351 = vmatprep.subr.bf16.mxu0 0
      %1352 = vmatpush1.bf16.msra.mxu0 0
      %1353 = vmatprep.mubr.bf16.mxu0 0
      %1354 = vmatmul.mubr.bf16.gmra.mrb[0].mxu0 %v380
      %v1355 = vpop.f32.mrb[0].mxu0
      %v1356 = vadd.f32 %v339, %v1355
      %v1357 = vpop.f32.mrb[0].mxu0
      %v1358 = vpop.f32.mrb[0].mxu0
      %v1359 = vadd.f32 %v342, %v1358
      %v1360 = vpop.f32.mrb[0].mxu0
      %1361 = vmatprep.mubr.bf16.mxu0 0
      %1362 = vmatmul.mubr.bf16.gmra.mrb[0].mxu0 %v383
      %v1363 = vpop.f32.mrb[0].mxu0
      %v1364 = vadd.f32 %v347, %v1363
      %v1365 = vpop.f32.mrb[0].mxu0
      %v1366 = vpop.f32.mrb[0].mxu0
      %v1367 = vadd.f32 %v350, %v1366
      %v1368 = vpop.f32.mrb[0].mxu0
      %1369 = vdwg.mxu0
      %v1370 = vadd.f32 %v1292, %v1356
      %v1371 = vadd.f32 %v1293, %v1359
      %v1372 = vadd.f32 %v1294, %v1364
      %v1373 = vadd.f32 %v1295, %v1367
      %v1374 = vmul.f32 %v1356, %v1356
      %v1375 = vmul.f32 %v1359, %v1359
      %v1376 = vmul.f32 %v1364, %v1364
      %v1377 = vmul.f32 %v1367, %v1367
      %v1378 = vadd.f32 %v1300, %v1374
      %v1379 = vadd.f32 %v1301, %v1375
      %v1380 = vadd.f32 %v1302, %v1376
      %v1381 = vadd.f32 %v1303, %v1377
      %s1382 = scalar_lea.vmem %s244, 208
      %v1383 = vld [vmem:[%s1382] sm:$0xf]
      %v1384 = vld [vmem:[%s1382 + $0x4] sm:$0xf]
      %v1385 = vld [vmem:[%s1382 + $0x8] sm:$0xf]
      %v1386 = vld [vmem:[%s1382 + $0xc] sm:$0xf]
      %v1391 = vunpack.c.l.b16 %v1383
      %v1392 = vunpack.c.l.b16 %v1384
      %v1393 = vunpack.c.l.b16 %v1385
      %v1394 = vunpack.c.l.b16 %v1386
      %v1395 = vpack.c.b16 %v1392, %v1391
      %v1396 = vpack.c.b16 %v1394, %v1393
      %1399 = vmatprep.subr.bf16.mxu0 0
      %1400 = vmatpush1.bf16.msra.mxu0 %v1395
      %1401 = vmatprep.subr.bf16.mxu0 0
      %1402 = vmatpush1.bf16.msra.mxu0 %v1396
      %1403 = vmatprep.subr.bf16.mxu0 0
      %1404 = vmatpush1.bf16.msra.mxu0 0
      %1405 = vmatprep.subr.bf16.mxu0 0
      %1406 = vmatpush1.bf16.msra.mxu0 0
      %1407 = vmatprep.subr.bf16.mxu0 0
      %1408 = vmatpush1.bf16.msra.mxu0 0
      %1409 = vmatprep.subr.bf16.mxu0 0
      %1410 = vmatpush1.bf16.msra.mxu0 0
      %1411 = vmatprep.subr.bf16.mxu0 0
      %1412 = vmatpush1.bf16.msra.mxu0 0
      %1413 = vmatprep.subr.bf16.mxu0 0
      %1414 = vmatpush1.bf16.msra.mxu0 0
      %1415 = vmatprep.subr.bf16.mxu0 0
      %1416 = vmatpush1.bf16.msra.mxu0 0
      %1417 = vmatprep.subr.bf16.mxu0 0
      %1418 = vmatpush1.bf16.msra.mxu0 0
      %1419 = vmatprep.subr.bf16.mxu0 0
      %1420 = vmatpush1.bf16.msra.mxu0 0
      %1421 = vmatprep.subr.bf16.mxu0 0
      %1422 = vmatpush1.bf16.msra.mxu0 0
      %1423 = vmatprep.subr.bf16.mxu0 0
      %1424 = vmatpush1.bf16.msra.mxu0 0
      %1425 = vmatprep.subr.bf16.mxu0 0
      %1426 = vmatpush1.bf16.msra.mxu0 0
      %1427 = vmatprep.subr.bf16.mxu0 0
      %1428 = vmatpush1.bf16.msra.mxu0 0
      %1429 = vmatprep.subr.bf16.mxu0 0
      %1430 = vmatpush1.bf16.msra.mxu0 0
      %1431 = vmatprep.mubr.bf16.mxu0 0
      %1432 = vmatmul.mubr.bf16.gmra.mrb[0].mxu0 %v380
      %v1433 = vpop.f32.mrb[0].mxu0
      %v1434 = vadd.f32 %v339, %v1433
      %v1435 = vpop.f32.mrb[0].mxu0
      %v1436 = vpop.f32.mrb[0].mxu0
      %v1437 = vadd.f32 %v342, %v1436
      %v1438 = vpop.f32.mrb[0].mxu0
      %1439 = vmatprep.mubr.bf16.mxu0 0
      %1440 = vmatmul.mubr.bf16.gmra.mrb[0].mxu0 %v383
      %v1441 = vpop.f32.mrb[0].mxu0
      %v1442 = vadd.f32 %v347, %v1441
      %v1443 = vpop.f32.mrb[0].mxu0
      %v1444 = vpop.f32.mrb[0].mxu0
      %v1445 = vadd.f32 %v350, %v1444
      %v1446 = vpop.f32.mrb[0].mxu0
      %1447 = vdwg.mxu0
      %v1448 = vadd.f32 %v1370, %v1434
      %v1449 = vadd.f32 %v1371, %v1437
      %v1450 = vadd.f32 %v1372, %v1442
      %v1451 = vadd.f32 %v1373, %v1445
      %v1452 = vmul.f32 %v1434, %v1434
      %v1453 = vmul.f32 %v1437, %v1437
      %v1454 = vmul.f32 %v1442, %v1442
      %v1455 = vmul.f32 %v1445, %v1445
      %v1456 = vadd.f32 %v1378, %v1452
      %v1457 = vadd.f32 %v1379, %v1453
      %v1458 = vadd.f32 %v1380, %v1454
      %v1459 = vadd.f32 %v1381, %v1455
      %s1460 = scalar_lea.vmem %s244, 224
      %v1461 = vld [vmem:[%s1460] sm:$0xf]
      %v1462 = vld [vmem:[%s1460 + $0x4] sm:$0xf]
      %v1463 = vld [vmem:[%s1460 + $0x8] sm:$0xf]
      %v1464 = vld [vmem:[%s1460 + $0xc] sm:$0xf]
      %v1469 = vunpack.c.l.b16 %v1461
      %v1470 = vunpack.c.l.b16 %v1462
      %v1471 = vunpack.c.l.b16 %v1463
      %v1472 = vunpack.c.l.b16 %v1464
      %v1473 = vpack.c.b16 %v1470, %v1469
      %v1474 = vpack.c.b16 %v1472, %v1471
      %1477 = vmatprep.subr.bf16.mxu0 0
      %1478 = vmatpush1.bf16.msra.mxu0 %v1473
      %1479 = vmatprep.subr.bf16.mxu0 0
      %1480 = vmatpush1.bf16.msra.mxu0 %v1474
      %1481 = vmatprep.subr.bf16.mxu0 0
      %1482 = vmatpush1.bf16.msra.mxu0 0
      %1483 = vmatprep.subr.bf16.mxu0 0
      %1484 = vmatpush1.bf16.msra.mxu0 0
      %1485 = vmatprep.subr.bf16.mxu0 0
      %1486 = vmatpush1.bf16.msra.mxu0 0
      %1487 = vmatprep.subr.bf16.mxu0 0
      %1488 = vmatpush1.bf16.msra.mxu0 0
      %1489 = vmatprep.subr.bf16.mxu0 0
      %1490 = vmatpush1.bf16.msra.mxu0 0
      %1491 = vmatprep.subr.bf16.mxu0 0
      %1492 = vmatpush1.bf16.msra.mxu0 0
      %1493 = vmatprep.subr.bf16.mxu0 0
      %1494 = vmatpush1.bf16.msra.mxu0 0
      %1495 = vmatprep.subr.bf16.mxu0 0
      %1496 = vmatpush1.bf16.msra.mxu0 0
      %1497 = vmatprep.subr.bf16.mxu0 0
      %1498 = vmatpush1.bf16.msra.mxu0 0
      %1499 = vmatprep.subr.bf16.mxu0 0
      %1500 = vmatpush1.bf16.msra.mxu0 0
      %1501 = vmatprep.subr.bf16.mxu0 0
      %1502 = vmatpush1.bf16.msra.mxu0 0
      %1503 = vmatprep.subr.bf16.mxu0 0
      %1504 = vmatpush1.bf16.msra.mxu0 0
      %1505 = vmatprep.subr.bf16.mxu0 0
      %1506 = vmatpush1.bf16.msra.mxu0 0
      %1507 = vmatprep.subr.bf16.mxu0 0
      %1508 = vmatpush1.bf16.msra.mxu0 0
      %1509 = vmatprep.mubr.bf16.mxu0 0
      %1510 = vmatmul.mubr.bf16.gmra.mrb[0].mxu0 %v380
      %v1511 = vpop.f32.mrb[0].mxu0
      %v1512 = vadd.f32 %v339, %v1511
      %v1513 = vpop.f32.mrb[0].mxu0
      %v1514 = vpop.f32.mrb[0].mxu0
      %v1515 = vadd.f32 %v342, %v1514
      %v1516 = vpop.f32.mrb[0].mxu0
      %1517 = vmatprep.mubr.bf16.mxu0 0
      %1518 = vmatmul.mubr.bf16.gmra.mrb[0].mxu0 %v383
      %v1519 = vpop.f32.mrb[0].mxu0
      %v1520 = vadd.f32 %v347, %v1519
      %v1521 = vpop.f32.mrb[0].mxu0
      %v1522 = vpop.f32.mrb[0].mxu0
      %v1523 = vadd.f32 %v350, %v1522
      %v1524 = vpop.f32.mrb[0].mxu0
      %1525 = vdwg.mxu0
      %v1526 = vadd.f32 %v1448, %v1512
      %v1527 = vadd.f32 %v1449, %v1515
      %v1528 = vadd.f32 %v1450, %v1520
      %v1529 = vadd.f32 %v1451, %v1523
      %v1530 = vmul.f32 %v1512, %v1512
      %v1531 = vmul.f32 %v1515, %v1515
      %v1532 = vmul.f32 %v1520, %v1520
      %v1533 = vmul.f32 %v1523, %v1523
      %v1534 = vadd.f32 %v1456, %v1530
      %v1535 = vadd.f32 %v1457, %v1531
      %v1536 = vadd.f32 %v1458, %v1532
      %v1537 = vadd.f32 %v1459, %v1533
      %vm1538 = vcmask 130048
      %v1539 = vsel %vm1538, %v1526, 0.0
      %1540 = vadd.xlane.f32.xlu0 %v1539
      %v1541 = vpop.xlane.xlu0 %1540
      %v1542 = vsel %vm1538, %v1527, 0.0
      %1543 = vadd.xlane.f32.xlu0 %v1542
      %v1544 = vpop.xlane.xlu0 %1543
      %v1545 = vsel %vm1538, %v1528, 0.0
      %1546 = vadd.xlane.f32.xlu0 %v1545
      %v1547 = vpop.xlane.xlu0 %1546
      %v1548 = vsel %vm1538, %v1529, 0.0
      %1549 = vadd.xlane.f32.xlu0 %v1548
      %v1550 = vpop.xlane.xlu0 %1549
      %v1551 = vsel %vm1538, %v1534, 0.0
      %1552 = vadd.xlane.f32.xlu0 %v1551
      %v1553 = vpop.xlane.xlu0 %1552
      %v1554 = vsel %vm1538, %v1535, 0.0
      %1555 = vadd.xlane.f32.xlu0 %v1554
      %v1556 = vpop.xlane.xlu0 %1555
      %v1557 = vsel %vm1538, %v1536, 0.0
      %1558 = vadd.xlane.f32.xlu0 %v1557
      %v1559 = vpop.xlane.xlu0 %1558
      %v1560 = vsel %vm1538, %v1537, 0.0
      %1561 = vadd.xlane.f32.xlu0 %v1560
      %v1562 = vpop.xlane.xlu0 %1561
      %vm1563 = vcmask 7168
      %v1564 = vsel %vm1563, %v1541, %v1553
      %v1565 = vsel %vm1563, %v1544, %v1556
      %v1566 = vsel %vm1563, %v1547, %v1559
      %v1567 = vsel %vm1563, %v1550, %v1562
      %vm1568 = vcmask 15360
      %1569 = vst.msk [vmem:[%s261] sm:$0xff] %vm1568, %v1564
      %1570 = vst.msk [vmem:[%s261 + $0x8] sm:$0xff] %vm1568, %v1565
      %1571 = vst.msk [vmem:[%s261 + $0x10] sm:$0xff] %vm1568, %v1566
      %1572 = vst.msk [vmem:[%s261 + $0x18] sm:$0xff] %vm1568, %v1567
      %p1573 = scmp.lt.s32.totalorder %s19, 1
      %s1574 = scalar_select %p1573, %s19, 1
      %p1575 = scmp.lt.s32.totalorder %s20, 0
      %s1576 = scalar_select %p1575, %s20, 0
      %s1577 = smul.addr %s1576, 4
      %s1578 = smul.addr %s1574, 4
      %s1579 = sadd.s32 %s1577, %s1578
      %s1580 = smul.addr %s1579, 8
      %s1581 = scalar_lea.vmem %s4, %s1580
      // Predicated region
      $region37: #{posdiffnet_forward.4} parent=35 // pred_check
        %p1582 = pneg %p145
      $region38: #{posdiffnet_forward.4} parent=35 // pred_check_branch
        %1584 = sbr.rel (%p1582) target = $region40
      $region39: #{posdiffnet_forward.4} parent=35 // pred_region
        _
      $region40: #{posdiffnet_forward.4} parent=35 // pred_fallthru
        _
    $region36: #{posdiffnet_forward.4} parent=5 // pred_fallthru
      _
    %p1585 = scmp.le.s32.totalorder 2, %s10
    // Predicated region
    $region41: #{posdiffnet_forward.4} parent=5 // pred_check
      %p1586 = pneg %p1585
    $region42: #{posdiffnet_forward.4} parent=5 // pred_check_branch
      %1588 = sbr.rel (%p1586) target = $region44
    $region43: #{posdiffnet_forward.4} parent=5 // pred_region
      %s1589 = ssub.s32 %s10, 2
      // Predicated region
      $region45: #{posdiffnet_forward.4} parent=43 // pred_check
        %p1590 = pneg %p151
      $region46: #{posdiffnet_forward.4} parent=43 // pred_check_branch
        %1592 = sbr.rel (%p1590) target = $region48
      $region47: #{posdiffnet_forward.4} parent=43 // pred_region
        %p1593 = scmp.lt.s32.totalorder %s21, 1
        %s1594 = scalar_select %p1593, %s21, 1
        %p1595 = scmp.lt.s32.totalorder %s22, 0
        %s1596 = scalar_select %p1595, %s22, 0
        %s1597 = smul.addr %s1596, 4
        %s1598 = smul.addr %s1594, 4
        %s1599 = sadd.s32 %s1597, %s1598
        %s1600 = smul.addr %s1599, 8
        %s1601 = scalar_lea.vmem %s4, %s1600
      $region48: #{posdiffnet_forward.4} parent=43 // pred_fallthru
        _
    $region44: #{posdiffnet_forward.4} parent=5 // pred_fallthru
      _
  $region6: #{posdiffnet_forward.4} parent=0 // loop_footer
    %s14 = sadd.s32 1, %s10
  $region7: #{posdiffnet_forward.4} parent=0 // loop_footer_branch
    %9 = sbr.rel target = $region3
  $region8: #{posdiffnet_forward.4} parent=0 // loop_exit
    _

// kernel: posdiffnet_forward.5
$region0: #{posdiffnet_forward.5}
  #allocation0 [shape = 'u32[]', space=smem, size = 0x4, offset = 0x4, fixed_abs, tag = 'smem constant byte address 0x4 - core index']
  #allocation1 [shape = 'u32[144,128]{1,0:T(1,128)}', space=vmem, size = 0x12000, scoped, tag = 'internal scratch']
  %s0 = inlined_call_operand.vmem [shape: bf16[2,15,32,16], index: 0, kind: input, shape index: {}]
  %s1 = inlined_call_operand.vmem [shape: bf16[2,32,16], index: 1, kind: input, shape index: {}]
  %s2 = inlined_call_operand.vmem [shape: bf16[32,32], index: 2, kind: input, shape index: {}]
  %s3 = inlined_call_operand.vmem [shape: bf16[32,32], index: 3, kind: input, shape index: {}]
  %s4 = inlined_call_operand.vmem [shape: f32[32,1], index: 4, kind: input, shape index: {}]
  %s5 = inlined_call_operand.vmem [shape: bf16[32,96], index: 5, kind: input, shape index: {}]
  %s6 = inlined_call_operand.vmem [shape: f32[2,32,16], index: 6, kind: output, shape index: {0}]
  %s7 = inlined_call_operand.vmem [shape: f32[2,1,32,2], index: 7, kind: output, shape index: {1}]
  %8 = xla_tuple %s6, %s7
  %s9 = sld [smem:[#allocation0]]
  $region65: #{posdiffnet_forward.5} parent=0
    _
  %s11 = ssub.s32 1, %s9
  %s12 = scalar_select 0, %s11, %s9
  loop: start=0, step=1, limit=4
  $region2: #{posdiffnet_forward.5} parent=0 // loop_pre_header
    _
  $region3: #{posdiffnet_forward.5} parent=0 // loop_header
    %s14 = sphi 0, %s18
    %p15 = scmp.ge.s32.totalorder %s14, 4
    %s21 = sphi 0, %s33
    %s22 = sphi 0, %s29
    %s23 = sphi 0, %s21
    %s24 = sphi 0, %s22
    %s25 = sphi 0, %s23
    %s26 = sphi 0, %s24
    %s38 = sphi 0, %s40
    %s41 = sphi 0, %s38
    %s42 = sphi 0, %s41
    %s58 = sphi 0, %s42
    %s66 = sphi 0, %s68
    %s69 = sphi 0, %s66
    %s70 = sphi 0, %s69
    %s86 = sphi 0, %s70
    %s90 = sphi 0, %s90
    %s92 = sphi 0, %s90
    %s93 = sphi 0, %s92
    %s107 = sphi 0, %s93
    %s111 = sphi 0, %s111
    %s113 = sphi 0, %s111
    %s114 = sphi 0, %s113
    %s128 = sphi 0, %s114
    %s132 = sphi 0, %s132
    %s134 = sphi 0, %s132
    %s135 = sphi 0, %s134
    %s149 = sphi 0, %s135
    %s153 = sphi 0, %s153
    %s155 = sphi 0, %s153
    %s156 = sphi 0, %s155
    %s170 = sphi 0, %s156
    %s178 = sphi 0, %s180
    %s181 = sphi 0, %s178
    %s182 = sphi 0, %s181
    %s198 = sphi 0, %s182
    %s206 = sphi 0, %s208
    %s209 = sphi 0, %s206
    %s210 = sphi 0, %s209
    %s226 = sphi 0, %s210
  $region4: #{posdiffnet_forward.5} parent=0 // loop_header_branch
    %17 = sbr.rel (%p15) target = $region8
  $region5: #{posdiffnet_forward.5} parent=0 // loop_body
    %s19 = ssub.s32 %s14, 1
    %s20 = ssub.s32 %s14, 2
    %s27 = sadd.s32 1, %s22
    %p28 = scmp.ge.s32.totalorder %s27, 1
    %s29 = scalar_select %p28, 0, %s27
    %s30 = sadd.s32 1, %s21
    %s31 = scalar_select %p28, %s30, %s21
    %p32 = scmp.ge.s32.totalorder %s31, 2
    %s33 = scalar_select %p32, 0, %s31
    %s34 = ssub.s32 %s21, %s33
    %s35 = ssub.s32 %s22, %s29
    %s36 = sor.u32 %s34, %s35
    %p37 = scmp.eq.s32.totalorder %s36, 0
    %s39 = sadd.s32 %s38, 1
    %s40 = scalar_select %p37, %s38, %s39
    %p43 = pneg %p37
    %p44 = scmp.eq.s32.totalorder %s14, 1
    %p45 = por %p43, %p44
    %p46 = scmp.ne.s32.totalorder %s38, %s41
    %p47 = scmp.eq.s32.totalorder %s14, 0
    %p48 = por %p46, %p47
    %p49 = scmp.ne.s32.totalorder %s38, %s41
    %p50 = scmp.eq.s32.totalorder %s19, 1
    %p51 = por %p49, %p50
    %p52 = scmp.ne.s32.totalorder %s41, %s42
    %p53 = scmp.eq.s32.totalorder %s19, 0
    %p54 = por %p52, %p53
    %p55 = scmp.ne.s32.totalorder %s41, %s42
    %p56 = scmp.eq.s32.totalorder %s20, 1
    %p57 = por %p55, %p56
    %p59 = scmp.ne.s32.totalorder %s42, %s58
    %p60 = scmp.eq.s32.totalorder %s20, 0
    %p61 = por %p59, %p60
    %s62 = ssub.s32 %s21, %s33
    %s63 = ssub.s32 %s22, %s29
    %s64 = sor.u32 %s62, %s63
    %p65 = scmp.eq.s32.totalorder %s64, 0
    %s67 = sadd.s32 %s66, 1
    %s68 = scalar_select %p65, %s66, %s67
    %p71 = pneg %p65
    %p72 = scmp.eq.s32.totalorder %s14, 1
    %p73 = por %p71, %p72
    %p74 = scmp.ne.s32.totalorder %s66, %s69
    %p75 = scmp.eq.s32.totalorder %s14, 0
    %p76 = por %p74, %p75
    %p77 = scmp.ne.s32.totalorder %s66, %s69
    %p78 = scmp.eq.s32.totalorder %s19, 1
    %p79 = por %p77, %p78
    %p80 = scmp.ne.s32.totalorder %s69, %s70
    %p81 = scmp.eq.s32.totalorder %s19, 0
    %p82 = por %p80, %p81
    %p83 = scmp.ne.s32.totalorder %s69, %s70
    %p84 = scmp.eq.s32.totalorder %s20, 1
    %p85 = por %p83, %p84
    %p87 = scmp.ne.s32.totalorder %s70, %s86
    %p88 = scmp.eq.s32.totalorder %s20, 0
    %p89 = por %p87, %p88
    %s91 = sadd.s32 %s90, 1
    %p94 = scmp.eq.s32.totalorder %s14, 1
    %p95 = scmp.ne.s32.totalorder %s90, %s92
    %p96 = scmp.eq.s32.totalorder %s14, 0
    %p97 = por %p95, %p96
    %p98 = scmp.ne.s32.totalorder %s90, %s92
    %p99 = scmp.eq.s32.totalorder %s19, 1
    %p100 = por %p98, %p99
    %p101 = scmp.ne.s32.totalorder %s92, %s93
    %p102 = scmp.eq.s32.totalorder %s19, 0
    %p103 = por %p101, %p102
    %p104 = scmp.ne.s32.totalorder %s92, %s93
    %p105 = scmp.eq.s32.totalorder %s20, 1
    %p106 = por %p104, %p105
    %p108 = scmp.ne.s32.totalorder %s93, %s107
    %p109 = scmp.eq.s32.totalorder %s20, 0
    %p110 = por %p108, %p109
    %s112 = sadd.s32 %s111, 1
    %p115 = scmp.eq.s32.totalorder %s14, 1
    %p116 = scmp.ne.s32.totalorder %s111, %s113
    %p117 = scmp.eq.s32.totalorder %s14, 0
    %p118 = por %p116, %p117
    %p119 = scmp.ne.s32.totalorder %s111, %s113
    %p120 = scmp.eq.s32.totalorder %s19, 1
    %p121 = por %p119, %p120
    %p122 = scmp.ne.s32.totalorder %s113, %s114
    %p123 = scmp.eq.s32.totalorder %s19, 0
    %p124 = por %p122, %p123
    %p125 = scmp.ne.s32.totalorder %s113, %s114
    %p126 = scmp.eq.s32.totalorder %s20, 1
    %p127 = por %p125, %p126
    %p129 = scmp.ne.s32.totalorder %s114, %s128
    %p130 = scmp.eq.s32.totalorder %s20, 0
    %p131 = por %p129, %p130
    %s133 = sadd.s32 %s132, 1
    %p136 = scmp.eq.s32.totalorder %s14, 1
    %p137 = scmp.ne.s32.totalorder %s132, %s134
    %p138 = scmp.eq.s32.totalorder %s14, 0
    %p139 = por %p137, %p138
    %p140 = scmp.ne.s32.totalorder %s132, %s134
    %p141 = scmp.eq.s32.totalorder %s19, 1
    %p142 = por %p140, %p141
    %p143 = scmp.ne.s32.totalorder %s134, %s135
    %p144 = scmp.eq.s32.totalorder %s19, 0
    %p145 = por %p143, %p144
    %p146 = scmp.ne.s32.totalorder %s134, %s135
    %p147 = scmp.eq.s32.totalorder %s20, 1
    %p148 = por %p146, %p147
    %p150 = scmp.ne.s32.totalorder %s135, %s149
    %p151 = scmp.eq.s32.totalorder %s20, 0
    %p152 = por %p150, %p151
    %s154 = sadd.s32 %s153, 1
    %p157 = scmp.eq.s32.totalorder %s14, 1
    %p158 = scmp.ne.s32.totalorder %s153, %s155
    %p159 = scmp.eq.s32.totalorder %s14, 0
    %p160 = por %p158, %p159
    %p161 = scmp.ne.s32.totalorder %s153, %s155
    %p162 = scmp.eq.s32.totalorder %s19, 1
    %p163 = por %p161, %p162
    %p164 = scmp.ne.s32.totalorder %s155, %s156
    %p165 = scmp.eq.s32.totalorder %s19, 0
    %p166 = por %p164, %p165
    %p167 = scmp.ne.s32.totalorder %s155, %s156
    %p168 = scmp.eq.s32.totalorder %s20, 1
    %p169 = por %p167, %p168
    %p171 = scmp.ne.s32.totalorder %s156, %s170
    %p172 = scmp.eq.s32.totalorder %s20, 0
    %p173 = por %p171, %p172
    %s174 = ssub.s32 %s21, %s33
    %s175 = ssub.s32 %s22, %s29
    %s176 = sor.u32 %s174, %s175
    %p177 = scmp.eq.s32.totalorder %s176, 0
    %s179 = sadd.s32 %s178, 1
    %s180 = scalar_select %p177, %s178, %s179
    %p183 = pneg %p177
    %p184 = scmp.eq.s32.totalorder %s14, 1
    %p185 = por %p183, %p184
    %p186 = scmp.ne.s32.totalorder %s178, %s181
    %p187 = scmp.eq.s32.totalorder %s14, 0
    %p188 = por %p186, %p187
    %p189 = scmp.ne.s32.totalorder %s178, %s181
    %p190 = scmp.eq.s32.totalorder %s19, 1
    %p191 = por %p189, %p190
    %p192 = scmp.ne.s32.totalorder %s181, %s182
    %p193 = scmp.eq.s32.totalorder %s19, 0
    %p194 = por %p192, %p193
    %p195 = scmp.ne.s32.totalorder %s181, %s182
    %p196 = scmp.eq.s32.totalorder %s20, 1
    %p197 = por %p195, %p196
    %p199 = scmp.ne.s32.totalorder %s182, %s198
    %p200 = scmp.eq.s32.totalorder %s20, 0
    %p201 = por %p199, %p200
    %s202 = ssub.s32 %s21, %s33
    %s203 = ssub.s32 %s22, %s29
    %s204 = sor.u32 %s202, %s203
    %p205 = scmp.eq.s32.totalorder %s204, 0
    %s207 = sadd.s32 %s206, 1
    %s208 = scalar_select %p205, %s206, %s207
    %p211 = pneg %p205
    %p212 = scmp.eq.s32.totalorder %s14, 1
    %p213 = por %p211, %p212
    %p214 = scmp.ne.s32.totalorder %s206, %s209
    %p215 = scmp.eq.s32.totalorder %s14, 0
    %p216 = por %p214, %p215
    %p217 = scmp.ne.s32.totalorder %s206, %s209
    %p218 = scmp.eq.s32.totalorder %s19, 1
    %p219 = por %p217, %p218
    %p220 = scmp.ne.s32.totalorder %s209, %s210
    %p221 = scmp.eq.s32.totalorder %s19, 0
    %p222 = por %p220, %p221
    %p223 = scmp.ne.s32.totalorder %s209, %s210
    %p224 = scmp.eq.s32.totalorder %s20, 1
    %p225 = por %p223, %p224
    %p227 = scmp.ne.s32.totalorder %s210, %s226
    %p228 = scmp.eq.s32.totalorder %s20, 0
    %p229 = por %p227, %p228
    %p230 = scmp.le.s32.totalorder 1, %s14
    %p231 = scmp.lt.s32.totalorder %s14, 3
    %p232 = pnand %p230, %p231
    %p233 = pneg %p232
    // Predicated region
    $region9: #{posdiffnet_forward.5} parent=5 // pred_check
      _
    $region10: #{posdiffnet_forward.5} parent=5 // pred_check_branch
      %235 = sbr.rel (%p232) target = $region12
    $region11: #{posdiffnet_forward.5} parent=5 // pred_region
      %s236 = ssub.s32 %s14, 1
      // Predicated region
      $region13: #{posdiffnet_forward.5} parent=11 // pred_check
        %p237 = pneg %p103
      $region14: #{posdiffnet_forward.5} parent=11 // pred_check_branch
        %239 = sbr.rel (%p237) target = $region16
      $region15: #{posdiffnet_forward.5} parent=11 // pred_region
        _
      $region16: #{posdiffnet_forward.5} parent=11 // pred_fallthru
        _
      // Predicated region
      $region17: #{posdiffnet_forward.5} parent=11 // pred_check
        %p240 = pneg %p124
      $region18: #{posdiffnet_forward.5} parent=11 // pred_check_branch
        %242 = sbr.rel (%p240) target = $region20
      $region19: #{posdiffnet_forward.5} parent=11 // pred_region
        _
      $region20: #{posdiffnet_forward.5} parent=11 // pred_fallthru
        _
      // Predicated region
      $region21: #{posdiffnet_forward.5} parent=11 // pred_check
        %p243 = pneg %p145
      $region22: #{posdiffnet_forward.5} parent=11 // pred_check_branch
        %245 = sbr.rel (%p243) target = $region24
      $region23: #{posdiffnet_forward.5} parent=11 // pred_region
        _
      $region24: #{posdiffnet_forward.5} parent=11 // pred_fallthru
        _
      // Predicated region
      $region25: #{posdiffnet_forward.5} parent=11 // pred_check
        %p246 = pneg %p166
      $region26: #{posdiffnet_forward.5} parent=11 // pred_check_branch
        %248 = sbr.rel (%p246) target = $region28
      $region27: #{posdiffnet_forward.5} parent=11 // pred_region
        _
      $region28: #{posdiffnet_forward.5} parent=11 // pred_fallthru
        _
    $region12: #{posdiffnet_forward.5} parent=5 // pred_fallthru
      _
    %p249 = scmp.lt.s32.totalorder %s14, 2
    // Predicated region
    $region29: #{posdiffnet_forward.5} parent=5 // pred_check
      %p250 = pneg %p249
    $region30: #{posdiffnet_forward.5} parent=5 // pred_check_branch
      %252 = sbr.rel (%p250) target = $region32
    $region31: #{posdiffnet_forward.5} parent=5 // pred_region
      // Predicated region
      $region33: #{posdiffnet_forward.5} parent=31 // pred_check
        %p253 = pneg %p48
      $region34: #{posdiffnet_forward.5} parent=31 // pred_check_branch
        %255 = sbr.rel (%p253) target = $region36
      $region35: #{posdiffnet_forward.5} parent=31 // pred_region
        %p256 = scmp.lt.s32.totalorder %s21, 1
        %s257 = scalar_select %p256, %s21, 1
        %p258 = scmp.lt.s32.totalorder %s22, 0
        %s259 = scalar_select %p258, %s22, 0
        %s260 = smul.addr %s257, 60
        %s261 = sadd.s32 %s259, %s260
        %s262 = smul.addr %s261, 4
        %s263 = scalar_lea.vmem %s0, %s262
      $region36: #{posdiffnet_forward.5} parent=31 // pred_fallthru
        _
      // Predicated region
      $region37: #{posdiffnet_forward.5} parent=31 // pred_check
        %p264 = pneg %p76
      $region38: #{posdiffnet_forward.5} parent=31 // pred_check_branch
        %266 = sbr.rel (%p264) target = $region40
      $region39: #{posdiffnet_forward.5} parent=31 // pred_region
        %p267 = scmp.lt.s32.totalorder %s21, 1
        %s268 = scalar_select %p267, %s21, 1
        %p269 = scmp.lt.s32.totalorder %s22, 0
        %s270 = scalar_select %p269, %s22, 0
        %s271 = smul.addr %s268, 4
        %s272 = sadd.s32 %s270, %s271
        %s273 = smul.addr %s272, 4
        %s274 = scalar_lea.vmem %s1, %s273
      $region40: #{posdiffnet_forward.5} parent=31 // pred_fallthru
        _
    $region32: #{posdiffnet_forward.5} parent=5 // pred_fallthru
      _
    %p275 = scmp.le.s32.totalorder 1, %s14
    %p276 = scmp.lt.s32.totalorder %s14, 3
    %p277 = pnand %p275, %p276
    %p278 = pneg %p277
    // Predicated region
    $region41: #{posdiffnet_forward.5} parent=5 // pred_check
      _
    $region42: #{posdiffnet_forward.5} parent=5 // pred_check_branch
      %280 = sbr.rel (%p277) target = $region44
    $region43: #{posdiffnet_forward.5} parent=5 // pred_region
      %s281 = ssub.s32 %s14, 1
      %p282 = scmp.lt.s32.totalorder %s23, 1
      %s283 = scalar_select %p282, %s23, 1
      %p284 = scmp.lt.s32.totalorder %s24, 0
      %s285 = scalar_select %p284, %s24, 0
      %s286 = smul.addr %s283, 60
      %s287 = sadd.s32 %s285, %s286
      %s288 = smul.addr %s287, 4
      %s289 = scalar_lea.vmem %s0, %s288
      %p290 = pneg %p54
      %p291 = pneg %p51
      %p292 = scmp.lt.s32.totalorder %s23, 1
      %s293 = scalar_select %p292, %s23, 1
      %p294 = scmp.lt.s32.totalorder %s24, 0
      %s295 = scalar_select %p294, %s24, 0
      %s296 = smul.addr %s293, 4
      %s297 = sadd.s32 %s295, %s296
      %s298 = smul.addr %s297, 4
      %s299 = scalar_lea.vmem %s1, %s298
      %p300 = pneg %p82
      %p301 = pneg %p79
      %p302 = pneg %p103
      %p303 = pneg %p100
      %p304 = pneg %p124
      %p305 = pneg %p121
      %p306 = pneg %p145
      %p307 = pneg %p142
      %p308 = pneg %p166
      %p309 = pneg %p163
      %p310 = pneg %p194
      %p311 = pneg %p191
      %p312 = scmp.lt.s32.totalorder %s23, 1
      %s313 = scalar_select %p312, %s23, 1
      %p314 = scmp.lt.s32.totalorder %s24, 0
      %s315 = scalar_select %p314, %s24, 0
      %s316 = smul.addr %s313, 4
      %s317 = sadd.s32 %s315, %s316
      %s318 = smul.addr %s317, 8
      %s319 = scalar_lea.vmem %s6, %s318
      %p320 = pneg %p222
      %p321 = pneg %p219
      %p322 = scmp.lt.s32.totalorder %s23, 1
      %s323 = scalar_select %p322, %s23, 1
      %p324 = scmp.lt.s32.totalorder %s24, 0
      %s325 = scalar_select %p324, %s24, 0
      %s326 = smul.addr %s325, 4
      %s327 = smul.addr %s323, 4
      %s328 = sadd.s32 %s326, %s327
      %s329 = smul.addr %s328, 8
      %s330 = scalar_lea.vmem %s7, %s329
      %p331 = scmp.lt.s32.totalorder %s23, 1
      %s332 = scalar_select %p331, %s23, 1
      %p333 = scmp.lt.s32.totalorder %s24, 0
      %s334 = scalar_select %p333, %s24, 0
      %s335 = smul.addr %s332, 60
      %s336 = sadd.s32 %s334, %s335
      %s337 = smul.addr %s336, 4
      %s338 = scalar_lea.vmem %s0, %s337
      %p339 = scmp.lt.s32.totalorder %s23, 1
      %s340 = scalar_select %p339, %s23, 1
      %p341 = scmp.lt.s32.totalorder %s24, 0
      %s342 = scalar_select %p341, %s24, 0
      %s343 = smul.addr %s340, 4
      %s344 = sadd.s32 %s342, %s343
      %s345 = smul.addr %s344, 4
      %s346 = scalar_lea.vmem %s1, %s345
      %p347 = scmp.lt.s32.totalorder %s23, 1
      %s348 = scalar_select %p347, %s23, 1
      %p349 = scmp.lt.s32.totalorder %s24, 0
      %s350 = scalar_select %p349, %s24, 0
      %s351 = smul.addr %s348, 4
      %s352 = sadd.s32 %s350, %s351
      %s353 = smul.addr %s352, 8
      %s354 = scalar_lea.vmem %s6, %s353
      %p355 = scmp.lt.s32.totalorder %s23, 1
      %s356 = scalar_select %p355, %s23, 1
      %p357 = scmp.lt.s32.totalorder %s24, 0
      %s358 = scalar_select %p357, %s24, 0
      %s359 = smul.addr %s358, 4
      %s360 = smul.addr %s356, 4
      %s361 = sadd.s32 %s359, %s360
      %s362 = smul.addr %s361, 8
      %s363 = scalar_lea.vmem %s7, %s362
      %v365 = vld [vmem:[%s346] sm:$0xf]
      %v366 = vld [vmem:[%s346 + $0x4] sm:$0xf]
      %v367 = vld [vmem:[%s346 + $0x8] sm:$0xf]
      %v368 = vld [vmem:[%s346 + $0xc] sm:$0xf]
      %v369 = vld [vmem:[%s2] sm:$0xf]
      %v370 = vld [vmem:[%s2 + $0x4] sm:$0xf]
      %v371 = vld [vmem:[%s2 + $0x8] sm:$0xf]
      %v372 = vld [vmem:[%s2 + $0xc] sm:$0xf]
      %v373 = vld [vmem:[%s3] sm:$0xf]
      %v374 = vld [vmem:[%s3 + $0x4] sm:$0xf]
      %v375 = vld [vmem:[%s3 + $0x8] sm:$0xf]
      %v376 = vld [vmem:[%s3 + $0xc] sm:$0xf]
      %v377 = vld [vmem:[%s4] sm:$0xff]
      %v378 = vld [vmem:[%s4 + $0x8] sm:$0xff]
      %v379 = vld [vmem:[%s4 + $0x10] sm:$0xff]
      %v380 = vld [vmem:[%s4 + $0x18] sm:$0xff]
      %382 = vset.pattern.permute.xlu0 0
      %383 = vperm.xlu0 %382, %v377
      %v384 = vpop.permute.xlu0 %383
      %387 = vset.pattern.permute.xlu0 0
      %388 = vperm.xlu0 %387, %v378
      %v389 = vpop.permute.xlu0 %388
      %392 = vset.pattern.permute.xlu0 0
      %393 = vperm.xlu0 %392, %v379
      %v394 = vpop.permute.xlu0 %393
      %397 = vset.pattern.permute.xlu0 0
      %398 = vperm.xlu0 %397, %v380
      %v399 = vpop.permute.xlu0 %398
      %v405 = vunpack.c.l.b16 %v373
      %v406 = vunpack.c.l.b16 %v374
      %v407 = vunpack.c.l.b16 %v375
      %v408 = vunpack.c.l.b16 %v376
      %v409 = vpack.c.b16 %v406, %v405
      %v410 = vpack.c.b16 %v408, %v407
      %v415 = vunpack.c.l.b16 %v365
      %v416 = vunpack.c.l.b16 %v366
      %v417 = vunpack.c.l.b16 %v367
      %v418 = vunpack.c.l.b16 %v368
      %v419 = vpack.c.b16 %v416, %v415
      %v420 = vpack.c.b16 %v418, %v417
      %vm423 = vcmask 261120
      %v425 = vsel %vm423, %v409, 0
      %v428 = vsel %vm423, %v410, 0
      %430 = vmatprep.subr.bf16.mxu0 0
      %431 = vmatpush1.bf16.msra.mxu0 %v419
      %432 = vmatprep.subr.bf16.mxu0 0
      %433 = vmatpush1.bf16.msra.mxu0 %v420
      %434 = vmatprep.subr.bf16.mxu0 0
      %435 = vmatpush1.bf16.msra.mxu0 0
      %436 = vmatprep.subr.bf16.mxu0 0
      %437 = vmatpush1.bf16.msra.mxu0 0
      %438 = vmatprep.subr.bf16.mxu0 0
      %439 = vmatpush1.bf16.msra.mxu0 0
      %440 = vmatprep.subr.bf16.mxu0 0
      %441 = vmatpush1.bf16.msra.mxu0 0
      %442 = vmatprep.subr.bf16.mxu0 0
      %443 = vmatpush1.bf16.msra.mxu0 0
      %444 = vmatprep.subr.bf16.mxu0 0
      %445 = vmatpush1.bf16.msra.mxu0 0
      %446 = vmatprep.subr.bf16.mxu0 0
      %447 = vmatpush1.bf16.msra.mxu0 0
      %448 = vmatprep.subr.bf16.mxu0 0
      %449 = vmatpush1.bf16.msra.mxu0 0
      %450 = vmatprep.subr.bf16.mxu0 0
      %451 = vmatpush1.bf16.msra.mxu0 0
      %452 = vmatprep.subr.bf16.mxu0 0
      %453 = vmatpush1.bf16.msra.mxu0 0
      %454 = vmatprep.subr.bf16.mxu0 0
      %455 = vmatpush1.bf16.msra.mxu0 0
      %456 = vmatprep.subr.bf16.mxu0 0
      %457 = vmatpush1.bf16.msra.mxu0 0
      %458 = vmatprep.subr.bf16.mxu0 0
      %459 = vmatpush1.bf16.msra.mxu0 0
      %460 = vmatprep.subr.bf16.mxu0 0
      %461 = vmatpush1.bf16.msra.mxu0 0
      %462 = vmatprep.mubr.bf16.mxu0 0
      %463 = vmatmul.mubr.bf16.gmra.mrb[0].mxu0 %v425
      %v464 = vpop.f32.mrb[0].mxu0
      %v465 = vadd.f32 %v384, %v464
      %v466 = vpop.f32.mrb[0].mxu0
      %v467 = vpop.f32.mrb[0].mxu0
      %v468 = vadd.f32 %v389, %v467
      %v469 = vpop.f32.mrb[0].mxu0
      %470 = vmatprep.mubr.bf16.mxu0 0
      %471 = vmatmul.mubr.bf16.gmra.mrb[0].mxu0 %v428
      %v472 = vpop.f32.mrb[0].mxu0
      %v473 = vadd.f32 %v394, %v472
      %v474 = vpop.f32.mrb[0].mxu0
      %v475 = vpop.f32.mrb[0].mxu0
      %v476 = vadd.f32 %v399, %v475
      %v477 = vpop.f32.mrb[0].mxu0
      %478 = vdwg.mxu0
      %v479 = vld [vmem:[%s338] sm:$0xf]
      %v480 = vld [vmem:[%s338 + $0x4] sm:$0xf]
      %v481 = vld [vmem:[%s338 + $0x8] sm:$0xf]
      %v482 = vld [vmem:[%s338 + $0xc] sm:$0xf]
      %v487 = vunpack.c.l.b16 %v369
      %v488 = vunpack.c.l.b16 %v370
      %v489 = vunpack.c.l.b16 %v371
      %v490 = vunpack.c.l.b16 %v372
      %v491 = vpack.c.b16 %v488, %v487
      %v492 = vpack.c.b16 %v490, %v489
      %v497 = vunpack.c.l.b16 %v479
      %v498 = vunpack.c.l.b16 %v480
      %v499 = vunpack.c.l.b16 %v481
      %v500 = vunpack.c.l.b16 %v482
      %v501 = vpack.c.b16 %v498, %v497
      %v502 = vpack.c.b16 %v500, %v499
      %v506 = vsel %vm423, %v491, 0
      %v509 = vsel %vm423, %v492, 0
      %511 = vmatprep.subr.bf16.mxu0 0
      %512 = vmatpush1.bf16.msra.mxu0 %v501
      %513 = vmatprep.subr.bf16.mxu0 0
      %514 = vmatpush1.bf16.msra.mxu0 %v502
      %515 = vmatprep.subr.bf16.mxu0 0
      %516 = vmatpush1.bf16.msra.mxu0 0
      %517 = vmatprep.subr.bf16.mxu0 0
      %518 = vmatpush1.bf16.msra.mxu0 0
      %519 = vmatprep.subr.bf16.mxu0 0
      %520 = vmatpush1.bf16.msra.mxu0 0
      %521 = vmatprep.subr.bf16.mxu0 0
      %522 = vmatpush1.bf16.msra.mxu0 0
      %523 = vmatprep.subr.bf16.mxu0 0
      %524 = vmatpush1.bf16.msra.mxu0 0
      %525 = vmatprep.subr.bf16.mxu0 0
      %526 = vmatpush1.bf16.msra.mxu0 0
      %527 = vmatprep.subr.bf16.mxu0 0
      %528 = vmatpush1.bf16.msra.mxu0 0
      %529 = vmatprep.subr.bf16.mxu0 0
      %530 = vmatpush1.bf16.msra.mxu0 0
      %531 = vmatprep.subr.bf16.mxu0 0
      %532 = vmatpush1.bf16.msra.mxu0 0
      %533 = vmatprep.subr.bf16.mxu0 0
      %534 = vmatpush1.bf16.msra.mxu0 0
      %535 = vmatprep.subr.bf16.mxu0 0
      %536 = vmatpush1.bf16.msra.mxu0 0
      %537 = vmatprep.subr.bf16.mxu0 0
      %538 = vmatpush1.bf16.msra.mxu0 0
      %539 = vmatprep.subr.bf16.mxu0 0
      %540 = vmatpush1.bf16.msra.mxu0 0
      %541 = vmatprep.subr.bf16.mxu0 0
      %542 = vmatpush1.bf16.msra.mxu0 0
      %543 = vmatprep.mubr.bf16.mxu0 0
      %544 = vmatmul.mubr.bf16.gmra.mrb[0].mxu0 %v506
      %v545 = vpop.f32.mrb[0].mxu0
      %v546 = vadd.f32 %v465, %v545
      %v547 = vpop.f32.mrb[0].mxu0
      %v548 = vpop.f32.mrb[0].mxu0
      %v549 = vadd.f32 %v468, %v548
      %v550 = vpop.f32.mrb[0].mxu0
      %551 = vmatprep.mubr.bf16.mxu0 0
      %552 = vmatmul.mubr.bf16.gmra.mrb[0].mxu0 %v509
      %v553 = vpop.f32.mrb[0].mxu0
      %v554 = vadd.f32 %v473, %v553
      %v555 = vpop.f32.mrb[0].mxu0
      %v556 = vpop.f32.mrb[0].mxu0
      %v557 = vadd.f32 %v476, %v556
      %v558 = vpop.f32.mrb[0].mxu0
      %559 = vdwg.mxu0
      %v560 = vmax.f32 %v546, 0.0
      %v561 = vmax.f32 %v549, 0.0
      %v562 = vmax.f32 %v554, 0.0
      %v563 = vmax.f32 %v557, 0.0
      %s564 = scalar_lea.vmem %s338, 16
      %v565 = vld [vmem:[%s564] sm:$0xf]
      %v566 = vld [vmem:[%s564 + $0x4] sm:$0xf]
      %v567 = vld [vmem:[%s564 + $0x8] sm:$0xf]
      %v568 = vld [vmem:[%s564 + $0xc] sm:$0xf]
      %v573 = vunpack.c.l.b16 %v565
      %v574 = vunpack.c.l.b16 %v566
      %v575 = vunpack.c.l.b16 %v567
      %v576 = vunpack.c.l.b16 %v568
      %v577 = vpack.c.b16 %v574, %v573
      %v578 = vpack.c.b16 %v576, %v575
      %581 = vmatprep.subr.bf16.mxu0 0
      %582 = vmatpush1.bf16.msra.mxu0 %v577
      %583 = vmatprep.subr.bf16.mxu0 0
      %584 = vmatpush1.bf16.msra.mxu0 %v578
      %585 = vmatprep.subr.bf16.mxu0 0
      %586 = vmatpush1.bf16.msra.mxu0 0
      %587 = vmatprep.subr.bf16.mxu0 0
      %588 = vmatpush1.bf16.msra.mxu0 0
      %589 = vmatprep.subr.bf16.mxu0 0
      %590 = vmatpush1.bf16.msra.mxu0 0
      %591 = vmatprep.subr.bf16.mxu0 0
      %592 = vmatpush1.bf16.msra.mxu0 0
      %593 = vmatprep.subr.bf16.mxu0 0
      %594 = vmatpush1.bf16.msra.mxu0 0
      %595 = vmatprep.subr.bf16.mxu0 0
      %596 = vmatpush1.bf16.msra.mxu0 0
      %597 = vmatprep.subr.bf16.mxu0 0
      %598 = vmatpush1.bf16.msra.mxu0 0
      %599 = vmatprep.subr.bf16.mxu0 0
      %600 = vmatpush1.bf16.msra.mxu0 0
      %601 = vmatprep.subr.bf16.mxu0 0
      %602 = vmatpush1.bf16.msra.mxu0 0
      %603 = vmatprep.subr.bf16.mxu0 0
      %604 = vmatpush1.bf16.msra.mxu0 0
      %605 = vmatprep.subr.bf16.mxu0 0
      %606 = vmatpush1.bf16.msra.mxu0 0
      %607 = vmatprep.subr.bf16.mxu0 0
      %608 = vmatpush1.bf16.msra.mxu0 0
      %609 = vmatprep.subr.bf16.mxu0 0
      %610 = vmatpush1.bf16.msra.mxu0 0
      %611 = vmatprep.subr.bf16.mxu0 0
      %612 = vmatpush1.bf16.msra.mxu0 0
      %613 = vmatprep.mubr.bf16.mxu0 0
      %614 = vmatmul.mubr.bf16.gmra.mrb[0].mxu0 %v506
      %v615 = vpop.f32.mrb[0].mxu0
      %v616 = vadd.f32 %v465, %v615
      %v617 = vpop.f32.mrb[0].mxu0
      %v618 = vpop.f32.mrb[0].mxu0
      %v619 = vadd.f32 %v468, %v618
      %v620 = vpop.f32.mrb[0].mxu0
      %621 = vmatprep.mubr.bf16.mxu0 0
      %622 = vmatmul.mubr.bf16.gmra.mrb[0].mxu0 %v509
      %v623 = vpop.f32.mrb[0].mxu0
      %v624 = vadd.f32 %v473, %v623
      %v625 = vpop.f32.mrb[0].mxu0
      %v626 = vpop.f32.mrb[0].mxu0
      %v627 = vadd.f32 %v476, %v626
      %v628 = vpop.f32.mrb[0].mxu0
      %629 = vdwg.mxu0
      %v630 = vmax.f32 %v616, 0.0
      %v631 = vmax.f32 %v619, 0.0
      %v632 = vmax.f32 %v624, 0.0
      %v633 = vmax.f32 %v627, 0.0
      %v634 = vmax.f32 %v560, %v630
      %v635 = vmax.f32 %v561, %v631
      %v636 = vmax.f32 %v562, %v632
      %v637 = vmax.f32 %v563, %v633
      %v638 = vmax.bf16 %v479, %v565
      %v639 = vmax.bf16 %v480, %v566
      %v640 = vmax.bf16 %v481, %v567
      %v641 = vmax.bf16 %v482, %v568
      %s642 = scalar_lea.vmem %s338, 32
      %v643 = vld [vmem:[%s642] sm:$0xf]
      %v644 = vld [vmem:[%s642 + $0x4] sm:$0xf]
      %v645 = vld [vmem:[%s642 + $0x8] sm:$0xf]
      %v646 = vld [vmem:[%s642 + $0xc] sm:$0xf]
      %v651 = vunpack.c.l.b16 %v643
      %v652 = vunpack.c.l.b16 %v644
      %v653 = vunpack.c.l.b16 %v645
      %v654 = vunpack.c.l.b16 %v646
      %v655 = vpack.c.b16 %v652, %v651
      %v656 = vpack.c.b16 %v654, %v653
      %659 = vmatprep.subr.bf16.mxu0 0
      %660 = vmatpush1.bf16.msra.mxu0 %v655
      %661 = vmatprep.subr.bf16.mxu0 0
      %662 = vmatpush1.bf16.msra.mxu0 %v656
      %663 = vmatprep.subr.bf16.mxu0 0
      %664 = vmatpush1.bf16.msra.mxu0 0
      %665 = vmatprep.subr.bf16.mxu0 0
      %666 = vmatpush1.bf16.msra.mxu0 0
      %667 = vmatprep.subr.bf16.mxu0 0
      %668 = vmatpush1.bf16.msra.mxu0 0
      %669 = vmatprep.subr.bf16.mxu0 0
      %670 = vmatpush1.bf16.msra.mxu0 0
      %671 = vmatprep.subr.bf16.mxu0 0
      %672 = vmatpush1.bf16.msra.mxu0 0
      %673 = vmatprep.subr.bf16.mxu0 0
      %674 = vmatpush1.bf16.msra.mxu0 0
      %675 = vmatprep.subr.bf16.mxu0 0
      %676 = vmatpush1.bf16.msra.mxu0 0
      %677 = vmatprep.subr.bf16.mxu0 0
      %678 = vmatpush1.bf16.msra.mxu0 0
      %679 = vmatprep.subr.bf16.mxu0 0
      %680 = vmatpush1.bf16.msra.mxu0 0
      %681 = vmatprep.subr.bf16.mxu0 0
      %682 = vmatpush1.bf16.msra.mxu0 0
      %683 = vmatprep.subr.bf16.mxu0 0
      %684 = vmatpush1.bf16.msra.mxu0 0
      %685 = vmatprep.subr.bf16.mxu0 0
      %686 = vmatpush1.bf16.msra.mxu0 0
      %687 = vmatprep.subr.bf16.mxu0 0
      %688 = vmatpush1.bf16.msra.mxu0 0
      %689 = vmatprep.subr.bf16.mxu0 0
      %690 = vmatpush1.bf16.msra.mxu0 0
      %691 = vmatprep.mubr.bf16.mxu0 0
      %692 = vmatmul.mubr.bf16.gmra.mrb[0].mxu0 %v506
      %v693 = vpop.f32.mrb[0].mxu0
      %v694 = vadd.f32 %v465, %v693
      %v695 = vpop.f32.mrb[0].mxu0
      %v696 = vpop.f32.mrb[0].mxu0
      %v697 = vadd.f32 %v468, %v696
      %v698 = vpop.f32.mrb[0].mxu0
      %699 = vmatprep.mubr.bf16.mxu0 0
      %700 = vmatmul.mubr.bf16.gmra.mrb[0].mxu0 %v509
      %v701 = vpop.f32.mrb[0].mxu0
      %v702 = vadd.f32 %v473, %v701
      %v703 = vpop.f32.mrb[0].mxu0
      %v704 = vpop.f32.mrb[0].mxu0
      %v705 = vadd.f32 %v476, %v704
      %v706 = vpop.f32.mrb[0].mxu0
      %707 = vdwg.mxu0
      %v708 = vmax.f32 %v694, 0.0
      %v709 = vmax.f32 %v697, 0.0
      %v710 = vmax.f32 %v702, 0.0
      %v711 = vmax.f32 %v705, 0.0
      %v712 = vmax.f32 %v634, %v708
      %v713 = vmax.f32 %v635, %v709
      %v714 = vmax.f32 %v636, %v710
      %v715 = vmax.f32 %v637, %v711
      %v716 = vmax.bf16 %v638, %v643
      %v717 = vmax.bf16 %v639, %v644
      %v718 = vmax.bf16 %v640, %v645
      %v719 = vmax.bf16 %v641, %v646
      %s720 = scalar_lea.vmem %s338, 48
      %v721 = vld [vmem:[%s720] sm:$0xf]
      %v722 = vld [vmem:[%s720 + $0x4] sm:$0xf]
      %v723 = vld [vmem:[%s720 + $0x8] sm:$0xf]
      %v724 = vld [vmem:[%s720 + $0xc] sm:$0xf]
      %v729 = vunpack.c.l.b16 %v721
      %v730 = vunpack.c.l.b16 %v722
      %v731 = vunpack.c.l.b16 %v723
      %v732 = vunpack.c.l.b16 %v724
      %v733 = vpack.c.b16 %v730, %v729
      %v734 = vpack.c.b16 %v732, %v731
      %737 = vmatprep.subr.bf16.mxu0 0
      %738 = vmatpush1.bf16.msra.mxu0 %v733
      %739 = vmatprep.subr.bf16.mxu0 0
      %740 = vmatpush1.bf16.msra.mxu0 %v734
      %741 = vmatprep.subr.bf16.mxu0 0
      %742 = vmatpush1.bf16.msra.mxu0 0
      %743 = vmatprep.subr.bf16.mxu0 0
      %744 = vmatpush1.bf16.msra.mxu0 0
      %745 = vmatprep.subr.bf16.mxu0 0
      %746 = vmatpush1.bf16.msra.mxu0 0
      %747 = vmatprep.subr.bf16.mxu0 0
      %748 = vmatpush1.bf16.msra.mxu0 0
      %749 = vmatprep.subr.bf16.mxu0 0
      %750 = vmatpush1.bf16.msra.mxu0 0
      %751 = vmatprep.subr.bf16.mxu0 0
      %752 = vmatpush1.bf16.msra.mxu0 0
      %753 = vmatprep.subr.bf16.mxu0 0
      %754 = vmatpush1.bf16.msra.mxu0 0
      %755 = vmatprep.subr.bf16.mxu0 0
      %756 = vmatpush1.bf16.msra.mxu0 0
      %757 = vmatprep.subr.bf16.mxu0 0
      %758 = vmatpush1.bf16.msra.mxu0 0
      %759 = vmatprep.subr.bf16.mxu0 0
      %760 = vmatpush1.bf16.msra.mxu0 0
      %761 = vmatprep.subr.bf16.mxu0 0
      %762 = vmatpush1.bf16.msra.mxu0 0
      %763 = vmatprep.subr.bf16.mxu0 0
      %764 = vmatpush1.bf16.msra.mxu0 0
      %765 = vmatprep.subr.bf16.mxu0 0
      %766 = vmatpush1.bf16.msra.mxu0 0
      %767 = vmatprep.subr.bf16.mxu0 0
      %768 = vmatpush1.bf16.msra.mxu0 0
      %769 = vmatprep.mubr.bf16.mxu0 0
      %770 = vmatmul.mubr.bf16.gmra.mrb[0].mxu0 %v506
      %v771 = vpop.f32.mrb[0].mxu0
      %v772 = vadd.f32 %v465, %v771
      %v773 = vpop.f32.mrb[0].mxu0
      %v774 = vpop.f32.mrb[0].mxu0
      %v775 = vadd.f32 %v468, %v774
      %v776 = vpop.f32.mrb[0].mxu0
      %777 = vmatprep.mubr.bf16.mxu0 0
      %778 = vmatmul.mubr.bf16.gmra.mrb[0].mxu0 %v509
      %v779 = vpop.f32.mrb[0].mxu0
      %v780 = vadd.f32 %v473, %v779
      %v781 = vpop.f32.mrb[0].mxu0
      %v782 = vpop.f32.mrb[0].mxu0
      %v783 = vadd.f32 %v476, %v782
      %v784 = vpop.f32.mrb[0].mxu0
      %785 = vdwg.mxu0
      %v786 = vmax.f32 %v772, 0.0
      %v787 = vmax.f32 %v775, 0.0
      %v788 = vmax.f32 %v780, 0.0
      %v789 = vmax.f32 %v783, 0.0
      %v790 = vmax.f32 %v712, %v786
      %v791 = vmax.f32 %v713, %v787
      %v792 = vmax.f32 %v714, %v788
      %v793 = vmax.f32 %v715, %v789
      %v794 = vmax.bf16 %v716, %v721
      %v795 = vmax.bf16 %v717, %v722
      %v796 = vmax.bf16 %v718, %v723
      %v797 = vmax.bf16 %v719, %v724
      %s798 = scalar_lea.vmem %s338, 64
      %v799 = vld [vmem:[%s798] sm:$0xf]
      %v800 = vld [vmem:[%s798 + $0x4] sm:$0xf]
      %v801 = vld [vmem:[%s798 + $0x8] sm:$0xf]
      %v802 = vld [vmem:[%s798 + $0xc] sm:$0xf]
      %v807 = vunpack.c.l.b16 %v799
      %v808 = vunpack.c.l.b16 %v800
      %v809 = vunpack.c.l.b16 %v801
      %v810 = vunpack.c.l.b16 %v802
      %v811 = vpack.c.b16 %v808, %v807
      %v812 = vpack.c.b16 %v810, %v809
      %815 = vmatprep.subr.bf16.mxu0 0
      %816 = vmatpush1.bf16.msra.mxu0 %v811
      %817 = vmatprep.subr.bf16.mxu0 0
      %818 = vmatpush1.bf16.msra.mxu0 %v812
      %819 = vmatprep.subr.bf16.mxu0 0
      %820 = vmatpush1.bf16.msra.mxu0 0
      %821 = vmatprep.subr.bf16.mxu0 0
      %822 = vmatpush1.bf16.msra.mxu0 0
      %823 = vmatprep.subr.bf16.mxu0 0
      %824 = vmatpush1.bf16.msra.mxu0 0
      %825 = vmatprep.subr.bf16.mxu0 0
      %826 = vmatpush1.bf16.msra.mxu0 0
      %827 = vmatprep.subr.bf16.mxu0 0
      %828 = vmatpush1.bf16.msra.mxu0 0
      %829 = vmatprep.subr.bf16.mxu0 0
      %830 = vmatpush1.bf16.msra.mxu0 0
      %831 = vmatprep.subr.bf16.mxu0 0
      %832 = vmatpush1.bf16.msra.mxu0 0
      %833 = vmatprep.subr.bf16.mxu0 0
      %834 = vmatpush1.bf16.msra.mxu0 0
      %835 = vmatprep.subr.bf16.mxu0 0
      %836 = vmatpush1.bf16.msra.mxu0 0
      %837 = vmatprep.subr.bf16.mxu0 0
      %838 = vmatpush1.bf16.msra.mxu0 0
      %839 = vmatprep.subr.bf16.mxu0 0
      %840 = vmatpush1.bf16.msra.mxu0 0
      %841 = vmatprep.subr.bf16.mxu0 0
      %842 = vmatpush1.bf16.msra.mxu0 0
      %843 = vmatprep.subr.bf16.mxu0 0
      %844 = vmatpush1.bf16.msra.mxu0 0
      %845 = vmatprep.subr.bf16.mxu0 0
      %846 = vmatpush1.bf16.msra.mxu0 0
      %847 = vmatprep.mubr.bf16.mxu0 0
      %848 = vmatmul.mubr.bf16.gmra.mrb[0].mxu0 %v506
      %v849 = vpop.f32.mrb[0].mxu0
      %v850 = vadd.f32 %v465, %v849
      %v851 = vpop.f32.mrb[0].mxu0
      %v852 = vpop.f32.mrb[0].mxu0
      %v853 = vadd.f32 %v468, %v852
      %v854 = vpop.f32.mrb[0].mxu0
      %855 = vmatprep.mubr.bf16.mxu0 0
      %856 = vmatmul.mubr.bf16.gmra.mrb[0].mxu0 %v509
      %v857 = vpop.f32.mrb[0].mxu0
      %v858 = vadd.f32 %v473, %v857
      %v859 = vpop.f32.mrb[0].mxu0
      %v860 = vpop.f32.mrb[0].mxu0
      %v861 = vadd.f32 %v476, %v860
      %v862 = vpop.f32.mrb[0].mxu0
      %863 = vdwg.mxu0
      %v864 = vmax.f32 %v850, 0.0
      %v865 = vmax.f32 %v853, 0.0
      %v866 = vmax.f32 %v858, 0.0
      %v867 = vmax.f32 %v861, 0.0
      %v868 = vmax.f32 %v790, %v864
      %v869 = vmax.f32 %v791, %v865
      %v870 = vmax.f32 %v792, %v866
      %v871 = vmax.f32 %v793, %v867
      %v872 = vmax.bf16 %v794, %v799
      %v873 = vmax.bf16 %v795, %v800
      %v874 = vmax.bf16 %v796, %v801
      %v875 = vmax.bf16 %v797, %v802
      %s876 = scalar_lea.vmem %s338, 80
      %v877 = vld [vmem:[%s876] sm:$0xf]
      %v878 = vld [vmem:[%s876 + $0x4] sm:$0xf]
      %v879 = vld [vmem:[%s876 + $0x8] sm:$0xf]
      %v880 = vld [vmem:[%s876 + $0xc] sm:$0xf]
      %v885 = vunpack.c.l.b16 %v877
      %v886 = vunpack.c.l.b16 %v878
      %v887 = vunpack.c.l.b16 %v879
      %v888 = vunpack.c.l.b16 %v880
      %v889 = vpack.c.b16 %v886, %v885
      %v890 = vpack.c.b16 %v888, %v887
      %893 = vmatprep.subr.bf16.mxu0 0
      %894 = vmatpush1.bf16.msra.mxu0 %v889
      %895 = vmatprep.subr.bf16.mxu0 0
      %896 = vmatpush1.bf16.msra.mxu0 %v890
      %897 = vmatprep.subr.bf16.mxu0 0
      %898 = vmatpush1.bf16.msra.mxu0 0
      %899 = vmatprep.subr.bf16.mxu0 0
      %900 = vmatpush1.bf16.msra.mxu0 0
      %901 = vmatprep.subr.bf16.mxu0 0
      %902 = vmatpush1.bf16.msra.mxu0 0
      %903 = vmatprep.subr.bf16.mxu0 0
      %904 = vmatpush1.bf16.msra.mxu0 0
      %905 = vmatprep.subr.bf16.mxu0 0
      %906 = vmatpush1.bf16.msra.mxu0 0
      %907 = vmatprep.subr.bf16.mxu0 0
      %908 = vmatpush1.bf16.msra.mxu0 0
      %909 = vmatprep.subr.bf16.mxu0 0
      %910 = vmatpush1.bf16.msra.mxu0 0
      %911 = vmatprep.subr.bf16.mxu0 0
      %912 = vmatpush1.bf16.msra.mxu0 0
      %913 = vmatprep.subr.bf16.mxu0 0
      %914 = vmatpush1.bf16.msra.mxu0 0
      %915 = vmatprep.subr.bf16.mxu0 0
      %916 = vmatpush1.bf16.msra.mxu0 0
      %917 = vmatprep.subr.bf16.mxu0 0
      %918 = vmatpush1.bf16.msra.mxu0 0
      %919 = vmatprep.subr.bf16.mxu0 0
      %920 = vmatpush1.bf16.msra.mxu0 0
      %921 = vmatprep.subr.bf16.mxu0 0
      %922 = vmatpush1.bf16.msra.mxu0 0
      %923 = vmatprep.subr.bf16.mxu0 0
      %924 = vmatpush1.bf16.msra.mxu0 0
      %925 = vmatprep.mubr.bf16.mxu0 0
      %926 = vmatmul.mubr.bf16.gmra.mrb[0].mxu0 %v506
      %v927 = vpop.f32.mrb[0].mxu0
      %v928 = vadd.f32 %v465, %v927
      %v929 = vpop.f32.mrb[0].mxu0
      %v930 = vpop.f32.mrb[0].mxu0
      %v931 = vadd.f32 %v468, %v930
      %v932 = vpop.f32.mrb[0].mxu0
      %933 = vmatprep.mubr.bf16.mxu0 0
      %934 = vmatmul.mubr.bf16.gmra.mrb[0].mxu0 %v509
      %v935 = vpop.f32.mrb[0].mxu0
      %v936 = vadd.f32 %v473, %v935
      %v937 = vpop.f32.mrb[0].mxu0
      %v938 = vpop.f32.mrb[0].mxu0
      %v939 = vadd.f32 %v476, %v938
      %v940 = vpop.f32.mrb[0].mxu0
      %941 = vdwg.mxu0
      %v942 = vmax.f32 %v928, 0.0
      %v943 = vmax.f32 %v931, 0.0
      %v944 = vmax.f32 %v936, 0.0
      %v945 = vmax.f32 %v939, 0.0
      %v946 = vmax.f32 %v868, %v942
      %v947 = vmax.f32 %v869, %v943
      %v948 = vmax.f32 %v870, %v944
      %v949 = vmax.f32 %v871, %v945
      %v950 = vmax.bf16 %v872, %v877
      %v951 = vmax.bf16 %v873, %v878
      %v952 = vmax.bf16 %v874, %v879
      %v953 = vmax.bf16 %v875, %v880
      %s954 = scalar_lea.vmem %s338, 96
      %v955 = vld [vmem:[%s954] sm:$0xf]
      %v956 = vld [vmem:[%s954 + $0x4] sm:$0xf]
      %v957 = vld [vmem:[%s954 + $0x8] sm:$0xf]
      %v958 = vld [vmem:[%s954 + $0xc] sm:$0xf]
      %v963 = vunpack.c.l.b16 %v955
      %v964 = vunpack.c.l.b16 %v956
      %v965 = vunpack.c.l.b16 %v957
      %v966 = vunpack.c.l.b16 %v958
      %v967 = vpack.c.b16 %v964, %v963
      %v968 = vpack.c.b16 %v966, %v965
      %971 = vmatprep.subr.bf16.mxu0 0
      %972 = vmatpush1.bf16.msra.mxu0 %v967
      %973 = vmatprep.subr.bf16.mxu0 0
      %974 = vmatpush1.bf16.msra.mxu0 %v968
      %975 = vmatprep.subr.bf16.mxu0 0
      %976 = vmatpush1.bf16.msra.mxu0 0
      %977 = vmatprep.subr.bf16.mxu0 0
      %978 = vmatpush1.bf16.msra.mxu0 0
      %979 = vmatprep.subr.bf16.mxu0 0
      %980 = vmatpush1.bf16.msra.mxu0 0
      %981 = vmatprep.subr.bf16.mxu0 0
      %982 = vmatpush1.bf16.msra.mxu0 0
      %983 = vmatprep.subr.bf16.mxu0 0
      %984 = vmatpush1.bf16.msra.mxu0 0
      %985 = vmatprep.subr.bf16.mxu0 0
      %986 = vmatpush1.bf16.msra.mxu0 0
      %987 = vmatprep.subr.bf16.mxu0 0
      %988 = vmatpush1.bf16.msra.mxu0 0
      %989 = vmatprep.subr.bf16.mxu0 0
      %990 = vmatpush1.bf16.msra.mxu0 0
      %991 = vmatprep.subr.bf16.mxu0 0
      %992 = vmatpush1.bf16.msra.mxu0 0
      %993 = vmatprep.subr.bf16.mxu0 0
      %994 = vmatpush1.bf16.msra.mxu0 0
      %995 = vmatprep.subr.bf16.mxu0 0
      %996 = vmatpush1.bf16.msra.mxu0 0
      %997 = vmatprep.subr.bf16.mxu0 0
      %998 = vmatpush1.bf16.msra.mxu0 0
      %999 = vmatprep.subr.bf16.mxu0 0
      %1000 = vmatpush1.bf16.msra.mxu0 0
      %1001 = vmatprep.subr.bf16.mxu0 0
      %1002 = vmatpush1.bf16.msra.mxu0 0
      %1003 = vmatprep.mubr.bf16.mxu0 0
      %1004 = vmatmul.mubr.bf16.gmra.mrb[0].mxu0 %v506
      %v1005 = vpop.f32.mrb[0].mxu0
      %v1006 = vadd.f32 %v465, %v1005
      %v1007 = vpop.f32.mrb[0].mxu0
      %v1008 = vpop.f32.mrb[0].mxu0
      %v1009 = vadd.f32 %v468, %v1008
      %v1010 = vpop.f32.mrb[0].mxu0
      %1011 = vmatprep.mubr.bf16.mxu0 0
      %1012 = vmatmul.mubr.bf16.gmra.mrb[0].mxu0 %v509
      %v1013 = vpop.f32.mrb[0].mxu0
      %v1014 = vadd.f32 %v473, %v1013
      %v1015 = vpop.f32.mrb[0].mxu0
      %v1016 = vpop.f32.mrb[0].mxu0
      %v1017 = vadd.f32 %v476, %v1016
      %v1018 = vpop.f32.mrb[0].mxu0
      %1019 = vdwg.mxu0
      %v1020 = vmax.f32 %v1006, 0.0
      %v1021 = vmax.f32 %v1009, 0.0
      %v1022 = vmax.f32 %v1014, 0.0
      %v1023 = vmax.f32 %v1017, 0.0
      %v1024 = vmax.f32 %v946, %v1020
      %v1025 = vmax.f32 %v947, %v1021
      %v1026 = vmax.f32 %v948, %v1022
      %v1027 = vmax.f32 %v949, %v1023
      %v1028 = vmax.bf16 %v950, %v955
      %v1029 = vmax.bf16 %v951, %v956
      %v1030 = vmax.bf16 %v952, %v957
      %v1031 = vmax.bf16 %v953, %v958
      %s1032 = scalar_lea.vmem %s338, 112
      %v1033 = vld [vmem:[%s1032] sm:$0xf]
      %v1034 = vld [vmem:[%s1032 + $0x4] sm:$0xf]
      %v1035 = vld [vmem:[%s1032 + $0x8] sm:$0xf]
      %v1036 = vld [vmem:[%s1032 + $0xc] sm:$0xf]
      %v1041 = vunpack.c.l.b16 %v1033
      %v1042 = vunpack.c.l.b16 %v1034
      %v1043 = vunpack.c.l.b16 %v1035
      %v1044 = vunpack.c.l.b16 %v1036
      %v1045 = vpack.c.b16 %v1042, %v1041
      %v1046 = vpack.c.b16 %v1044, %v1043
      %1049 = vmatprep.subr.bf16.mxu0 0
      %1050 = vmatpush1.bf16.msra.mxu0 %v1045
      %1051 = vmatprep.subr.bf16.mxu0 0
      %1052 = vmatpush1.bf16.msra.mxu0 %v1046
      %1053 = vmatprep.subr.bf16.mxu0 0
      %1054 = vmatpush1.bf16.msra.mxu0 0
      %1055 = vmatprep.subr.bf16.mxu0 0
      %1056 = vmatpush1.bf16.msra.mxu0 0
      %1057 = vmatprep.subr.bf16.mxu0 0
      %1058 = vmatpush1.bf16.msra.mxu0 0
      %1059 = vmatprep.subr.bf16.mxu0 0
      %1060 = vmatpush1.bf16.msra.mxu0 0
      %1061 = vmatprep.subr.bf16.mxu0 0
      %1062 = vmatpush1.bf16.msra.mxu0 0
      %1063 = vmatprep.subr.bf16.mxu0 0
      %1064 = vmatpush1.bf16.msra.mxu0 0
      %1065 = vmatprep.subr.bf16.mxu0 0
      %1066 = vmatpush1.bf16.msra.mxu0 0
      %1067 = vmatprep.subr.bf16.mxu0 0
      %1068 = vmatpush1.bf16.msra.mxu0 0
      %1069 = vmatprep.subr.bf16.mxu0 0
      %1070 = vmatpush1.bf16.msra.mxu0 0
      %1071 = vmatprep.subr.bf16.mxu0 0
      %1072 = vmatpush1.bf16.msra.mxu0 0
      %1073 = vmatprep.subr.bf16.mxu0 0
      %1074 = vmatpush1.bf16.msra.mxu0 0
      %1075 = vmatprep.subr.bf16.mxu0 0
      %1076 = vmatpush1.bf16.msra.mxu0 0
      %1077 = vmatprep.subr.bf16.mxu0 0
      %1078 = vmatpush1.bf16.msra.mxu0 0
      %1079 = vmatprep.subr.bf16.mxu0 0
      %1080 = vmatpush1.bf16.msra.mxu0 0
      %1081 = vmatprep.mubr.bf16.mxu0 0
      %1082 = vmatmul.mubr.bf16.gmra.mrb[0].mxu0 %v506
      %v1083 = vpop.f32.mrb[0].mxu0
      %v1084 = vadd.f32 %v465, %v1083
      %v1085 = vpop.f32.mrb[0].mxu0
      %v1086 = vpop.f32.mrb[0].mxu0
      %v1087 = vadd.f32 %v468, %v1086
      %v1088 = vpop.f32.mrb[0].mxu0
      %1089 = vmatprep.mubr.bf16.mxu0 0
      %1090 = vmatmul.mubr.bf16.gmra.mrb[0].mxu0 %v509
      %v1091 = vpop.f32.mrb[0].mxu0
      %v1092 = vadd.f32 %v473, %v1091
      %v1093 = vpop.f32.mrb[0].mxu0
      %v1094 = vpop.f32.mrb[0].mxu0
      %v1095 = vadd.f32 %v476, %v1094
      %v1096 = vpop.f32.mrb[0].mxu0
      %1097 = vdwg.mxu0
      %v1098 = vmax.f32 %v1084, 0.0
      %v1099 = vmax.f32 %v1087, 0.0
      %v1100 = vmax.f32 %v1092, 0.0
      %v1101 = vmax.f32 %v1095, 0.0
      %v1102 = vmax.f32 %v1024, %v1098
      %v1103 = vmax.f32 %v1025, %v1099
      %v1104 = vmax.f32 %v1026, %v1100
      %v1105 = vmax.f32 %v1027, %v1101
      %v1106 = vmax.bf16 %v1028, %v1033
      %v1107 = vmax.bf16 %v1029, %v1034
      %v1108 = vmax.bf16 %v1030, %v1035
      %v1109 = vmax.bf16 %v1031, %v1036
      %s1110 = scalar_lea.vmem %s338, 128
      %v1111 = vld [vmem:[%s1110] sm:$0xf]
      %v1112 = vld [vmem:[%s1110 + $0x4] sm:$0xf]
      %v1113 = vld [vmem:[%s1110 + $0x8] sm:$0xf]
      %v1114 = vld [vmem:[%s1110 + $0xc] sm:$0xf]
      %v1119 = vunpack.c.l.b16 %v1111
      %v1120 = vunpack.c.l.b16 %v1112
      %v1121 = vunpack.c.l.b16 %v1113
      %v1122 = vunpack.c.l.b16 %v1114
      %v1123 = vpack.c.b16 %v1120, %v1119
      %v1124 = vpack.c.b16 %v1122, %v1121
      %1127 = vmatprep.subr.bf16.mxu0 0
      %1128 = vmatpush1.bf16.msra.mxu0 %v1123
      %1129 = vmatprep.subr.bf16.mxu0 0
      %1130 = vmatpush1.bf16.msra.mxu0 %v1124
      %1131 = vmatprep.subr.bf16.mxu0 0
      %1132 = vmatpush1.bf16.msra.mxu0 0
      %1133 = vmatprep.subr.bf16.mxu0 0
      %1134 = vmatpush1.bf16.msra.mxu0 0
      %1135 = vmatprep.subr.bf16.mxu0 0
      %1136 = vmatpush1.bf16.msra.mxu0 0
      %1137 = vmatprep.subr.bf16.mxu0 0
      %1138 = vmatpush1.bf16.msra.mxu0 0
      %1139 = vmatprep.subr.bf16.mxu0 0
      %1140 = vmatpush1.bf16.msra.mxu0 0
      %1141 = vmatprep.subr.bf16.mxu0 0
      %1142 = vmatpush1.bf16.msra.mxu0 0
      %1143 = vmatprep.subr.bf16.mxu0 0
      %1144 = vmatpush1.bf16.msra.mxu0 0
      %1145 = vmatprep.subr.bf16.mxu0 0
      %1146 = vmatpush1.bf16.msra.mxu0 0
      %1147 = vmatprep.subr.bf16.mxu0 0
      %1148 = vmatpush1.bf16.msra.mxu0 0
      %1149 = vmatprep.subr.bf16.mxu0 0
      %1150 = vmatpush1.bf16.msra.mxu0 0
      %1151 = vmatprep.subr.bf16.mxu0 0
      %1152 = vmatpush1.bf16.msra.mxu0 0
      %1153 = vmatprep.subr.bf16.mxu0 0
      %1154 = vmatpush1.bf16.msra.mxu0 0
      %1155 = vmatprep.subr.bf16.mxu0 0
      %1156 = vmatpush1.bf16.msra.mxu0 0
      %1157 = vmatprep.subr.bf16.mxu0 0
      %1158 = vmatpush1.bf16.msra.mxu0 0
      %1159 = vmatprep.mubr.bf16.mxu0 0
      %1160 = vmatmul.mubr.bf16.gmra.mrb[0].mxu0 %v506
      %v1161 = vpop.f32.mrb[0].mxu0
      %v1162 = vadd.f32 %v465, %v1161
      %v1163 = vpop.f32.mrb[0].mxu0
      %v1164 = vpop.f32.mrb[0].mxu0
      %v1165 = vadd.f32 %v468, %v1164
      %v1166 = vpop.f32.mrb[0].mxu0
      %1167 = vmatprep.mubr.bf16.mxu0 0
      %1168 = vmatmul.mubr.bf16.gmra.mrb[0].mxu0 %v509
      %v1169 = vpop.f32.mrb[0].mxu0
      %v1170 = vadd.f32 %v473, %v1169
      %v1171 = vpop.f32.mrb[0].mxu0
      %v1172 = vpop.f32.mrb[0].mxu0
      %v1173 = vadd.f32 %v476, %v1172
      %v1174 = vpop.f32.mrb[0].mxu0
      %1175 = vdwg.mxu0
      %v1176 = vmax.f32 %v1162, 0.0
      %v1177 = vmax.f32 %v1165, 0.0
      %v1178 = vmax.f32 %v1170, 0.0
      %v1179 = vmax.f32 %v1173, 0.0
      %v1180 = vmax.f32 %v1102, %v1176
      %v1181 = vmax.f32 %v1103, %v1177
      %v1182 = vmax.f32 %v1104, %v1178
      %v1183 = vmax.f32 %v1105, %v1179
      %v1184 = vmax.bf16 %v1106, %v1111
      %v1185 = vmax.bf16 %v1107, %v1112
      %v1186 = vmax.bf16 %v1108, %v1113
      %v1187 = vmax.bf16 %v1109, %v1114
      %s1188 = scalar_lea.vmem %s338, 144
      %v1189 = vld [vmem:[%s1188] sm:$0xf]
      %v1190 = vld [vmem:[%s1188 + $0x4] sm:$0xf]
      %v1191 = vld [vmem:[%s1188 + $0x8] sm:$0xf]
      %v1192 = vld [vmem:[%s1188 + $0xc] sm:$0xf]
      %v1197 = vunpack.c.l.b16 %v1189
      %v1198 = vunpack.c.l.b16 %v1190
      %v1199 = vunpack.c.l.b16 %v1191
      %v1200 = vunpack.c.l.b16 %v1192
      %v1201 = vpack.c.b16 %v1198, %v1197
      %v1202 = vpack.c.b16 %v1200, %v1199
      %1205 = vmatprep.subr.bf16.mxu0 0
      %1206 = vmatpush1.bf16.msra.mxu0 %v1201
      %1207 = vmatprep.subr.bf16.mxu0 0
      %1208 = vmatpush1.bf16.msra.mxu0 %v1202
      %1209 = vmatprep.subr.bf16.mxu0 0
      %1210 = vmatpush1.bf16.msra.mxu0 0
      %1211 = vmatprep.subr.bf16.mxu0 0
      %1212 = vmatpush1.bf16.msra.mxu0 0
      %1213 = vmatprep.subr.bf16.mxu0 0
      %1214 = vmatpush1.bf16.msra.mxu0 0
      %1215 = vmatprep.subr.bf16.mxu0 0
      %1216 = vmatpush1.bf16.msra.mxu0 0
      %1217 = vmatprep.subr.bf16.mxu0 0
      %1218 = vmatpush1.bf16.msra.mxu0 0
      %1219 = vmatprep.subr.bf16.mxu0 0
      %1220 = vmatpush1.bf16.msra.mxu0 0
      %1221 = vmatprep.subr.bf16.mxu0 0
      %1222 = vmatpush1.bf16.msra.mxu0 0
      %1223 = vmatprep.subr.bf16.mxu0 0
      %1224 = vmatpush1.bf16.msra.mxu0 0
      %1225 = vmatprep.subr.bf16.mxu0 0
      %1226 = vmatpush1.bf16.msra.mxu0 0
      %1227 = vmatprep.subr.bf16.mxu0 0
      %1228 = vmatpush1.bf16.msra.mxu0 0
      %1229 = vmatprep.subr.bf16.mxu0 0
      %1230 = vmatpush1.bf16.msra.mxu0 0
      %1231 = vmatprep.subr.bf16.mxu0 0
      %1232 = vmatpush1.bf16.msra.mxu0 0
      %1233 = vmatprep.subr.bf16.mxu0 0
      %1234 = vmatpush1.bf16.msra.mxu0 0
      %1235 = vmatprep.subr.bf16.mxu0 0
      %1236 = vmatpush1.bf16.msra.mxu0 0
      %1237 = vmatprep.mubr.bf16.mxu0 0
      %1238 = vmatmul.mubr.bf16.gmra.mrb[0].mxu0 %v506
      %v1239 = vpop.f32.mrb[0].mxu0
      %v1240 = vadd.f32 %v465, %v1239
      %v1241 = vpop.f32.mrb[0].mxu0
      %v1242 = vpop.f32.mrb[0].mxu0
      %v1243 = vadd.f32 %v468, %v1242
      %v1244 = vpop.f32.mrb[0].mxu0
      %1245 = vmatprep.mubr.bf16.mxu0 0
      %1246 = vmatmul.mubr.bf16.gmra.mrb[0].mxu0 %v509
      %v1247 = vpop.f32.mrb[0].mxu0
      %v1248 = vadd.f32 %v473, %v1247
      %v1249 = vpop.f32.mrb[0].mxu0
      %v1250 = vpop.f32.mrb[0].mxu0
      %v1251 = vadd.f32 %v476, %v1250
      %v1252 = vpop.f32.mrb[0].mxu0
      %1253 = vdwg.mxu0
      %v1254 = vmax.f32 %v1240, 0.0
      %v1255 = vmax.f32 %v1243, 0.0
      %v1256 = vmax.f32 %v1248, 0.0
      %v1257 = vmax.f32 %v1251, 0.0
      %v1258 = vmax.f32 %v1180, %v1254
      %v1259 = vmax.f32 %v1181, %v1255
      %v1260 = vmax.f32 %v1182, %v1256
      %v1261 = vmax.f32 %v1183, %v1257
      %v1262 = vmax.bf16 %v1184, %v1189
      %v1263 = vmax.bf16 %v1185, %v1190
      %v1264 = vmax.bf16 %v1186, %v1191
      %v1265 = vmax.bf16 %v1187, %v1192
      %s1266 = scalar_lea.vmem %s338, 160
      %v1267 = vld [vmem:[%s1266] sm:$0xf]
      %v1268 = vld [vmem:[%s1266 + $0x4] sm:$0xf]
      %v1269 = vld [vmem:[%s1266 + $0x8] sm:$0xf]
      %v1270 = vld [vmem:[%s1266 + $0xc] sm:$0xf]
      %v1275 = vunpack.c.l.b16 %v1267
      %v1276 = vunpack.c.l.b16 %v1268
      %v1277 = vunpack.c.l.b16 %v1269
      %v1278 = vunpack.c.l.b16 %v1270
      %v1279 = vpack.c.b16 %v1276, %v1275
      %v1280 = vpack.c.b16 %v1278, %v1277
      %1283 = vmatprep.subr.bf16.mxu0 0
      %1284 = vmatpush1.bf16.msra.mxu0 %v1279
      %1285 = vmatprep.subr.bf16.mxu0 0
      %1286 = vmatpush1.bf16.msra.mxu0 %v1280
      %1287 = vmatprep.subr.bf16.mxu0 0
      %1288 = vmatpush1.bf16.msra.mxu0 0
      %1289 = vmatprep.subr.bf16.mxu0 0
      %1290 = vmatpush1.bf16.msra.mxu0 0
      %1291 = vmatprep.subr.bf16.mxu0 0
      %1292 = vmatpush1.bf16.msra.mxu0 0
      %1293 = vmatprep.subr.bf16.mxu0 0
      %1294 = vmatpush1.bf16.msra.mxu0 0
      %1295 = vmatprep.subr.bf16.mxu0 0
      %1296 = vmatpush1.bf16.msra.mxu0 0
      %1297 = vmatprep.subr.bf16.mxu0 0
      %1298 = vmatpush1.bf16.msra.mxu0 0
      %1299 = vmatprep.subr.bf16.mxu0 0
      %1300 = vmatpush1.bf16.msra.mxu0 0
      %1301 = vmatprep.subr.bf16.mxu0 0
      %1302 = vmatpush1.bf16.msra.mxu0 0
      %1303 = vmatprep.subr.bf16.mxu0 0
      %1304 = vmatpush1.bf16.msra.mxu0 0
      %1305 = vmatprep.subr.bf16.mxu0 0
      %1306 = vmatpush1.bf16.msra.mxu0 0
      %1307 = vmatprep.subr.bf16.mxu0 0
      %1308 = vmatpush1.bf16.msra.mxu0 0
      %1309 = vmatprep.subr.bf16.mxu0 0
      %1310 = vmatpush1.bf16.msra.mxu0 0
      %1311 = vmatprep.subr.bf16.mxu0 0
      %1312 = vmatpush1.bf16.msra.mxu0 0
      %1313 = vmatprep.subr.bf16.mxu0 0
      %1314 = vmatpush1.bf16.msra.mxu0 0
      %1315 = vmatprep.mubr.bf16.mxu0 0
      %1316 = vmatmul.mubr.bf16.gmra.mrb[0].mxu0 %v506
      %v1317 = vpop.f32.mrb[0].mxu0
      %v1318 = vadd.f32 %v465, %v1317
      %v1319 = vpop.f32.mrb[0].mxu0
      %v1320 = vpop.f32.mrb[0].mxu0
      %v1321 = vadd.f32 %v468, %v1320
      %v1322 = vpop.f32.mrb[0].mxu0
      %1323 = vmatprep.mubr.bf16.mxu0 0
      %1324 = vmatmul.mubr.bf16.gmra.mrb[0].mxu0 %v509
      %v1325 = vpop.f32.mrb[0].mxu0
      %v1326 = vadd.f32 %v473, %v1325
      %v1327 = vpop.f32.mrb[0].mxu0
      %v1328 = vpop.f32.mrb[0].mxu0
      %v1329 = vadd.f32 %v476, %v1328
      %v1330 = vpop.f32.mrb[0].mxu0
      %1331 = vdwg.mxu0
      %v1332 = vmax.f32 %v1318, 0.0
      %v1333 = vmax.f32 %v1321, 0.0
      %v1334 = vmax.f32 %v1326, 0.0
      %v1335 = vmax.f32 %v1329, 0.0
      %v1336 = vmax.f32 %v1258, %v1332
      %v1337 = vmax.f32 %v1259, %v1333
      %v1338 = vmax.f32 %v1260, %v1334
      %v1339 = vmax.f32 %v1261, %v1335
      %v1340 = vmax.bf16 %v1262, %v1267
      %v1341 = vmax.bf16 %v1263, %v1268
      %v1342 = vmax.bf16 %v1264, %v1269
      %v1343 = vmax.bf16 %v1265, %v1270
      %s1344 = scalar_lea.vmem %s338, 176
      %v1345 = vld [vmem:[%s1344] sm:$0xf]
      %v1346 = vld [vmem:[%s1344 + $0x4] sm:$0xf]
      %v1347 = vld [vmem:[%s1344 + $0x8] sm:$0xf]
      %v1348 = vld [vmem:[%s1344 + $0xc] sm:$0xf]
      %v1353 = vunpack.c.l.b16 %v1345
      %v1354 = vunpack.c.l.b16 %v1346
      %v1355 = vunpack.c.l.b16 %v1347
      %v1356 = vunpack.c.l.b16 %v1348
      %v1357 = vpack.c.b16 %v1354, %v1353
      %v1358 = vpack.c.b16 %v1356, %v1355
      %1361 = vmatprep.subr.bf16.mxu0 0
      %1362 = vmatpush1.bf16.msra.mxu0 %v1357
      %1363 = vmatprep.subr.bf16.mxu0 0
      %1364 = vmatpush1.bf16.msra.mxu0 %v1358
      %1365 = vmatprep.subr.bf16.mxu0 0
      %1366 = vmatpush1.bf16.msra.mxu0 0
      %1367 = vmatprep.subr.bf16.mxu0 0
      %1368 = vmatpush1.bf16.msra.mxu0 0
      %1369 = vmatprep.subr.bf16.mxu0 0
      %1370 = vmatpush1.bf16.msra.mxu0 0
      %1371 = vmatprep.subr.bf16.mxu0 0
      %1372 = vmatpush1.bf16.msra.mxu0 0
      %1373 = vmatprep.subr.bf16.mxu0 0
      %1374 = vmatpush1.bf16.msra.mxu0 0
      %1375 = vmatprep.subr.bf16.mxu0 0
      %1376 = vmatpush1.bf16.msra.mxu0 0
      %1377 = vmatprep.subr.bf16.mxu0 0
      %1378 = vmatpush1.bf16.msra.mxu0 0
      %1379 = vmatprep.subr.bf16.mxu0 0
      %1380 = vmatpush1.bf16.msra.mxu0 0
      %1381 = vmatprep.subr.bf16.mxu0 0
      %1382 = vmatpush1.bf16.msra.mxu0 0
      %1383 = vmatprep.subr.bf16.mxu0 0
      %1384 = vmatpush1.bf16.msra.mxu0 0
      %1385 = vmatprep.subr.bf16.mxu0 0
      %1386 = vmatpush1.bf16.msra.mxu0 0
      %1387 = vmatprep.subr.bf16.mxu0 0
      %1388 = vmatpush1.bf16.msra.mxu0 0
      %1389 = vmatprep.subr.bf16.mxu0 0
      %1390 = vmatpush1.bf16.msra.mxu0 0
      %1391 = vmatprep.subr.bf16.mxu0 0
      %1392 = vmatpush1.bf16.msra.mxu0 0
      %1393 = vmatprep.mubr.bf16.mxu0 0
      %1394 = vmatmul.mubr.bf16.gmra.mrb[0].mxu0 %v506
      %v1395 = vpop.f32.mrb[0].mxu0
      %v1396 = vadd.f32 %v465, %v1395
      %v1397 = vpop.f32.mrb[0].mxu0
      %v1398 = vpop.f32.mrb[0].mxu0
      %v1399 = vadd.f32 %v468, %v1398
      %v1400 = vpop.f32.mrb[0].mxu0
      %1401 = vmatprep.mubr.bf16.mxu0 0
      %1402 = vmatmul.mubr.bf16.gmra.mrb[0].mxu0 %v509
      %v1403 = vpop.f32.mrb[0].mxu0
      %v1404 = vadd.f32 %v473, %v1403
      %v1405 = vpop.f32.mrb[0].mxu0
      %v1406 = vpop.f32.mrb[0].mxu0
      %v1407 = vadd.f32 %v476, %v1406
      %v1408 = vpop.f32.mrb[0].mxu0
      %1409 = vdwg.mxu0
      %v1410 = vmax.f32 %v1396, 0.0
      %v1411 = vmax.f32 %v1399, 0.0
      %v1412 = vmax.f32 %v1404, 0.0
      %v1413 = vmax.f32 %v1407, 0.0
      %v1414 = vmax.f32 %v1336, %v1410
      %v1415 = vmax.f32 %v1337, %v1411
      %v1416 = vmax.f32 %v1338, %v1412
      %v1417 = vmax.f32 %v1339, %v1413
      %v1418 = vmax.bf16 %v1340, %v1345
      %v1419 = vmax.bf16 %v1341, %v1346
      %v1420 = vmax.bf16 %v1342, %v1347
      %v1421 = vmax.bf16 %v1343, %v1348
      %s1422 = scalar_lea.vmem %s338, 192
      %v1423 = vld [vmem:[%s1422] sm:$0xf]
      %v1424 = vld [vmem:[%s1422 + $0x4] sm:$0xf]
      %v1425 = vld [vmem:[%s1422 + $0x8] sm:$0xf]
      %v1426 = vld [vmem:[%s1422 + $0xc] sm:$0xf]
      %v1431 = vunpack.c.l.b16 %v1423
      %v1432 = vunpack.c.l.b16 %v1424
      %v1433 = vunpack.c.l.b16 %v1425
      %v1434 = vunpack.c.l.b16 %v1426
      %v1435 = vpack.c.b16 %v1432, %v1431
      %v1436 = vpack.c.b16 %v1434, %v1433
      %1439 = vmatprep.subr.bf16.mxu0 0
      %1440 = vmatpush1.bf16.msra.mxu0 %v1435
      %1441 = vmatprep.subr.bf16.mxu0 0
      %1442 = vmatpush1.bf16.msra.mxu0 %v1436
      %1443 = vmatprep.subr.bf16.mxu0 0
      %1444 = vmatpush1.bf16.msra.mxu0 0
      %1445 = vmatprep.subr.bf16.mxu0 0
      %1446 = vmatpush1.bf16.msra.mxu0 0
      %1447 = vmatprep.subr.bf16.mxu0 0
      %1448 = vmatpush1.bf16.msra.mxu0 0
      %1449 = vmatprep.subr.bf16.mxu0 0
      %1450 = vmatpush1.bf16.msra.mxu0 0
      %1451 = vmatprep.subr.bf16.mxu0 0
      %1452 = vmatpush1.bf16.msra.mxu0 0
      %1453 = vmatprep.subr.bf16.mxu0 0
      %1454 = vmatpush1.bf16.msra.mxu0 0
      %1455 = vmatprep.subr.bf16.mxu0 0
      %1456 = vmatpush1.bf16.msra.mxu0 0
      %1457 = vmatprep.subr.bf16.mxu0 0
      %1458 = vmatpush1.bf16.msra.mxu0 0
      %1459 = vmatprep.subr.bf16.mxu0 0
      %1460 = vmatpush1.bf16.msra.mxu0 0
      %1461 = vmatprep.subr.bf16.mxu0 0
      %1462 = vmatpush1.bf16.msra.mxu0 0
      %1463 = vmatprep.subr.bf16.mxu0 0
      %1464 = vmatpush1.bf16.msra.mxu0 0
      %1465 = vmatprep.subr.bf16.mxu0 0
      %1466 = vmatpush1.bf16.msra.mxu0 0
      %1467 = vmatprep.subr.bf16.mxu0 0
      %1468 = vmatpush1.bf16.msra.mxu0 0
      %1469 = vmatprep.subr.bf16.mxu0 0
      %1470 = vmatpush1.bf16.msra.mxu0 0
      %1471 = vmatprep.mubr.bf16.mxu0 0
      %1472 = vmatmul.mubr.bf16.gmra.mrb[0].mxu0 %v506
      %v1473 = vpop.f32.mrb[0].mxu0
      %v1474 = vadd.f32 %v465, %v1473
      %v1475 = vpop.f32.mrb[0].mxu0
      %v1476 = vpop.f32.mrb[0].mxu0
      %v1477 = vadd.f32 %v468, %v1476
      %v1478 = vpop.f32.mrb[0].mxu0
      %1479 = vmatprep.mubr.bf16.mxu0 0
      %1480 = vmatmul.mubr.bf16.gmra.mrb[0].mxu0 %v509
      %v1481 = vpop.f32.mrb[0].mxu0
      %v1482 = vadd.f32 %v473, %v1481
      %v1483 = vpop.f32.mrb[0].mxu0
      %v1484 = vpop.f32.mrb[0].mxu0
      %v1485 = vadd.f32 %v476, %v1484
      %v1486 = vpop.f32.mrb[0].mxu0
      %1487 = vdwg.mxu0
      %v1488 = vmax.f32 %v1474, 0.0
      %v1489 = vmax.f32 %v1477, 0.0
      %v1490 = vmax.f32 %v1482, 0.0
      %v1491 = vmax.f32 %v1485, 0.0
      %v1492 = vmax.f32 %v1414, %v1488
      %v1493 = vmax.f32 %v1415, %v1489
      %v1494 = vmax.f32 %v1416, %v1490
      %v1495 = vmax.f32 %v1417, %v1491
      %v1496 = vmax.bf16 %v1418, %v1423
      %v1497 = vmax.bf16 %v1419, %v1424
      %v1498 = vmax.bf16 %v1420, %v1425
      %v1499 = vmax.bf16 %v1421, %v1426
      %s1500 = scalar_lea.vmem %s338, 208
      %v1501 = vld [vmem:[%s1500] sm:$0xf]
      %v1502 = vld [vmem:[%s1500 + $0x4] sm:$0xf]
      %v1503 = vld [vmem:[%s1500 + $0x8] sm:$0xf]
      %v1504 = vld [vmem:[%s1500 + $0xc] sm:$0xf]
      %v1509 = vunpack.c.l.b16 %v1501
      %v1510 = vunpack.c.l.b16 %v1502
      %v1511 = vunpack.c.l.b16 %v1503
      %v1512 = vunpack.c.l.b16 %v1504
      %v1513 = vpack.c.b16 %v1510, %v1509
      %v1514 = vpack.c.b16 %v1512, %v1511
      %1517 = vmatprep.subr.bf16.mxu0 0
      %1518 = vmatpush1.bf16.msra.mxu0 %v1513
      %1519 = vmatprep.subr.bf16.mxu0 0
      %1520 = vmatpush1.bf16.msra.mxu0 %v1514
      %1521 = vmatprep.subr.bf16.mxu0 0
      %1522 = vmatpush1.bf16.msra.mxu0 0
      %1523 = vmatprep.subr.bf16.mxu0 0
      %1524 = vmatpush1.bf16.msra.mxu0 0
      %1525 = vmatprep.subr.bf16.mxu0 0
      %1526 = vmatpush1.bf16.msra.mxu0 0
      %1527 = vmatprep.subr.bf16.mxu0 0
      %1528 = vmatpush1.bf16.msra.mxu0 0
      %1529 = vmatprep.subr.bf16.mxu0 0
      %1530 = vmatpush1.bf16.msra.mxu0 0
      %1531 = vmatprep.subr.bf16.mxu0 0
      %1532 = vmatpush1.bf16.msra.mxu0 0
      %1533 = vmatprep.subr.bf16.mxu0 0
      %1534 = vmatpush1.bf16.msra.mxu0 0
      %1535 = vmatprep.subr.bf16.mxu0 0
      %1536 = vmatpush1.bf16.msra.mxu0 0
      %1537 = vmatprep.subr.bf16.mxu0 0
      %1538 = vmatpush1.bf16.msra.mxu0 0
      %1539 = vmatprep.subr.bf16.mxu0 0
      %1540 = vmatpush1.bf16.msra.mxu0 0
      %1541 = vmatprep.subr.bf16.mxu0 0
      %1542 = vmatpush1.bf16.msra.mxu0 0
      %1543 = vmatprep.subr.bf16.mxu0 0
      %1544 = vmatpush1.bf16.msra.mxu0 0
      %1545 = vmatprep.subr.bf16.mxu0 0
      %1546 = vmatpush1.bf16.msra.mxu0 0
      %1547 = vmatprep.subr.bf16.mxu0 0
      %1548 = vmatpush1.bf16.msra.mxu0 0
      %1549 = vmatprep.mubr.bf16.mxu0 0
      %1550 = vmatmul.mubr.bf16.gmra.mrb[0].mxu0 %v506
      %v1551 = vpop.f32.mrb[0].mxu0
      %v1552 = vadd.f32 %v465, %v1551
      %v1553 = vpop.f32.mrb[0].mxu0
      %v1554 = vpop.f32.mrb[0].mxu0
      %v1555 = vadd.f32 %v468, %v1554
      %v1556 = vpop.f32.mrb[0].mxu0
      %1557 = vmatprep.mubr.bf16.mxu0 0
      %1558 = vmatmul.mubr.bf16.gmra.mrb[0].mxu0 %v509
      %v1559 = vpop.f32.mrb[0].mxu0
      %v1560 = vadd.f32 %v473, %v1559
      %v1561 = vpop.f32.mrb[0].mxu0
      %v1562 = vpop.f32.mrb[0].mxu0
      %v1563 = vadd.f32 %v476, %v1562
      %v1564 = vpop.f32.mrb[0].mxu0
      %1565 = vdwg.mxu0
      %v1566 = vmax.f32 %v1552, 0.0
      %v1567 = vmax.f32 %v1555, 0.0
      %v1568 = vmax.f32 %v1560, 0.0
      %v1569 = vmax.f32 %v1563, 0.0
      %v1570 = vmax.f32 %v1492, %v1566
      %v1571 = vmax.f32 %v1493, %v1567
      %v1572 = vmax.f32 %v1494, %v1568
      %v1573 = vmax.f32 %v1495, %v1569
      %v1574 = vmax.bf16 %v1496, %v1501
      %v1575 = vmax.bf16 %v1497, %v1502
      %v1576 = vmax.bf16 %v1498, %v1503
      %v1577 = vmax.bf16 %v1499, %v1504
      %s1578 = scalar_lea.vmem %s338, 224
      %v1579 = vld [vmem:[%s1578] sm:$0xf]
      %v1580 = vld [vmem:[%s1578 + $0x4] sm:$0xf]
      %v1581 = vld [vmem:[%s1578 + $0x8] sm:$0xf]
      %v1582 = vld [vmem:[%s1578 + $0xc] sm:$0xf]
      %v1587 = vunpack.c.l.b16 %v1579
      %v1588 = vunpack.c.l.b16 %v1580
      %v1589 = vunpack.c.l.b16 %v1581
      %v1590 = vunpack.c.l.b16 %v1582
      %v1591 = vpack.c.b16 %v1588, %v1587
      %v1592 = vpack.c.b16 %v1590, %v1589
      %1595 = vmatprep.subr.bf16.mxu0 0
      %1596 = vmatpush1.bf16.msra.mxu0 %v1591
      %1597 = vmatprep.subr.bf16.mxu0 0
      %1598 = vmatpush1.bf16.msra.mxu0 %v1592
      %1599 = vmatprep.subr.bf16.mxu0 0
      %1600 = vmatpush1.bf16.msra.mxu0 0
      %1601 = vmatprep.subr.bf16.mxu0 0
      %1602 = vmatpush1.bf16.msra.mxu0 0
      %1603 = vmatprep.subr.bf16.mxu0 0
      %1604 = vmatpush1.bf16.msra.mxu0 0
      %1605 = vmatprep.subr.bf16.mxu0 0
      %1606 = vmatpush1.bf16.msra.mxu0 0
      %1607 = vmatprep.subr.bf16.mxu0 0
      %1608 = vmatpush1.bf16.msra.mxu0 0
      %1609 = vmatprep.subr.bf16.mxu0 0
      %1610 = vmatpush1.bf16.msra.mxu0 0
      %1611 = vmatprep.subr.bf16.mxu0 0
      %1612 = vmatpush1.bf16.msra.mxu0 0
      %1613 = vmatprep.subr.bf16.mxu0 0
      %1614 = vmatpush1.bf16.msra.mxu0 0
      %1615 = vmatprep.subr.bf16.mxu0 0
      %1616 = vmatpush1.bf16.msra.mxu0 0
      %1617 = vmatprep.subr.bf16.mxu0 0
      %1618 = vmatpush1.bf16.msra.mxu0 0
      %1619 = vmatprep.subr.bf16.mxu0 0
      %1620 = vmatpush1.bf16.msra.mxu0 0
      %1621 = vmatprep.subr.bf16.mxu0 0
      %1622 = vmatpush1.bf16.msra.mxu0 0
      %1623 = vmatprep.subr.bf16.mxu0 0
      %1624 = vmatpush1.bf16.msra.mxu0 0
      %1625 = vmatprep.subr.bf16.mxu0 0
      %1626 = vmatpush1.bf16.msra.mxu0 0
      %1627 = vmatprep.mubr.bf16.mxu0 0
      %1628 = vmatmul.mubr.bf16.gmra.mrb[0].mxu0 %v506
      %v1629 = vpop.f32.mrb[0].mxu0
      %v1630 = vadd.f32 %v465, %v1629
      %v1631 = vpop.f32.mrb[0].mxu0
      %v1632 = vpop.f32.mrb[0].mxu0
      %v1633 = vadd.f32 %v468, %v1632
      %v1634 = vpop.f32.mrb[0].mxu0
      %1635 = vmatprep.mubr.bf16.mxu0 0
      %1636 = vmatmul.mubr.bf16.gmra.mrb[0].mxu0 %v509
      %v1637 = vpop.f32.mrb[0].mxu0
      %v1638 = vadd.f32 %v473, %v1637
      %v1639 = vpop.f32.mrb[0].mxu0
      %v1640 = vpop.f32.mrb[0].mxu0
      %v1641 = vadd.f32 %v476, %v1640
      %v1642 = vpop.f32.mrb[0].mxu0
      %1643 = vdwg.mxu0
      %v1644 = vmax.f32 %v1630, 0.0
      %v1645 = vmax.f32 %v1633, 0.0
      %v1646 = vmax.f32 %v1638, 0.0
      %v1647 = vmax.f32 %v1641, 0.0
      %v1648 = vmax.f32 %v1570, %v1644
      %v1649 = vmax.f32 %v1571, %v1645
      %v1650 = vmax.f32 %v1572, %v1646
      %v1651 = vmax.f32 %v1573, %v1647
      %v1652 = vmax.bf16 %v1574, %v1579
      %v1653 = vmax.bf16 %v1575, %v1580
      %v1654 = vmax.bf16 %v1576, %v1581
      %v1655 = vmax.bf16 %v1577, %v1582
      %v1656 = vpack.c.bf16 %v1649, %v1648
      %v1657 = vpack.c.bf16 %v1651, %v1650
      %v1662 = vunpack.c.l.b16 %v1652
      %v1663 = vunpack.c.l.b16 %v1653
      %v1664 = vunpack.c.l.b16 %v1654
      %v1665 = vunpack.c.l.b16 %v1655
      %v1666 = vpack.c.b16 %v1663, %v1662
      %v1667 = vpack.c.b16 %v1665, %v1664
      %v1670 = vld [vmem:[%s5] sm:$0xf]
      %v1671 = vld [vmem:[%s5 + $0x4] sm:$0xf]
      %v1672 = vld [vmem:[%s5 + $0x8] sm:$0xf]
      %v1673 = vld [vmem:[%s5 + $0xc] sm:$0xf]
      %v1678 = vunpack.c.l.b16 %v1670
      %v1679 = vunpack.c.l.b16 %v1671
      %v1680 = vunpack.c.l.b16 %v1672
      %v1681 = vunpack.c.l.b16 %v1673
      %v1682 = vpack.c.b16 %v1679, %v1678
      %v1683 = vpack.c.b16 %v1681, %v1680
      %vm1684 = vcmask 785408
      %v1686 = vsel %vm1684, %v1682, 0
      %v1689 = vsel %vm1684, %v1683, 0
      %1691 = vmatprep.subr.bf16.mxu0 0
      %1692 = vmatpush1.bf16.msra.mxu0 %v1666
      %1693 = vmatprep.subr.bf16.mxu0 0
      %1694 = vmatpush1.bf16.msra.mxu0 %v1667
      %1695 = vmatprep.subr.bf16.mxu0 0
      %1696 = vmatpush1.bf16.msra.mxu0 %v419
      %1697 = vmatprep.subr.bf16.mxu0 0
      %1698 = vmatpush1.bf16.msra.mxu0 %v420
      %1699 = vmatprep.subr.bf16.mxu0 0
      %1700 = vmatpush1.bf16.msra.mxu0 %v1656
      %1701 = vmatprep.subr.bf16.mxu0 0
      %1702 = vmatpush1.bf16.msra.mxu0 %v1657
      %1703 = vmatprep.subr.bf16.mxu0 0
      %1704 = vmatpush1.bf16.msra.mxu0 0
      %1705 = vmatprep.subr.bf16.mxu0 0
      %1706 = vmatpush1.bf16.msra.mxu0 0
      %1707 = vmatprep.subr.bf16.mxu0 0
      %1708 = vmatpush1.bf16.msra.mxu0 0
      %1709 = vmatprep.subr.bf16.mxu0 0
      %1710 = vmatpush1.bf16.msra.mxu0 0
      %1711 = vmatprep.subr.bf16.mxu0 0
      %1712 = vmatpush1.bf16.msra.mxu0 0
      %1713 = vmatprep.subr.bf16.mxu0 0
      %1714 = vmatpush1.bf16.msra.mxu0 0
      %1715 = vmatprep.subr.bf16.mxu0 0
      %1716 = vmatpush1.bf16.msra.mxu0 0
      %1717 = vmatprep.subr.bf16.mxu0 0
      %1718 = vmatpush1.bf16.msra.mxu0 0
      %1719 = vmatprep.subr.bf16.mxu0 0
      %1720 = vmatpush1.bf16.msra.mxu0 0
      %1721 = vmatprep.subr.bf16.mxu0 0
      %1722 = vmatpush1.bf16.msra.mxu0 0
      %1723 = vmatprep.mubr.bf16.mxu0 0
      %1724 = vmatmul.mubr.bf16.gmra.mrb[0].mxu0 %v1686
      %v1725 = vpop.f32.mrb[0].mxu0
      %v1726 = vadd.f32 0.0, %v1725
      %v1727 = vpop.f32.mrb[0].mxu0
      %v1728 = vpop.f32.mrb[0].mxu0
      %v1729 = vadd.f32 0.0, %v1728
      %v1730 = vpop.f32.mrb[0].mxu0
      %1731 = vmatprep.mubr.bf16.mxu0 0
      %1732 = vmatmul.mubr.bf16.gmra.mrb[0].mxu0 %v1689
      %v1733 = vpop.f32.mrb[0].mxu0
      %v1734 = vadd.f32 0.0, %v1733
      %v1735 = vpop.f32.mrb[0].mxu0
      %v1736 = vpop.f32.mrb[0].mxu0
      %v1737 = vadd.f32 0.0, %v1736
      %v1738 = vpop.f32.mrb[0].mxu0
      %1739 = vdwg.mxu0
      %vm1740 = vcmask 130048
      %1741 = vst.msk [vmem:[%s354] sm:$0xff] %vm1740, %v1726
      %1742 = vst.msk [vmem:[%s354 + $0x8] sm:$0xff] %vm1740, %v1729
      %1743 = vst.msk [vmem:[%s354 + $0x10] sm:$0xff] %vm1740, %v1734
      %1744 = vst.msk [vmem:[%s354 + $0x18] sm:$0xff] %vm1740, %v1737
      %v1745 = vsel %vm1740, %v1726, 0.0
      %1746 = vadd.xlane.f32.xlu0 %v1745
      %v1747 = vpop.xlane.xlu0 %1746
      %v1748 = vsel %vm1740, %v1729, 0.0
      %1749 = vadd.xlane.f32.xlu0 %v1748
      %v1750 = vpop.xlane.xlu0 %1749
      %v1751 = vsel %vm1740, %v1734, 0.0
      %1752 = vadd.xlane.f32.xlu0 %v1751
      %v1753 = vpop.xlane.xlu0 %1752
      %v1754 = vsel %vm1740, %v1737, 0.0
      %1755 = vadd.xlane.f32.xlu0 %v1754
      %v1756 = vpop.xlane.xlu0 %1755
      %v1757 = vmul.f32 %v1726, %v1726
      %v1758 = vmul.f32 %v1729, %v1729
      %v1759 = vmul.f32 %v1734, %v1734
      %v1760 = vmul.f32 %v1737, %v1737
      %v1761 = vsel %vm1740, %v1757, 0.0
      %1762 = vadd.xlane.f32.xlu0 %v1761
      %v1763 = vpop.xlane.xlu0 %1762
      %v1764 = vsel %vm1740, %v1758, 0.0
      %1765 = vadd.xlane.f32.xlu0 %v1764
      %v1766 = vpop.xlane.xlu0 %1765
      %v1767 = vsel %vm1740, %v1759, 0.0
      %1768 = vadd.xlane.f32.xlu0 %v1767
      %v1769 = vpop.xlane.xlu0 %1768
      %v1770 = vsel %vm1740, %v1760, 0.0
      %1771 = vadd.xlane.f32.xlu0 %v1770
      %v1772 = vpop.xlane.xlu0 %1771
      %vm1773 = vcmask 7168
      %v1774 = vsel %vm1773, %v1747, %v1763
      %v1775 = vsel %vm1773, %v1750, %v1766
      %v1776 = vsel %vm1773, %v1753, %v1769
      %v1777 = vsel %vm1773, %v1756, %v1772
      %vm1778 = vcmask 15360
      %1779 = vst.msk [vmem:[%s363] sm:$0xff] %vm1778, %v1774
      %1780 = vst.msk [vmem:[%s363 + $0x8] sm:$0xff] %vm1778, %v1775
      %1781 = vst.msk [vmem:[%s363 + $0x10] sm:$0xff] %vm1778, %v1776
      %1782 = vst.msk [vmem:[%s363 + $0x18] sm:$0xff] %vm1778, %v1777
      %p1783 = scmp.lt.s32.totalorder %s23, 1
      %s1784 = scalar_select %p1783, %s23, 1
      %p1785 = scmp.lt.s32.totalorder %s24, 0
      %s1786 = scalar_select %p1785, %s24, 0
      %s1787 = smul.addr %s1784, 4
      %s1788 = sadd.s32 %s1786, %s1787
      %s1789 = smul.addr %s1788, 8
      %s1790 = scalar_lea.vmem %s6, %s1789
      %p1791 = scmp.lt.s32.totalorder %s23, 1
      %s1792 = scalar_select %p1791, %s23, 1
      %p1793 = scmp.lt.s32.totalorder %s24, 0
      %s1794 = scalar_select %p1793, %s24, 0
      %s1795 = smul.addr %s1794, 4
      %s1796 = smul.addr %s1792, 4
      %s1797 = sadd.s32 %s1795, %s1796
      %s1798 = smul.addr %s1797, 8
      %s1799 = scalar_lea.vmem %s7, %s1798
      // Predicated region
      $region45: #{posdiffnet_forward.5} parent=43 // pred_check
        %p1800 = pneg %p191
      $region46: #{posdiffnet_forward.5} parent=43 // pred_check_branch
        %1802 = sbr.rel (%p1800) target = $region48
      $region47: #{posdiffnet_forward.5} parent=43 // pred_region
        _
      $region48: #{posdiffnet_forward.5} parent=43 // pred_fallthru
        _
      // Predicated region
      $region49: #{posdiffnet_forward.5} parent=43 // pred_check
        %p1803 = pneg %p219
      $region50: #{posdiffnet_forward.5} parent=43 // pred_check_branch
        %1805 = sbr.rel (%p1803) target = $region52
      $region51: #{posdiffnet_forward.5} parent=43 // pred_region
        _
      $region52: #{posdiffnet_forward.5} parent=43 // pred_fallthru
        _
    $region44: #{posdiffnet_forward.5} parent=5 // pred_fallthru
      _
    %p1806 = scmp.le.s32.totalorder 2, %s14
    // Predicated region
    $region53: #{posdiffnet_forward.5} parent=5 // pred_check
      %p1807 = pneg %p1806
    $region54: #{posdiffnet_forward.5} parent=5 // pred_check_branch
      %1809 = sbr.rel (%p1807) target = $region56
    $region55: #{posdiffnet_forward.5} parent=5 // pred_region
      %s1810 = ssub.s32 %s14, 2
      // Predicated region
      $region57: #{posdiffnet_forward.5} parent=55 // pred_check
        %p1811 = pneg %p197
      $region58: #{posdiffnet_forward.5} parent=55 // pred_check_branch
        %1813 = sbr.rel (%p1811) target = $region60
      $region59: #{posdiffnet_forward.5} parent=55 // pred_region
        %p1814 = scmp.lt.s32.totalorder %s25, 1
        %s1815 = scalar_select %p1814, %s25, 1
        %p1816 = scmp.lt.s32.totalorder %s26, 0
        %s1817 = scalar_select %p1816, %s26, 0
        %s1818 = smul.addr %s1815, 4
        %s1819 = sadd.s32 %s1817, %s1818
        %s1820 = smul.addr %s1819, 8
        %s1821 = scalar_lea.vmem %s6, %s1820
      $region60: #{posdiffnet_forward.5} parent=55 // pred_fallthru
        _
      // Predicated region
      $region61: #{posdiffnet_forward.5} parent=55 // pred_check
        %p1822 = pneg %p225
      $region62: #{posdiffnet_forward.5} parent=55 // pred_check_branch
        %1824 = sbr.rel (%p1822) target = $region64
      $region63: #{posdiffnet_forward.5} parent=55 // pred_region
        %p1825 = scmp.lt.s32.totalorder %s25, 1
        %s1826 = scalar_select %p1825, %s25, 1
        %p1827 = scmp.lt.s32.totalorder %s26, 0
        %s1828 = scalar_select %p1827, %s26, 0
        %s1829 = smul.addr %s1828, 4
        %s1830 = smul.addr %s1826, 4
        %s1831 = sadd.s32 %s1829, %s1830
        %s1832 = smul.addr %s1831, 8
        %s1833 = scalar_lea.vmem %s7, %s1832
      $region64: #{posdiffnet_forward.5} parent=55 // pred_fallthru
        _
    $region56: #{posdiffnet_forward.5} parent=5 // pred_fallthru
      _
  $region6: #{posdiffnet_forward.5} parent=0 // loop_footer
    %s18 = sadd.s32 1, %s14
  $region7: #{posdiffnet_forward.5} parent=0 // loop_footer_branch
    %13 = sbr.rel target = $region3
  $region8: #{posdiffnet_forward.5} parent=0 // loop_exit
    _

</llo_original>
